<compile_context>
chip_gen: v5e
topology: v5e:2x2
jax: 0.10.0
libtpu: 0.0.40
codegen_flags: <defaults>
</compile_context>

<pallas_src>
import jax
import jax.numpy as jnp
from jax.experimental import pallas as pl
from jax.experimental.pallas import tpu as pltpu

LANE = 128


def _round_up(x, m):
    return (x + m - 1) // m * m


def _default_bf16_epilogue():
    """bf16 VALU exists on v6e/v7x; keep the epilogue in f32 on v5e and older."""
    try:
        kind = jax.devices()[0].device_kind.lower()
    except Exception:
        return True
    for tag in ("v2", "v3", "v4", "v5"):
        if tag in kind:
            return False
    return True


def _pick_tile_b(batch):
    """Largest batch tile <= 512 that still leaves >= 2 grid steps (v7x megacore)."""
    tile = 512
    while tile > 128 and pl.cdiv(batch, tile) < 2:
        tile //= 2
    return tile


def _vmem_budget_bytes(tile_b, in_pad, hid, out_pad):
    bf16, f32 = 2, 4
    weights = (in_pad * hid + hid * hid + hid * out_pad) * bf16 \
        + (2 * hid + out_pad) * f32
    stream = 2 * tile_b * in_pad * bf16 + 2 * tile_b * out_pad * f32
    interm = 3 * tile_b * hid * f32            # slack for h / epilogue temporaries
    need = weights + stream + interm
    # headroom, clamped to a range that is safe on v5e/v6e (128 MiB) and v7x (64 MiB)
    return int(min(max(2 * need, 32 * 1024 * 1024), 48 * 1024 * 1024))


def make_mlp_kernel(bf16_epilogue: bool):
    ep = jnp.bfloat16 if bf16_epilogue else jnp.float32

    def prelu(v, a):
        return jnp.where(v >= 0, v, a * v)

    def mlp_kernel(alpha_ref,                  # SMEM (2,) PReLU params
                   x_ref,                      # (TILE_B, IN_PAD) bf16
                   w1_ref, b1_ref,             # (IN_PAD, H) bf16, (1, H) f32
                   w2_ref, b2_ref,             # (H, H)      bf16, (1, H) f32
                   w3_ref, b3_ref,             # (H, OUT_PAD) bf16, (1, OUT_PAD) f32
                   o_ref):                     # (TILE_B, OUT_PAD) f32
        a1 = alpha_ref[0].astype(ep)
        a2 = alpha_ref[1].astype(ep)

        # x = self.layer1_activ(self.layer1(input_tensor))
        h = jnp.dot(x_ref[...], w1_ref[...], preferred_element_type=jnp.float32)
        h = prelu(h.astype(ep) + b1_ref[...].astype(ep), a1).astype(jnp.bfloat16)

        # for layer in self.linearblock: x = atvt(layer(x))   (num_layer=1)
        h = jnp.dot(h, w2_ref[...], preferred_element_type=jnp.float32)
        h = prelu(h.astype(ep) + b2_ref[...].astype(ep), a2).astype(jnp.bfloat16)

        # x = self.last_layer(x)   (no final activation / residual / BN / dropout)
        out = jnp.dot(h, w3_ref[...], preferred_element_type=jnp.float32) + b3_ref[...]
        o_ref[...] = out.astype(o_ref.dtype)

    return mlp_kernel


def fully_connected_forward(x, params, *, tile_b=None, bf16_epilogue=None):
    """x: (B, input_dim) f32.  params: dict from init_params."""
    B, in_dim = x.shape
    in_pad, hid = params["w1"].shape
    out_pad = params["w3"].shape[1]
    out_dim = params["out_dim"]
    assert in_dim == params["in_dim"]

    if tile_b is None:
        tile_b = _pick_tile_b(B)
    if bf16_epilogue is None:
        bf16_epilogue = _default_bf16_epilogue()

    # Feature pad (in_dim -> in_pad, zero lanes hit zero rows of w1) fused into
    # the bf16 cast.  No batch pad: ragged grid, Pallas masks the last block.
    x_p = jnp.pad(x.astype(jnp.bfloat16), ((0, 0), (0, in_pad - in_dim)))

    grid = (pl.cdiv(B, tile_b),)
    kernel = make_mlp_kernel(bf16_epilogue)
    vmem_limit = _vmem_budget_bytes(tile_b, in_pad, hid, out_pad)

    def call(single_buffer_weights):
        w_mode = pl.Buffered(1) if single_buffer_weights else None

        def wspec(shape):
            # Resident operands: constant index_map; single-buffer to reclaim VMEM.
            return pl.BlockSpec(shape, lambda i: (0, 0), pipeline_mode=w_mode)

        return pl.pallas_call(
            kernel,
            out_shape=jax.ShapeDtypeStruct((B, out_pad), jnp.float32),
            grid=grid,
            in_specs=[
                pl.BlockSpec(memory_space=pltpu.MemorySpace.SMEM),    # alpha
                pl.BlockSpec((tile_b, in_pad), lambda i: (i, 0)),     # x tile (bf16)
                wspec((in_pad, hid)),                                 # w1
                wspec((1, hid)),                                      # b1
                wspec((hid, hid)),                                    # w2
                wspec((1, hid)),                                      # b2
                wspec((hid, out_pad)),                                # w3
                wspec((1, out_pad)),                                  # b3
            ],
            out_specs=pl.BlockSpec((tile_b, out_pad), lambda i: (i, 0)),
            compiler_params=pltpu.CompilerParams(
                dimension_semantics=("parallel",),
                vmem_limit_bytes=vmem_limit),
        )(
            params["alpha"], x_p,
            params["w1"], params["b1"],
            params["w2"], params["b2"],
            params["w3"], params["b3"],
        )

    try:
        out = call(True)
    except Exception:
        # Fallback: default double-buffered resident weights (correct, uses a
        # bit more VMEM) if single-buffering via pipeline_mode is unavailable.
        out = call(False)

    return out[:B, :out_dim]


def init_params(key, input_dim, hidden_dim, output_dim):
    """Deterministic init mimicking nn.Linear (uniform +-1/sqrt(fan_in)) and
    nn.PReLU (0.25).  Weights stored bf16, pre-padded to MXU-friendly shapes
    (K -> multiple of 128, output lanes -> 128)."""
    ks = jax.random.split(key, 6)
    in_pad = _round_up(input_dim, LANE)
    out_pad = _round_up(output_dim, LANE)

    def linear(kw, kb, fan_in, fan_out, pad_in, pad_out):
        bound = 1.0 / jnp.sqrt(fan_in)
        w = jax.random.uniform(kw, (fan_in, fan_out), jnp.float32, -bound, bound)
        b = jax.random.uniform(kb, (1, fan_out), jnp.float32, -bound, bound)
        w_p = jnp.zeros((pad_in, pad_out), jnp.float32).at[:fan_in, :fan_out].set(w)
        b_p = jnp.zeros((1, pad_out), jnp.float32).at[:, :fan_out].set(b)
        return w_p.astype(jnp.bfloat16), b_p

    w1, b1 = linear(ks[0], ks[1], input_dim, hidden_dim, in_pad, hidden_dim)
    w2, b2 = linear(ks[2], ks[3], hidden_dim, hidden_dim, hidden_dim, hidden_dim)
    w3, b3 = linear(ks[4], ks[5], hidden_dim, output_dim, hidden_dim, out_pad)

    return {
        "w1": w1, "b1": b1,
        "w2": w2, "b2": b2,
        "w3": w3, "b3": b3,
        # PReLU params: [layer1_activ, atvt_list[0]] (nn.PReLU default 0.25)
        "alpha": jnp.array([0.25, 0.25], jnp.float32),
        "in_dim": input_dim,
        "out_dim": output_dim,
    }


def reference_forward(x, p, *, bf16_epilogue):
    """Pure-JAX reference mirroring the kernel's precision recipe
    (bf16 matmul inputs, f32 accumulation, bf16-or-f32 bias/PReLU epilogue)."""
    ep = jnp.bfloat16 if bf16_epilogue else jnp.float32
    in_pad = p["w1"].shape[0]
    a1 = p["alpha"][0].astype(ep)
    a2 = p["alpha"][1].astype(ep)
    x_p = jnp.pad(x.astype(jnp.bfloat16), ((0, 0), (0, in_pad - x.shape[1])))

    h = jnp.dot(x_p, p["w1"], preferred_element_type=jnp.float32)
    h = h.astype(ep) + p["b1"].astype(ep)
    h = jnp.where(h >= 0, h, a1 * h).astype(jnp.bfloat16)

    h = jnp.dot(h, p["w2"], preferred_element_type=jnp.float32)
    h = h.astype(ep) + p["b2"].astype(ep)
    h = jnp.where(h >= 0, h, a2 * h).astype(jnp.bfloat16)

    out = jnp.dot(h, p["w3"], preferred_element_type=jnp.float32) + p["b3"]
    return out[:, :p["out_dim"]].astype(jnp.float32)


if __name__ == "__main__":
    # Module-consistent small shapes: input_dim=785, output_dim=1 (defaults),
    # hidden_dim shrunk to 256; batch=200 exercises the ragged last block.
    batch, input_dim, hidden_dim, output_dim = 200, 785, 256, 1

    key = jax.random.PRNGKey(0)
    kx, kp = jax.random.split(key)
    x = jax.random.normal(kx, (batch, input_dim), jnp.float32)
    params = init_params(kp, input_dim, hidden_dim, output_dim)

    bf16_epi = _default_bf16_epilogue()
    out = fully_connected_forward(x, params, bf16_epilogue=bf16_epi)
    out = jax.block_until_ready(out)

    ref = reference_forward(x, params, bf16_epilogue=bf16_epi)
    assert out.shape == (batch, output_dim)
    assert jnp.allclose(out, ref, rtol=1e-2, atol=1e-2), (
        float(jnp.max(jnp.abs(out - ref))))

    print("KERNEL_OK")
</pallas_src>

<mosaic_0001>
module attributes {stable_mosaic.version = 11 : i64} {
  func.func @mlp_kernel(%arg0: i32, %arg1: memref<2xf32, #tpu.memory_space<smem>>, %arg2: memref<128x896xbf16, #tpu.memory_space<vmem>>, %arg3: memref<896x256xbf16, #tpu.memory_space<vmem>>, %arg4: memref<1x256xf32, #tpu.memory_space<vmem>>, %arg5: memref<256x256xbf16, #tpu.memory_space<vmem>>, %arg6: memref<1x256xf32, #tpu.memory_space<vmem>>, %arg7: memref<256x128xbf16, #tpu.memory_space<vmem>>, %arg8: memref<1x128xf32, #tpu.memory_space<vmem>>, %arg9: memref<128x128xf32, #tpu.memory_space<vmem>>) attributes {dimension_semantics = [#tpu.dimension_semantics<parallel>], iteration_bounds = array<i64: 2>, scalar_prefetch = 0 : i64, scratch_operands = 0 : i64, tpu.core_type = #tpu.core_type<tc>, window_params = [{transform_indices = @transform_0, window_bounds = array<i64: 2>}, {transform_indices = @transform_1, window_bounds = array<i64: 128, 896>}, {pipeline_mode = #tpu.pipeline_mode<synchronous>, transform_indices = @transform_2, window_bounds = array<i64: 896, 256>}, {pipeline_mode = #tpu.pipeline_mode<synchronous>, transform_indices = @transform_3, window_bounds = array<i64: 1, 256>}, {pipeline_mode = #tpu.pipeline_mode<synchronous>, transform_indices = @transform_4, window_bounds = array<i64: 256, 256>}, {pipeline_mode = #tpu.pipeline_mode<synchronous>, transform_indices = @transform_5, window_bounds = array<i64: 1, 256>}, {pipeline_mode = #tpu.pipeline_mode<synchronous>, transform_indices = @transform_6, window_bounds = array<i64: 256, 128>}, {pipeline_mode = #tpu.pipeline_mode<synchronous>, transform_indices = @transform_7, window_bounds = array<i64: 1, 128>}, {transform_indices = @transform_8, window_bounds = array<i64: 128, 128>}]} {
    %c0 = arith.constant 0 : index
    %0 = memref.load %arg1[%c0] : memref<2xf32, #tpu.memory_space<smem>>
    %1 = arith.truncf %0 : f32 to bf16
    %c1 = arith.constant 1 : index
    %2 = memref.load %arg1[%c1] : memref<2xf32, #tpu.memory_space<smem>>
    %3 = arith.truncf %2 : f32 to bf16
    %c0_0 = arith.constant 0 : index
    %c0_1 = arith.constant 0 : index
    %4 = vector.load %arg2[%c0_0, %c0_1] : memref<128x896xbf16, #tpu.memory_space<vmem>>, vector<128x896xbf16>
    %c0_2 = arith.constant 0 : index
    %c0_3 = arith.constant 0 : index
    %5 = vector.load %arg3[%c0_2, %c0_3] : memref<896x256xbf16, #tpu.memory_space<vmem>>, vector<896x256xbf16>
    %cst = arith.constant dense<0.000000e+00> : vector<128x256xf32>
    %6 = tpu.matmul %4, %5, %cst {dimension_numbers = #tpu.dot_dimension_numbers<[1], [0], [0], [1], [0, 0, 1, 1], [], []>} : vector<128x896xbf16>, vector<896x256xbf16>, vector<128x256xf32> -> vector<128x256xf32>
    %7 = arith.truncf %6 : vector<128x256xf32> to vector<128x256xbf16>
    %c0_4 = arith.constant 0 : index
    %c0_5 = arith.constant 0 : index
    %8 = vector.load %arg4[%c0_4, %c0_5] : memref<1x256xf32, #tpu.memory_space<vmem>>, vector<1x256xf32>
    %9 = arith.truncf %8 : vector<1x256xf32> to vector<1x256xbf16>
    %10 = vector.broadcast %9 : vector<1x256xbf16> to vector<128x256xbf16>
    %11 = arith.addf %7, %10 : vector<128x256xbf16>
    %cst_6 = arith.constant 0.000000e+00 : bf16
    %12 = vector.broadcast %cst_6 : bf16 to vector<128x256xbf16>
    %13 = arith.cmpf oge, %11, %12 : vector<128x256xbf16>
    %14 = vector.broadcast %1 : bf16 to vector<128x256xbf16>
    %15 = arith.mulf %14, %11 : vector<128x256xbf16>
    %16 = arith.select %13, %11, %15 : vector<128x256xi1>, vector<128x256xbf16>
    %c0_7 = arith.constant 0 : index
    %c0_8 = arith.constant 0 : index
    %17 = vector.load %arg5[%c0_7, %c0_8] : memref<256x256xbf16, #tpu.memory_space<vmem>>, vector<256x256xbf16>
    %cst_9 = arith.constant dense<0.000000e+00> : vector<128x256xf32>
    %18 = tpu.matmul %16, %17, %cst_9 {dimension_numbers = #tpu.dot_dimension_numbers<[1], [0], [0], [1], [0, 0, 1, 1], [], []>} : vector<128x256xbf16>, vector<256x256xbf16>, vector<128x256xf32> -> vector<128x256xf32>
    %19 = arith.truncf %18 : vector<128x256xf32> to vector<128x256xbf16>
    %c0_10 = arith.constant 0 : index
    %c0_11 = arith.constant 0 : index
    %20 = vector.load %arg6[%c0_10, %c0_11] : memref<1x256xf32, #tpu.memory_space<vmem>>, vector<1x256xf32>
    %21 = arith.truncf %20 : vector<1x256xf32> to vector<1x256xbf16>
    %22 = vector.broadcast %21 : vector<1x256xbf16> to vector<128x256xbf16>
    %23 = arith.addf %19, %22 : vector<128x256xbf16>
    %cst_12 = arith.constant 0.000000e+00 : bf16
    %24 = vector.broadcast %cst_12 : bf16 to vector<128x256xbf16>
    %25 = arith.cmpf oge, %23, %24 : vector<128x256xbf16>
    %26 = vector.broadcast %3 : bf16 to vector<128x256xbf16>
    %27 = arith.mulf %26, %23 : vector<128x256xbf16>
    %28 = arith.select %25, %23, %27 : vector<128x256xi1>, vector<128x256xbf16>
    %c0_13 = arith.constant 0 : index
    %c0_14 = arith.constant 0 : index
    %29 = vector.load %arg7[%c0_13, %c0_14] : memref<256x128xbf16, #tpu.memory_space<vmem>>, vector<256x128xbf16>
    %cst_15 = arith.constant dense<0.000000e+00> : vector<128x128xf32>
    %30 = tpu.matmul %28, %29, %cst_15 {dimension_numbers = #tpu.dot_dimension_numbers<[1], [0], [0], [1], [0, 0, 1, 1], [], []>} : vector<128x256xbf16>, vector<256x128xbf16>, vector<128x128xf32> -> vector<128x128xf32>
    %c0_16 = arith.constant 0 : index
    %c0_17 = arith.constant 0 : index
    %31 = vector.load %arg8[%c0_16, %c0_17] : memref<1x128xf32, #tpu.memory_space<vmem>>, vector<1x128xf32>
    %32 = vector.broadcast %31 : vector<1x128xf32> to vector<128x128xf32>
    %33 = arith.addf %30, %32 : vector<128x128xf32>
    %c0_18 = arith.constant 0 : index
    %c0_19 = arith.constant 0 : index
    %34 = vector.load %arg9[%c0_18, %c0_19] : memref<128x128xf32, #tpu.memory_space<vmem>>, vector<128x128xf32>
    tpu.vector_store %arg9[%c0_18, %c0_19], %33 {strides = array<i32>} : memref<128x128xf32, #tpu.memory_space<vmem>>, vector<128x128xf32>,
    return
  }
  func.func @transform_0(%arg0: i32) -> i32 {
    %c0_i32 = arith.constant 0 : i32
    %c0_i32_0 = arith.constant 0 : i32
    return %c0_i32 : i32
  }
  func.func @transform_1(%arg0: i32) -> (i32, i32) {
    %c0_i32 = arith.constant 0 : i32
    %c0_i32_0 = arith.constant 0 : i32
    return %arg0, %c0_i32 : i32, i32
  }
  func.func @transform_2(%arg0: i32) -> (i32, i32) {
    %c0_i32 = arith.constant 0 : i32
    %c0_i32_0 = arith.constant 0 : i32
    %c0_i32_1 = arith.constant 0 : i32
    return %c0_i32, %c0_i32_0 : i32, i32
  }
  func.func @transform_3(%arg0: i32) -> (i32, i32) {
    %c0_i32 = arith.constant 0 : i32
    %c0_i32_0 = arith.constant 0 : i32
    %c0_i32_1 = arith.constant 0 : i32
    return %c0_i32, %c0_i32_0 : i32, i32
  }
  func.func @transform_4(%arg0: i32) -> (i32, i32) {
    %c0_i32 = arith.constant 0 : i32
    %c0_i32_0 = arith.constant 0 : i32
    %c0_i32_1 = arith.constant 0 : i32
    return %c0_i32, %c0_i32_0 : i32, i32
  }
  func.func @transform_5(%arg0: i32) -> (i32, i32) {
    %c0_i32 = arith.constant 0 : i32
    %c0_i32_0 = arith.constant 0 : i32
    %c0_i32_1 = arith.constant 0 : i32
    return %c0_i32, %c0_i32_0 : i32, i32
  }
  func.func @transform_6(%arg0: i32) -> (i32, i32) {
    %c0_i32 = arith.constant 0 : i32
    %c0_i32_0 = arith.constant 0 : i32
    %c0_i32_1 = arith.constant 0 : i32
    return %c0_i32, %c0_i32_0 : i32, i32
  }
  func.func @transform_7(%arg0: i32) -> (i32, i32) {
    %c0_i32 = arith.constant 0 : i32
    %c0_i32_0 = arith.constant 0 : i32
    %c0_i32_1 = arith.constant 0 : i32
    return %c0_i32, %c0_i32_0 : i32, i32
  }
  func.func @transform_8(%arg0: i32) -> (i32, i32) {
    %c0_i32 = arith.constant 0 : i32
    %c0_i32_0 = arith.constant 0 : i32
    return %arg0, %c0_i32 : i32, i32
  }
}

module attributes {stable_mosaic.version = 11 : i64} {
  func.func @mlp_kernel(%arg0: i32, %arg1: memref<2xf32, #tpu.memory_space<smem>>, %arg2: memref<128x896xbf16, #tpu.memory_space<vmem>>, %arg3: memref<896x256xbf16, #tpu.memory_space<vmem>>, %arg4: memref<1x256xf32, #tpu.memory_space<vmem>>, %arg5: memref<256x256xbf16, #tpu.memory_space<vmem>>, %arg6: memref<1x256xf32, #tpu.memory_space<vmem>>, %arg7: memref<256x128xbf16, #tpu.memory_space<vmem>>, %arg8: memref<1x128xf32, #tpu.memory_space<vmem>>, %arg9: memref<128x128xf32, #tpu.memory_space<vmem>>) attributes {dimension_semantics = [#tpu.dimension_semantics<parallel>], iteration_bounds = array<i64: 2>, scalar_prefetch = 0 : i64, scratch_operands = 0 : i64, tpu.core_type = #tpu.core_type<tc>, window_params = [{transform_indices = @transform_0, window_bounds = array<i64: 2>}, {transform_indices = @transform_1, window_bounds = array<i64: 128, 896>}, {pipeline_mode = #tpu.pipeline_mode<synchronous>, transform_indices = @transform_2, window_bounds = array<i64: 896, 256>}, {pipeline_mode = #tpu.pipeline_mode<synchronous>, transform_indices = @transform_3, window_bounds = array<i64: 1, 256>}, {pipeline_mode = #tpu.pipeline_mode<synchronous>, transform_indices = @transform_4, window_bounds = array<i64: 256, 256>}, {pipeline_mode = #tpu.pipeline_mode<synchronous>, transform_indices = @transform_5, window_bounds = array<i64: 1, 256>}, {pipeline_mode = #tpu.pipeline_mode<synchronous>, transform_indices = @transform_6, window_bounds = array<i64: 256, 128>}, {pipeline_mode = #tpu.pipeline_mode<synchronous>, transform_indices = @transform_7, window_bounds = array<i64: 1, 128>}, {transform_indices = @transform_8, window_bounds = array<i64: 128, 128>}]} {
    %c0 = arith.constant 0 : index
    %0 = memref.load %arg1[%c0] : memref<2xf32, #tpu.memory_space<smem>>
    %1 = arith.truncf %0 : f32 to bf16
    %c1 = arith.constant 1 : index
    %2 = memref.load %arg1[%c1] : memref<2xf32, #tpu.memory_space<smem>>
    %3 = arith.truncf %2 : f32 to bf16
    %c0_0 = arith.constant 0 : index
    %c0_1 = arith.constant 0 : index
    %4 = vector.load %arg2[%c0_0, %c0_1] : memref<128x896xbf16, #tpu.memory_space<vmem>>, vector<128x896xbf16>
    %c0_2 = arith.constant 0 : index
    %c0_3 = arith.constant 0 : index
    %5 = vector.load %arg3[%c0_2, %c0_3] : memref<896x256xbf16, #tpu.memory_space<vmem>>, vector<896x256xbf16>
    %cst = arith.constant dense<0.000000e+00> : vector<128x256xf32>
    %6 = tpu.matmul %4, %5, %cst {dimension_numbers = #tpu.dot_dimension_numbers<[1], [0], [0], [1], [0, 0, 1, 1], [], []>} : vector<128x896xbf16>, vector<896x256xbf16>, vector<128x256xf32> -> vector<128x256xf32>
    %7 = arith.truncf %6 : vector<128x256xf32> to vector<128x256xbf16>
    %c0_4 = arith.constant 0 : index
    %c0_5 = arith.constant 0 : index
    %8 = vector.load %arg4[%c0_4, %c0_5] : memref<1x256xf32, #tpu.memory_space<vmem>>, vector<1x256xf32>
    %9 = arith.truncf %8 : vector<1x256xf32> to vector<1x256xbf16>
    %10 = vector.broadcast %9 : vector<1x256xbf16> to vector<128x256xbf16>
    %11 = arith.addf %7, %10 : vector<128x256xbf16>
    %cst_6 = arith.constant 0.000000e+00 : bf16
    %12 = vector.broadcast %cst_6 : bf16 to vector<128x256xbf16>
    %13 = arith.cmpf oge, %11, %12 : vector<128x256xbf16>
    %14 = vector.broadcast %1 : bf16 to vector<128x256xbf16>
    %15 = arith.mulf %14, %11 : vector<128x256xbf16>
    %16 = arith.select %13, %11, %15 : vector<128x256xi1>, vector<128x256xbf16>
    %c0_7 = arith.constant 0 : index
    %c0_8 = arith.constant 0 : index
    %17 = vector.load %arg5[%c0_7, %c0_8] : memref<256x256xbf16, #tpu.memory_space<vmem>>, vector<256x256xbf16>
    %cst_9 = arith.constant dense<0.000000e+00> : vector<128x256xf32>
    %18 = tpu.matmul %16, %17, %cst_9 {dimension_numbers = #tpu.dot_dimension_numbers<[1], [0], [0], [1], [0, 0, 1, 1], [], []>} : vector<128x256xbf16>, vector<256x256xbf16>, vector<128x256xf32> -> vector<128x256xf32>
    %19 = arith.truncf %18 : vector<128x256xf32> to vector<128x256xbf16>
    %c0_10 = arith.constant 0 : index
    %c0_11 = arith.constant 0 : index
    %20 = vector.load %arg6[%c0_10, %c0_11] : memref<1x256xf32, #tpu.memory_space<vmem>>, vector<1x256xf32>
    %21 = arith.truncf %20 : vector<1x256xf32> to vector<1x256xbf16>
    %22 = vector.broadcast %21 : vector<1x256xbf16> to vector<128x256xbf16>
    %23 = arith.addf %19, %22 : vector<128x256xbf16>
    %cst_12 = arith.constant 0.000000e+00 : bf16
    %24 = vector.broadcast %cst_12 : bf16 to vector<128x256xbf16>
    %25 = arith.cmpf oge, %23, %24 : vector<128x256xbf16>
    %26 = vector.broadcast %3 : bf16 to vector<128x256xbf16>
    %27 = arith.mulf %26, %23 : vector<128x256xbf16>
    %28 = arith.select %25, %23, %27 : vector<128x256xi1>, vector<128x256xbf16>
    %c0_13 = arith.constant 0 : index
    %c0_14 = arith.constant 0 : index
    %29 = vector.load %arg7[%c0_13, %c0_14] : memref<256x128xbf16, #tpu.memory_space<vmem>>, vector<256x128xbf16>
    %cst_15 = arith.constant dense<0.000000e+00> : vector<128x128xf32>
    %30 = tpu.matmul %28, %29, %cst_15 {dimension_numbers = #tpu.dot_dimension_numbers<[1], [0], [0], [1], [0, 0, 1, 1], [], []>} : vector<128x256xbf16>, vector<256x128xbf16>, vector<128x128xf32> -> vector<128x128xf32>
    %c0_16 = arith.constant 0 : index
    %c0_17 = arith.constant 0 : index
    %31 = vector.load %arg8[%c0_16, %c0_17] : memref<1x128xf32, #tpu.memory_space<vmem>>, vector<1x128xf32>
    %32 = vector.broadcast %31 : vector<1x128xf32> to vector<128x128xf32>
    %33 = arith.addf %30, %32 : vector<128x128xf32>
    %c0_18 = arith.constant 0 : index
    %c0_19 = arith.constant 0 : index
    %34 = vector.load %arg9[%c0_18, %c0_19] : memref<128x128xf32, #tpu.memory_space<vmem>>, vector<128x128xf32>
    tpu.vector_store %arg9[%c0_18, %c0_19], %33 {strides = array<i32>} : memref<128x128xf32, #tpu.memory_space<vmem>>, vector<128x128xf32>,
    return
  }
  func.func @transform_0(%arg0: i32) -> i32 {
    %c0_i32 = arith.constant 0 : i32
    %c0_i32_0 = arith.constant 0 : i32
    return %c0_i32 : i32
  }
  func.func @transform_1(%arg0: i32) -> (i32, i32) {
    %c0_i32 = arith.constant 0 : i32
    %c0_i32_0 = arith.constant 0 : i32
    return %arg0, %c0_i32 : i32, i32
  }
  func.func @transform_2(%arg0: i32) -> (i32, i32) {
    %c0_i32 = arith.constant 0 : i32
    %c0_i32_0 = arith.constant 0 : i32
    %c0_i32_1 = arith.constant 0 : i32
    return %c0_i32, %c0_i32_0 : i32, i32
  }
  func.func @transform_3(%arg0: i32) -> (i32, i32) {
    %c0_i32 = arith.constant 0 : i32
    %c0_i32_0 = arith.constant 0 : i32
    %c0_i32_1 = arith.constant 0 : i32
    return %c0_i32, %c0_i32_0 : i32, i32
  }
  func.func @transform_4(%arg0: i32) -> (i32, i32) {
    %c0_i32 = arith.constant 0 : i32
    %c0_i32_0 = arith.constant 0 : i32
    %c0_i32_1 = arith.constant 0 : i32
    return %c0_i32, %c0_i32_0 : i32, i32
  }
  func.func @transform_5(%arg0: i32) -> (i32, i32) {
    %c0_i32 = arith.constant 0 : i32
    %c0_i32_0 = arith.constant 0 : i32
    %c0_i32_1 = arith.constant 0 : i32
    return %c0_i32, %c0_i32_0 : i32, i32
  }
  func.func @transform_6(%arg0: i32) -> (i32, i32) {
    %c0_i32 = arith.constant 0 : i32
    %c0_i32_0 = arith.constant 0 : i32
    %c0_i32_1 = arith.constant 0 : i32
    return %c0_i32, %c0_i32_0 : i32, i32
  }
  func.func @transform_7(%arg0: i32) -> (i32, i32) {
    %c0_i32 = arith.constant 0 : i32
    %c0_i32_0 = arith.constant 0 : i32
    %c0_i32_1 = arith.constant 0 : i32
    return %c0_i32, %c0_i32_0 : i32, i32
  }
  func.func @transform_8(%arg0: i32) -> (i32, i32) {
    %c0_i32 = arith.constant 0 : i32
    %c0_i32_0 = arith.constant 0 : i32
    return %arg0, %c0_i32 : i32, i32
  }
}

</mosaic_0001>

<llo_original>
// kernel: tpu_custom_call.1
$region0: #{tpu_custom_call.1}
  #allocation0 [shape = 'u32[]', space=smem, size = 0x4, offset = 0x4, fixed_abs, tag = 'smem constant byte address 0x4 - core index']
  #allocation1 [shape = 'u32[72,128]{1,0:T(1,128)}', space=vmem, size = 0x9000, scoped, tag = 'internal scratch']
  %s0 = inlined_call_operand.hbm [shape: f32[2], index: 0, kind: input, shape index: {}]
  %s1 = inlined_call_operand.hbm [shape: bf16[200,896], index: 1, kind: input, shape index: {}]
  %s2 = inlined_call_operand.hbm [shape: bf16[896,256], index: 2, kind: input, shape index: {}]
  %s3 = inlined_call_operand.vmem [shape: f32[1,256], index: 3, kind: input, shape index: {}]
  %s4 = inlined_call_operand.hbm [shape: bf16[256,256], index: 4, kind: input, shape index: {}]
  %s5 = inlined_call_operand.vmem [shape: f32[1,256], index: 5, kind: input, shape index: {}]
  %s6 = inlined_call_operand.hbm [shape: bf16[256,128], index: 6, kind: input, shape index: {}]
  %s7 = inlined_call_operand.vmem [shape: f32[1,128], index: 7, kind: input, shape index: {}]
  %s8 = inlined_call_operand.hbm [shape: f32[200,128], index: 8, kind: output, shape index: {}]
  %s9 = sld [smem:[#allocation0]]
  $region85: #{tpu_custom_call.1} parent=0
    _
  %s11 = ssub.s32 1, %s9
  %s12 = scalar_select 0, %s11, %s9
  $region1: #{tpu_custom_call.1} parent=0
    #allocation2 [shape = 'u8[512]{0}', space=smem, size = 0x200, scoped, tag = 'input window, operand 0, single buffered']
    #allocation3 [shape = 's32[2]{0}', space=sflag, size = 0x8, scoped, tag = 'scoped memory for tpu_custom_call.1']
    #allocation4 [shape = 's32[2]{0}', space=sflag, size = 0x8, scoped, tag = 'scoped memory for tpu_custom_call.1']
    #allocation5 [shape = 's32[2]{0}', space=sflag, size = 0x8, scoped, tag = 'scoped memory for tpu_custom_call.1']
    #allocation6 [shape = 'u8[458752]{0}', space=vmem, size = 0x70000, scoped, tag = 'input window, operand 1']
    #allocation7 [shape = 'u8[458752]{0}', space=vmem, size = 0x70000, scoped, tag = 'input window, operand 2, single buffered']
    #allocation8 [shape = 's32[1]{0}', space=sflag, size = 0x4, scoped, tag = 'scoped memory for tpu_custom_call.1']
    #allocation9 [shape = 'u8[131072]{0}', space=vmem, size = 0x20000, scoped, tag = 'input window, operand 4, single buffered']
    #allocation10 [shape = 'u8[65536]{0}', space=vmem, size = 0x10000, scoped, tag = 'input window, operand 6, single buffered']
    #allocation11 [shape = 's32[1]{0}', space=sflag, size = 0x4, scoped, tag = 'scoped memory for tpu_custom_call.1']
    #allocation12 [shape = 'u8[131072]{0}', space=vmem, size = 0x20000, scoped, tag = 'output window, operand 0']
    %13 = vsyncpa [#allocation5], 0
    %14 = vsyncpa [#allocation3], 0
    %s15 = scalar_lea.sflag [#allocation3], 1
    %16 = vsyncpa %s15, 0
    %17 = vsyncpa [#allocation8], 0
    %18 = vsyncpa [#allocation11], 0
    %19 = vsyncpa [#allocation4], 0
    %s20 = scalar_lea.sflag [#allocation4], 1
    %21 = vsyncpa %s20, 0
    loop: start=0, step=1, limit=4
    $region2: #{tpu_custom_call.1} parent=1 // loop_pre_header
      _
    $region3: #{tpu_custom_call.1} parent=1 // loop_header
      %s23 = sphi 0, %s27
      %p24 = scmp.ge.s32.totalorder %s23, 4
      %s31 = sphi 0, %s31
      %s33 = sphi 0, %s31
      %s34 = sphi 0, %s33
      %s48 = sphi 0, %s34
      %s54 = sphi 0, %s56
      %s57 = sphi 0, %s54
      %s58 = sphi 0, %s57
      %s74 = sphi 0, %s58
      %s78 = sphi 0, %s78
      %s80 = sphi 0, %s78
      %s81 = sphi 0, %s80
      %s95 = sphi 0, %s81
      %s99 = sphi 0, %s99
      %s101 = sphi 0, %s99
      %s102 = sphi 0, %s101
      %s116 = sphi 0, %s102
      %s120 = sphi 0, %s120
      %s122 = sphi 0, %s120
      %s123 = sphi 0, %s122
      %s137 = sphi 0, %s123
      %s141 = sphi 0, %s141
      %s143 = sphi 0, %s141
      %s144 = sphi 0, %s143
      %s158 = sphi 0, %s144
      %s162 = sphi 0, %s162
      %s164 = sphi 0, %s162
      %s165 = sphi 0, %s164
      %s179 = sphi 0, %s165
      %s183 = sphi 0, %s183
      %s185 = sphi 0, %s183
      %s186 = sphi 0, %s185
      %s200 = sphi 0, %s186
      %s206 = sphi 0, %s208
      %s209 = sphi 0, %s206
      %s210 = sphi 0, %s209
      %s226 = sphi 0, %s210
    $region4: #{tpu_custom_call.1} parent=1 // loop_header_branch
      %26 = sbr.rel (%p24) target = $region8
    $region5: #{tpu_custom_call.1} parent=1 // loop_body
      %s28 = ssub.s32 %s23, 1
      %s29 = ssub.s32 %s23, 2
      %s30 = sadd.s32 %s23, 1
      %s32 = sadd.s32 %s31, 1
      %p35 = scmp.eq.s32.totalorder %s23, 1
      %p36 = scmp.ne.s32.totalorder %s31, %s33
      %p37 = scmp.eq.s32.totalorder %s23, 0
      %p38 = por %p36, %p37
      %p39 = scmp.ne.s32.totalorder %s31, %s33
      %p40 = scmp.eq.s32.totalorder %s28, 1
      %p41 = por %p39, %p40
      %p42 = scmp.ne.s32.totalorder %s33, %s34
      %p43 = scmp.eq.s32.totalorder %s28, 0
      %p44 = por %p42, %p43
      %p45 = scmp.ne.s32.totalorder %s33, %s34
      %p46 = scmp.eq.s32.totalorder %s29, 1
      %p47 = por %p45, %p46
      %p49 = scmp.ne.s32.totalorder %s34, %s48
      %p50 = scmp.eq.s32.totalorder %s29, 0
      %p51 = por %p49, %p50
      %s52 = ssub.s32 %s23, %s30
      %p53 = scmp.eq.s32.totalorder %s52, 0
      %s55 = sadd.s32 %s54, 1
      %s56 = scalar_select %p53, %s54, %s55
      %p59 = pneg %p53
      %p60 = scmp.eq.s32.totalorder %s23, 1
      %p61 = por %p59, %p60
      %p62 = scmp.ne.s32.totalorder %s54, %s57
      %p63 = scmp.eq.s32.totalorder %s23, 0
      %p64 = por %p62, %p63
      %p65 = scmp.ne.s32.totalorder %s54, %s57
      %p66 = scmp.eq.s32.totalorder %s28, 1
      %p67 = por %p65, %p66
      %p68 = scmp.ne.s32.totalorder %s57, %s58
      %p69 = scmp.eq.s32.totalorder %s28, 0
      %p70 = por %p68, %p69
      %p71 = scmp.ne.s32.totalorder %s57, %s58
      %p72 = scmp.eq.s32.totalorder %s29, 1
      %p73 = por %p71, %p72
      %p75 = scmp.ne.s32.totalorder %s58, %s74
      %p76 = scmp.eq.s32.totalorder %s29, 0
      %p77 = por %p75, %p76
      %s79 = sadd.s32 %s78, 1
      %p82 = scmp.eq.s32.totalorder %s23, 1
      %p83 = scmp.ne.s32.totalorder %s78, %s80
      %p84 = scmp.eq.s32.totalorder %s23, 0
      %p85 = por %p83, %p84
      %p86 = scmp.ne.s32.totalorder %s78, %s80
      %p87 = scmp.eq.s32.totalorder %s28, 1
      %p88 = por %p86, %p87
      %p89 = scmp.ne.s32.totalorder %s80, %s81
      %p90 = scmp.eq.s32.totalorder %s28, 0
      %p91 = por %p89, %p90
      %p92 = scmp.ne.s32.totalorder %s80, %s81
      %p93 = scmp.eq.s32.totalorder %s29, 1
      %p94 = por %p92, %p93
      %p96 = scmp.ne.s32.totalorder %s81, %s95
      %p97 = scmp.eq.s32.totalorder %s29, 0
      %p98 = por %p96, %p97
      %s100 = sadd.s32 %s99, 1
      %p103 = scmp.eq.s32.totalorder %s23, 1
      %p104 = scmp.ne.s32.totalorder %s99, %s101
      %p105 = scmp.eq.s32.totalorder %s23, 0
      %p106 = por %p104, %p105
      %p107 = scmp.ne.s32.totalorder %s99, %s101
      %p108 = scmp.eq.s32.totalorder %s28, 1
      %p109 = por %p107, %p108
      %p110 = scmp.ne.s32.totalorder %s101, %s102
      %p111 = scmp.eq.s32.totalorder %s28, 0
      %p112 = por %p110, %p111
      %p113 = scmp.ne.s32.totalorder %s101, %s102
      %p114 = scmp.eq.s32.totalorder %s29, 1
      %p115 = por %p113, %p114
      %p117 = scmp.ne.s32.totalorder %s102, %s116
      %p118 = scmp.eq.s32.totalorder %s29, 0
      %p119 = por %p117, %p118
      %s121 = sadd.s32 %s120, 1
      %p124 = scmp.eq.s32.totalorder %s23, 1
      %p125 = scmp.ne.s32.totalorder %s120, %s122
      %p126 = scmp.eq.s32.totalorder %s23, 0
      %p127 = por %p125, %p126
      %p128 = scmp.ne.s32.totalorder %s120, %s122
      %p129 = scmp.eq.s32.totalorder %s28, 1
      %p130 = por %p128, %p129
      %p131 = scmp.ne.s32.totalorder %s122, %s123
      %p132 = scmp.eq.s32.totalorder %s28, 0
      %p133 = por %p131, %p132
      %p134 = scmp.ne.s32.totalorder %s122, %s123
      %p135 = scmp.eq.s32.totalorder %s29, 1
      %p136 = por %p134, %p135
      %p138 = scmp.ne.s32.totalorder %s123, %s137
      %p139 = scmp.eq.s32.totalorder %s29, 0
      %p140 = por %p138, %p139
      %s142 = sadd.s32 %s141, 1
      %p145 = scmp.eq.s32.totalorder %s23, 1
      %p146 = scmp.ne.s32.totalorder %s141, %s143
      %p147 = scmp.eq.s32.totalorder %s23, 0
      %p148 = por %p146, %p147
      %p149 = scmp.ne.s32.totalorder %s141, %s143
      %p150 = scmp.eq.s32.totalorder %s28, 1
      %p151 = por %p149, %p150
      %p152 = scmp.ne.s32.totalorder %s143, %s144
      %p153 = scmp.eq.s32.totalorder %s28, 0
      %p154 = por %p152, %p153
      %p155 = scmp.ne.s32.totalorder %s143, %s144
      %p156 = scmp.eq.s32.totalorder %s29, 1
      %p157 = por %p155, %p156
      %p159 = scmp.ne.s32.totalorder %s144, %s158
      %p160 = scmp.eq.s32.totalorder %s29, 0
      %p161 = por %p159, %p160
      %s163 = sadd.s32 %s162, 1
      %p166 = scmp.eq.s32.totalorder %s23, 1
      %p167 = scmp.ne.s32.totalorder %s162, %s164
      %p168 = scmp.eq.s32.totalorder %s23, 0
      %p169 = por %p167, %p168
      %p170 = scmp.ne.s32.totalorder %s162, %s164
      %p171 = scmp.eq.s32.totalorder %s28, 1
      %p172 = por %p170, %p171
      %p173 = scmp.ne.s32.totalorder %s164, %s165
      %p174 = scmp.eq.s32.totalorder %s28, 0
      %p175 = por %p173, %p174
      %p176 = scmp.ne.s32.totalorder %s164, %s165
      %p177 = scmp.eq.s32.totalorder %s29, 1
      %p178 = por %p176, %p177
      %p180 = scmp.ne.s32.totalorder %s165, %s179
      %p181 = scmp.eq.s32.totalorder %s29, 0
      %p182 = por %p180, %p181
      %s184 = sadd.s32 %s183, 1
      %p187 = scmp.eq.s32.totalorder %s23, 1
      %p188 = scmp.ne.s32.totalorder %s183, %s185
      %p189 = scmp.eq.s32.totalorder %s23, 0
      %p190 = por %p188, %p189
      %p191 = scmp.ne.s32.totalorder %s183, %s185
      %p192 = scmp.eq.s32.totalorder %s28, 1
      %p193 = por %p191, %p192
      %p194 = scmp.ne.s32.totalorder %s185, %s186
      %p195 = scmp.eq.s32.totalorder %s28, 0
      %p196 = por %p194, %p195
      %p197 = scmp.ne.s32.totalorder %s185, %s186
      %p198 = scmp.eq.s32.totalorder %s29, 1
      %p199 = por %p197, %p198
      %p201 = scmp.ne.s32.totalorder %s186, %s200
      %p202 = scmp.eq.s32.totalorder %s29, 0
      %p203 = por %p201, %p202
      %s204 = ssub.s32 %s23, %s30
      %p205 = scmp.eq.s32.totalorder %s204, 0
      %s207 = sadd.s32 %s206, 1
      %s208 = scalar_select %p205, %s206, %s207
      %p211 = pneg %p205
      %p212 = scmp.eq.s32.totalorder %s23, 1
      %p213 = por %p211, %p212
      %p214 = scmp.ne.s32.totalorder %s206, %s209
      %p215 = scmp.eq.s32.totalorder %s23, 0
      %p216 = por %p214, %p215
      %p217 = scmp.ne.s32.totalorder %s206, %s209
      %p218 = scmp.eq.s32.totalorder %s28, 1
      %p219 = por %p217, %p218
      %p220 = scmp.ne.s32.totalorder %s209, %s210
      %p221 = scmp.eq.s32.totalorder %s28, 0
      %p222 = por %p220, %p221
      %p223 = scmp.ne.s32.totalorder %s209, %s210
      %p224 = scmp.eq.s32.totalorder %s29, 1
      %p225 = por %p223, %p224
      %p227 = scmp.ne.s32.totalorder %s210, %s226
      %p228 = scmp.eq.s32.totalorder %s29, 0
      %p229 = por %p227, %p228
      %p230 = scmp.le.s32.totalorder 1, %s23
      %p231 = scmp.lt.s32.totalorder %s23, 3
      %p232 = pnand %p230, %p231
      %p233 = pneg %p232
      // Predicated region
      $region9: #{tpu_custom_call.1} parent=5 // pred_check
        _
      $region10: #{tpu_custom_call.1} parent=5 // pred_check_branch
        %235 = sbr.rel (%p232) target = $region12
      $region11: #{tpu_custom_call.1} parent=5 // pred_region
        %s236 = ssub.s32 %s23, 1
        // Predicated region
        $region13: #{tpu_custom_call.1} parent=11 // pred_check
          %p237 = pneg %p44
        $region14: #{tpu_custom_call.1} parent=11 // pred_check_branch
          %239 = sbr.rel (%p237) target = $region16
        $region15: #{tpu_custom_call.1} parent=11 // pred_region
          %241 = vsyncadd [#allocation5], 0
          %s243 = sshll.u32 %s0, 4
          %s244 = int_to_ptr.hbm [resolvable:$true] %s243
          %246 = dma.hbm_to_smem %s244, 16, [#allocation2], [#allocation5]
        $region16: #{tpu_custom_call.1} parent=11 // pred_fallthru
          _
        // Predicated region
        $region17: #{tpu_custom_call.1} parent=11 // pred_check
          %p247 = pneg %p91
        $region18: #{tpu_custom_call.1} parent=11 // pred_check_branch
          %249 = sbr.rel (%p247) target = $region20
        $region19: #{tpu_custom_call.1} parent=11 // pred_region
          %251 = vsyncadd [#allocation8], 0
          %s252 = sshll.u32 %s2, 4
          %s253 = int_to_ptr.hbm [resolvable:$true] %s252
          %s254 = sshll.u32 [#allocation7], 4
          %s255 = int_to_ptr.vmem [resolvable:$true] %s254
          %260 = dma.hbm_to_vmem [thread:$0]  %s253, 14336, %s255, [#allocation8], 128, 128, 8
        $region20: #{tpu_custom_call.1} parent=11 // pred_fallthru
          _
        // Predicated region
        $region21: #{tpu_custom_call.1} parent=11 // pred_check
          %p261 = pneg %p112
        $region22: #{tpu_custom_call.1} parent=11 // pred_check_branch
          %263 = sbr.rel (%p261) target = $region24
        $region23: #{tpu_custom_call.1} parent=11 // pred_region
          _
        $region24: #{tpu_custom_call.1} parent=11 // pred_fallthru
          _
        // Predicated region
        $region25: #{tpu_custom_call.1} parent=11 // pred_check
          %p264 = pneg %p133
        $region26: #{tpu_custom_call.1} parent=11 // pred_check_branch
          %266 = sbr.rel (%p264) target = $region28
        $region27: #{tpu_custom_call.1} parent=11 // pred_region
          %268 = vsyncadd [#allocation8], 0
          %s269 = sshll.u32 %s4, 4
          %s270 = int_to_ptr.hbm [resolvable:$true] %s269
          %s271 = sshll.u32 [#allocation9], 4
          %s272 = int_to_ptr.vmem [resolvable:$true] %s271
          %277 = dma.hbm_to_vmem [thread:$0]  %s270, 4096, %s272, [#allocation8], 128, 128, 8
        $region28: #{tpu_custom_call.1} parent=11 // pred_fallthru
          _
        // Predicated region
        $region29: #{tpu_custom_call.1} parent=11 // pred_check
          %p278 = pneg %p154
        $region30: #{tpu_custom_call.1} parent=11 // pred_check_branch
          %280 = sbr.rel (%p278) target = $region32
        $region31: #{tpu_custom_call.1} parent=11 // pred_region
          _
        $region32: #{tpu_custom_call.1} parent=11 // pred_fallthru
          _
        // Predicated region
        $region33: #{tpu_custom_call.1} parent=11 // pred_check
          %p281 = pneg %p175
        $region34: #{tpu_custom_call.1} parent=11 // pred_check_branch
          %283 = sbr.rel (%p281) target = $region36
        $region35: #{tpu_custom_call.1} parent=11 // pred_region
          %285 = vsyncadd [#allocation11], 0
          %s286 = sshll.u32 %s6, 4
          %s287 = int_to_ptr.hbm [resolvable:$true] %s286
          %s288 = sshll.u32 [#allocation10], 4
          %s289 = int_to_ptr.vmem [resolvable:$true] %s288
          %294 = dma.hbm_to_vmem [thread:$0]  %s287, 2048, %s289, [#allocation11], 64, 64, 4
        $region36: #{tpu_custom_call.1} parent=11 // pred_fallthru
          _
        // Predicated region
        $region37: #{tpu_custom_call.1} parent=11 // pred_check
          %p295 = pneg %p196
        $region38: #{tpu_custom_call.1} parent=11 // pred_check_branch
          %297 = sbr.rel (%p295) target = $region40
        $region39: #{tpu_custom_call.1} parent=11 // pred_region
          _
        $region40: #{tpu_custom_call.1} parent=11 // pred_fallthru
          _
      $region12: #{tpu_custom_call.1} parent=5 // pred_fallthru
        _
      %p298 = scmp.lt.s32.totalorder %s23, 2
      // Predicated region
      $region41: #{tpu_custom_call.1} parent=5 // pred_check
        %p299 = pneg %p298
      $region42: #{tpu_custom_call.1} parent=5 // pred_check_branch
        %301 = sbr.rel (%p299) target = $region44
      $region43: #{tpu_custom_call.1} parent=5 // pred_region
        // Predicated region
        $region45: #{tpu_custom_call.1} parent=43 // pred_check
          %p302 = pneg %p64
        $region46: #{tpu_custom_call.1} parent=43 // pred_check_branch
          %304 = sbr.rel (%p302) target = $region48
        $region47: #{tpu_custom_call.1} parent=43 // pred_region
          %s305 = sand.u32 %s54, 1
          %s306 = scalar_lea.sflag [#allocation3], %s305
          %s307 = sand.u32 %s54, 1
          %s308 = smul.addr %s307, 448
          %s309 = scalar_lea.vmem [#allocation6], %s308
          %s310 = smul.u32 16, %s23
          %s311 = ssub.s32 25, %s310
          %p312 = scmp.lt.s32.totalorder %s311, 16
          %s313 = scalar_select %p312, %s311, 16
          %s314 = smul.u32 4, %s313
          %s315 = smul.u32 %s314, 7
          %s316 = ssub.s32 448, %s315
          %s317 = sshll.u32 %s316, 4
          %318 = vsyncadd %s306, %s317
          %p319 = scmp.ne.s32.totalorder 0, %s315
          %s320 = smul.addr %s310, 7
          %s321 = smul.addr %s320, 4
          %s322 = scalar_lea.hbm %s1, %s321
          %s323 = smul.u32 28, %s313
          %s324 = sshll.u32 %s322, 4
          %s325 = int_to_ptr.hbm [resolvable:$true] %s324
          %s326 = sshll.u32 %s309, 4
          %s327 = int_to_ptr.vmem [resolvable:$true] %s326
          %s328 = sshll.u32 %s323, 4
          %332 = dma.hbm_to_vmem [thread:$0]  (%p319), %s325, %s328, %s327, %s306, 448, 448, 28
        $region48: #{tpu_custom_call.1} parent=43 // pred_fallthru
          _
      $region44: #{tpu_custom_call.1} parent=5 // pred_fallthru
        _
      %p333 = scmp.le.s32.totalorder 1, %s23
      %p334 = scmp.lt.s32.totalorder %s23, 3
      %p335 = pnand %p333, %p334
      %p336 = pneg %p335
      // Predicated region
      $region49: #{tpu_custom_call.1} parent=5 // pred_check
        _
      $region50: #{tpu_custom_call.1} parent=5 // pred_check_branch
        %338 = sbr.rel (%p335) target = $region52
      $region51: #{tpu_custom_call.1} parent=5 // pred_region
        %s339 = ssub.s32 %s23, 1
        // Predicated region
        $region53: #{tpu_custom_call.1} parent=51 // pred_check
          %p340 = pneg %p44
        $region54: #{tpu_custom_call.1} parent=51 // pred_check_branch
          %342 = sbr.rel (%p340) target = $region56
        $region55: #{tpu_custom_call.1} parent=51 // pred_region
          %344 = dma.done [#allocation5], 16
        $region56: #{tpu_custom_call.1} parent=51 // pred_fallthru
          _
        %s345 = sand.u32 %s57, 1
        %s346 = scalar_lea.sflag [#allocation3], %s345
        %s347 = sand.u32 %s57, 1
        %s348 = smul.addr %s347, 448
        %s349 = scalar_lea.vmem [#allocation6], %s348
        // Predicated region
        $region57: #{tpu_custom_call.1} parent=51 // pred_check
          %p350 = pneg %p70
        $region58: #{tpu_custom_call.1} parent=51 // pred_check_branch
          %352 = sbr.rel (%p350) target = $region60
        $region59: #{tpu_custom_call.1} parent=51 // pred_region
          %354 = dma.done %s346, 7168
        $region60: #{tpu_custom_call.1} parent=51 // pred_fallthru
          _
        // Predicated region
        $region61: #{tpu_custom_call.1} parent=51 // pred_check
          %p355 = pneg %p91
        $region62: #{tpu_custom_call.1} parent=51 // pred_check_branch
          %357 = sbr.rel (%p355) target = $region64
        $region63: #{tpu_custom_call.1} parent=51 // pred_region
          %359 = dma.done [#allocation8], 14336
        $region64: #{tpu_custom_call.1} parent=51 // pred_fallthru
          _
        // Predicated region
        $region65: #{tpu_custom_call.1} parent=51 // pred_check
          %p360 = pneg %p133
        $region66: #{tpu_custom_call.1} parent=51 // pred_check_branch
          %362 = sbr.rel (%p360) target = $region68
        $region67: #{tpu_custom_call.1} parent=51 // pred_region
          %364 = dma.done [#allocation8], 4096
        $region68: #{tpu_custom_call.1} parent=51 // pred_fallthru
          _
        // Predicated region
        $region69: #{tpu_custom_call.1} parent=51 // pred_check
          %p365 = pneg %p175
        $region70: #{tpu_custom_call.1} parent=51 // pred_check_branch
          %367 = sbr.rel (%p365) target = $region72
        $region71: #{tpu_custom_call.1} parent=51 // pred_region
          %369 = dma.done [#allocation11], 2048
        $region72: #{tpu_custom_call.1} parent=51 // pred_fallthru
          _
        %370 = sfence
        %p371 = pneg %p44
        %p372 = pneg %p41
        %s373 = sand.u32 %s57, 1
        %s374 = scalar_lea.sflag [#allocation3], %s373
        %s375 = sand.u32 %s57, 1
        %s376 = smul.addr %s375, 448
        %s377 = scalar_lea.vmem [#allocation6], %s376
        %p378 = pneg %p70
        %p379 = pneg %p67
        %p380 = pneg %p91
        %p381 = pneg %p88
        %p382 = pneg %p112
        %p383 = pneg %p109
        %p384 = pneg %p133
        %p385 = pneg %p130
        %p386 = pneg %p154
        %p387 = pneg %p151
        %p388 = pneg %p175
        %p389 = pneg %p172
        %p390 = pneg %p196
        %p391 = pneg %p193
        %p392 = pneg %p222
        %p393 = pneg %p219
        %s394 = sand.u32 %s209, 1
        %s395 = scalar_lea.sflag [#allocation4], %s394
        %s396 = sand.u32 %s209, 1
        %s397 = smul.addr %s396, 128
        %s398 = scalar_lea.vmem [#allocation12], %s397
        %s399 = smul.u32 16, %s28
        %s400 = ssub.s32 25, %s399
        %p401 = scmp.lt.s32.totalorder %s400, 16
        %s402 = scalar_select %p401, %s400, 16
        %s403 = smul.u32 4, %s402
        %s404 = smul.u32 %s403, 7
        %s405 = smul.u32 16, %s28
        %s406 = ssub.s32 25, %s405
        %p407 = scmp.lt.s32.totalorder %s406, 16
        %s408 = scalar_select %p407, %s406, 16
        %s409 = smul.u32 8, %s408
        %s410 = sld [smem:[#allocation2]]
        %p412 = scmp.ne.f32.partialorder %s410, %s410
        %s413 = sshrl.u32 %s410, 16
        %s414 = sand.u32 %s413, 1
        %s415 = sadd.s32 32767, %s414
        %s416 = sadd.s32 %s410, %s415
        %s417 = sand.u32 %s416, 4294901760
        %s418 = scalar_select %p412, 2143289344, %s417
        %s420 = sshrl.u32 %s418, 16
        %s421 = sld [smem:[#allocation2 + $0x1]]
        %p423 = scmp.ne.f32.partialorder %s421, %s421
        %s424 = sshrl.u32 %s421, 16
        %s425 = sand.u32 %s424, 1
        %s426 = sadd.s32 32767, %s425
        %s427 = sadd.s32 %s421, %s426
        %s428 = sand.u32 %s427, 4294901760
        %s429 = scalar_select %p423, 2143289344, %s428
        %s431 = sshrl.u32 %s429, 16
        %v432 = vld [vmem:[%s349] sm:$0xff]
        %v433 = vld [vmem:[%s349 + $0x8] sm:$0xff]
        %v434 = vld [vmem:[%s349 + $0x10] sm:$0xff]
        %v435 = vld [vmem:[%s349 + $0x18] sm:$0xf]
        %v436 = vld [vmem:[%s349 + $0x1c] sm:$0xff]
        %v437 = vld [vmem:[%s349 + $0x24] sm:$0xff]
        %v438 = vld [vmem:[%s349 + $0x2c] sm:$0xff]
        %v439 = vld [vmem:[%s349 + $0x34] sm:$0xf]
        %v440 = vld [vmem:[%s349 + $0x38] sm:$0xff]
        %v441 = vld [vmem:[%s349 + $0x40] sm:$0xff]
        %v442 = vld [vmem:[%s349 + $0x48] sm:$0xff]
        %v443 = vld [vmem:[%s349 + $0x50] sm:$0xf]
        %v444 = vld [vmem:[%s349 + $0x54] sm:$0xff]
        %v445 = vld [vmem:[%s349 + $0x5c] sm:$0xff]
        %v446 = vld [vmem:[%s349 + $0x64] sm:$0xff]
        %v447 = vld [vmem:[%s349 + $0x6c] sm:$0xf]
        %v448 = vld [vmem:[%s349 + $0x70] sm:$0xff]
        %v449 = vld [vmem:[%s349 + $0x78] sm:$0xff]
        %v450 = vld [vmem:[%s349 + $0x80] sm:$0xff]
        %v451 = vld [vmem:[%s349 + $0x88] sm:$0xf]
        %v452 = vld [vmem:[%s349 + $0x8c] sm:$0xff]
        %v453 = vld [vmem:[%s349 + $0x94] sm:$0xff]
        %v454 = vld [vmem:[%s349 + $0x9c] sm:$0xff]
        %v455 = vld [vmem:[%s349 + $0xa4] sm:$0xf]
        %v456 = vld [vmem:[%s349 + $0xa8] sm:$0xff]
        %v457 = vld [vmem:[%s349 + $0xb0] sm:$0xff]
        %v458 = vld [vmem:[%s349 + $0xb8] sm:$0xff]
        %v459 = vld [vmem:[%s349 + $0xc0] sm:$0xf]
        %v460 = vld [vmem:[%s349 + $0xc4] sm:$0xff]
        %v461 = vld [vmem:[%s349 + $0xcc] sm:$0xff]
        %v462 = vld [vmem:[%s349 + $0xd4] sm:$0xff]
        %v463 = vld [vmem:[%s349 + $0xdc] sm:$0xf]
        %v464 = vld [vmem:[%s349 + $0xe0] sm:$0xff]
        %v465 = vld [vmem:[%s349 + $0xe8] sm:$0xff]
        %v466 = vld [vmem:[%s349 + $0xf0] sm:$0xff]
        %v467 = vld [vmem:[%s349 + $0xf8] sm:$0xf]
        %v468 = vld [vmem:[%s349 + $0xfc] sm:$0xff]
        %v469 = vld [vmem:[%s349 + $0x104] sm:$0xff]
        %v470 = vld [vmem:[%s349 + $0x10c] sm:$0xff]
        %v471 = vld [vmem:[%s349 + $0x114] sm:$0xf]
        %v472 = vld [vmem:[%s349 + $0x118] sm:$0xff]
        %v473 = vld [vmem:[%s349 + $0x120] sm:$0xff]
        %v474 = vld [vmem:[%s349 + $0x128] sm:$0xff]
        %v475 = vld [vmem:[%s349 + $0x130] sm:$0xf]
        %v476 = vld [vmem:[%s349 + $0x134] sm:$0xff]
        %v477 = vld [vmem:[%s349 + $0x13c] sm:$0xff]
        %v478 = vld [vmem:[%s349 + $0x144] sm:$0xff]
        %v479 = vld [vmem:[%s349 + $0x14c] sm:$0xf]
        %v480 = vld [vmem:[%s349 + $0x150] sm:$0xff]
        %v481 = vld [vmem:[%s349 + $0x158] sm:$0xff]
        %v482 = vld [vmem:[%s349 + $0x160] sm:$0xff]
        %v483 = vld [vmem:[%s349 + $0x168] sm:$0xf]
        %v484 = vld [vmem:[%s349 + $0x16c] sm:$0xff]
        %v485 = vld [vmem:[%s349 + $0x174] sm:$0xff]
        %v486 = vld [vmem:[%s349 + $0x17c] sm:$0xff]
        %v487 = vld [vmem:[%s349 + $0x184] sm:$0xf]
        %v488 = vld [vmem:[%s349 + $0x188] sm:$0xff]
        %v489 = vld [vmem:[%s349 + $0x190] sm:$0xff]
        %v490 = vld [vmem:[%s349 + $0x198] sm:$0xff]
        %v491 = vld [vmem:[%s349 + $0x1a0] sm:$0xf]
        %v492 = vld [vmem:[%s349 + $0x1a4] sm:$0xff]
        %v493 = vld [vmem:[%s349 + $0x1ac] sm:$0xff]
        %v494 = vld [vmem:[%s349 + $0x1b4] sm:$0xff]
        %v495 = vld [vmem:[%s349 + $0x1bc] sm:$0xf]
        %v496 = vld [vmem:[#allocation7] sm:$0xff]
        %v497 = vld [vmem:[#allocation7 + $0x8] sm:$0xff]
        %v498 = vld [vmem:[#allocation7 + $0x10] sm:$0xff]
        %v499 = vld [vmem:[#allocation7 + $0x18] sm:$0xff]
        %v500 = vld [vmem:[#allocation7 + $0x20] sm:$0xff]
        %v501 = vld [vmem:[#allocation7 + $0x28] sm:$0xff]
        %v502 = vld [vmem:[#allocation7 + $0x30] sm:$0xff]
        %v503 = vld [vmem:[#allocation7 + $0x38] sm:$0xff]
        %v504 = vld [vmem:[#allocation7 + $0x40] sm:$0xff]
        %v505 = vld [vmem:[#allocation7 + $0x48] sm:$0xff]
        %v506 = vld [vmem:[#allocation7 + $0x50] sm:$0xff]
        %v507 = vld [vmem:[#allocation7 + $0x58] sm:$0xff]
        %v508 = vld [vmem:[#allocation7 + $0x60] sm:$0xff]
        %v509 = vld [vmem:[#allocation7 + $0x68] sm:$0xff]
        %v510 = vld [vmem:[#allocation7 + $0x70] sm:$0xff]
        %v511 = vld [vmem:[#allocation7 + $0x78] sm:$0xff]
        %v512 = vld [vmem:[#allocation7 + $0x80] sm:$0xff]
        %v513 = vld [vmem:[#allocation7 + $0x88] sm:$0xff]
        %v514 = vld [vmem:[#allocation7 + $0x90] sm:$0xff]
        %v515 = vld [vmem:[#allocation7 + $0x98] sm:$0xff]
        %v516 = vld [vmem:[#allocation7 + $0xa0] sm:$0xff]
        %v517 = vld [vmem:[#allocation7 + $0xa8] sm:$0xff]
        %v518 = vld [vmem:[#allocation7 + $0xb0] sm:$0xff]
        %v519 = vld [vmem:[#allocation7 + $0xb8] sm:$0xff]
        %v520 = vld [vmem:[#allocation7 + $0xc0] sm:$0xff]
        %v521 = vld [vmem:[#allocation7 + $0xc8] sm:$0xff]
        %v522 = vld [vmem:[#allocation7 + $0xd0] sm:$0xff]
        %v523 = vld [vmem:[#allocation7 + $0xd8] sm:$0xff]
        %v524 = vld [vmem:[#allocation7 + $0xe0] sm:$0xff]
        %v525 = vld [vmem:[#allocation7 + $0xe8] sm:$0xff]
        %v526 = vld [vmem:[#allocation7 + $0xf0] sm:$0xff]
        %v527 = vld [vmem:[#allocation7 + $0xf8] sm:$0xff]
        %v528 = vld [vmem:[#allocation7 + $0x100] sm:$0xff]
        %v529 = vld [vmem:[#allocation7 + $0x108] sm:$0xff]
        %v530 = vld [vmem:[#allocation7 + $0x110] sm:$0xff]
        %v531 = vld [vmem:[#allocation7 + $0x118] sm:$0xff]
        %v532 = vld [vmem:[#allocation7 + $0x120] sm:$0xff]
        %v533 = vld [vmem:[#allocation7 + $0x128] sm:$0xff]
        %v534 = vld [vmem:[#allocation7 + $0x130] sm:$0xff]
        %v535 = vld [vmem:[#allocation7 + $0x138] sm:$0xff]
        %v536 = vld [vmem:[#allocation7 + $0x140] sm:$0xff]
        %v537 = vld [vmem:[#allocation7 + $0x148] sm:$0xff]
        %v538 = vld [vmem:[#allocation7 + $0x150] sm:$0xff]
        %v539 = vld [vmem:[#allocation7 + $0x158] sm:$0xff]
        %v540 = vld [vmem:[#allocation7 + $0x160] sm:$0xff]
        %v541 = vld [vmem:[#allocation7 + $0x168] sm:$0xff]
        %v542 = vld [vmem:[#allocation7 + $0x170] sm:$0xff]
        %v543 = vld [vmem:[#allocation7 + $0x178] sm:$0xff]
        %v544 = vld [vmem:[#allocation7 + $0x180] sm:$0xff]
        %v545 = vld [vmem:[#allocation7 + $0x188] sm:$0xff]
        %v546 = vld [vmem:[#allocation7 + $0x190] sm:$0xff]
        %v547 = vld [vmem:[#allocation7 + $0x198] sm:$0xff]
        %v548 = vld [vmem:[#allocation7 + $0x1a0] sm:$0xff]
        %v549 = vld [vmem:[#allocation7 + $0x1a8] sm:$0xff]
        %v550 = vld [vmem:[#allocation7 + $0x1b0] sm:$0xff]
        %v551 = vld [vmem:[#allocation7 + $0x1b8] sm:$0xff]
        %v552 = vld [vmem:[#allocation7 + $0x1c0] sm:$0xff]
        %v553 = vld [vmem:[#allocation7 + $0x1c8] sm:$0xff]
        %v554 = vld [vmem:[#allocation7 + $0x1d0] sm:$0xff]
        %v555 = vld [vmem:[#allocation7 + $0x1d8] sm:$0xff]
        %v556 = vld [vmem:[#allocation7 + $0x1e0] sm:$0xff]
        %v557 = vld [vmem:[#allocation7 + $0x1e8] sm:$0xff]
        %v558 = vld [vmem:[#allocation7 + $0x1f0] sm:$0xff]
        %v559 = vld [vmem:[#allocation7 + $0x1f8] sm:$0xff]
        %v560 = vld [vmem:[#allocation7 + $0x200] sm:$0xff]
        %v561 = vld [vmem:[#allocation7 + $0x208] sm:$0xff]
        %v562 = vld [vmem:[#allocation7 + $0x210] sm:$0xff]
        %v563 = vld [vmem:[#allocation7 + $0x218] sm:$0xff]
        %v564 = vld [vmem:[#allocation7 + $0x220] sm:$0xff]
        %v565 = vld [vmem:[#allocation7 + $0x228] sm:$0xff]
        %v566 = vld [vmem:[#allocation7 + $0x230] sm:$0xff]
        %v567 = vld [vmem:[#allocation7 + $0x238] sm:$0xff]
        %v568 = vld [vmem:[#allocation7 + $0x240] sm:$0xff]
        %v569 = vld [vmem:[#allocation7 + $0x248] sm:$0xff]
        %v570 = vld [vmem:[#allocation7 + $0x250] sm:$0xff]
        %v571 = vld [vmem:[#allocation7 + $0x258] sm:$0xff]
        %v572 = vld [vmem:[#allocation7 + $0x260] sm:$0xff]
        %v573 = vld [vmem:[#allocation7 + $0x268] sm:$0xff]
        %v574 = vld [vmem:[#allocation7 + $0x270] sm:$0xff]
        %v575 = vld [vmem:[#allocation7 + $0x278] sm:$0xff]
        %v576 = vld [vmem:[#allocation7 + $0x280] sm:$0xff]
        %v577 = vld [vmem:[#allocation7 + $0x288] sm:$0xff]
        %v578 = vld [vmem:[#allocation7 + $0x290] sm:$0xff]
        %v579 = vld [vmem:[#allocation7 + $0x298] sm:$0xff]
        %v580 = vld [vmem:[#allocation7 + $0x2a0] sm:$0xff]
        %v581 = vld [vmem:[#allocation7 + $0x2a8] sm:$0xff]
        %v582 = vld [vmem:[#allocation7 + $0x2b0] sm:$0xff]
        %v583 = vld [vmem:[#allocation7 + $0x2b8] sm:$0xff]
        %v584 = vld [vmem:[#allocation7 + $0x2c0] sm:$0xff]
        %v585 = vld [vmem:[#allocation7 + $0x2c8] sm:$0xff]
        %v586 = vld [vmem:[#allocation7 + $0x2d0] sm:$0xff]
        %v587 = vld [vmem:[#allocation7 + $0x2d8] sm:$0xff]
        %v588 = vld [vmem:[#allocation7 + $0x2e0] sm:$0xff]
        %v589 = vld [vmem:[#allocation7 + $0x2e8] sm:$0xff]
        %v590 = vld [vmem:[#allocation7 + $0x2f0] sm:$0xff]
        %v591 = vld [vmem:[#allocation7 + $0x2f8] sm:$0xff]
        %v592 = vld [vmem:[#allocation7 + $0x300] sm:$0xff]
        %v593 = vld [vmem:[#allocation7 + $0x308] sm:$0xff]
        %v594 = vld [vmem:[#allocation7 + $0x310] sm:$0xff]
        %v595 = vld [vmem:[#allocation7 + $0x318] sm:$0xff]
        %v596 = vld [vmem:[#allocation7 + $0x320] sm:$0xff]
        %v597 = vld [vmem:[#allocation7 + $0x328] sm:$0xff]
        %v598 = vld [vmem:[#allocation7 + $0x330] sm:$0xff]
        %v599 = vld [vmem:[#allocation7 + $0x338] sm:$0xff]
        %v600 = vld [vmem:[#allocation7 + $0x340] sm:$0xff]
        %v601 = vld [vmem:[#allocation7 + $0x348] sm:$0xff]
        %v602 = vld [vmem:[#allocation7 + $0x350] sm:$0xff]
        %v603 = vld [vmem:[#allocation7 + $0x358] sm:$0xff]
        %v604 = vld [vmem:[#allocation7 + $0x360] sm:$0xff]
        %v605 = vld [vmem:[#allocation7 + $0x368] sm:$0xff]
        %v606 = vld [vmem:[#allocation7 + $0x370] sm:$0xff]
        %v607 = vld [vmem:[#allocation7 + $0x378] sm:$0xff]
        %v672 = vunpack.c.l.b16 %v432
        %v673 = vunpack.c.h.b16 %v432
        %v674 = vunpack.c.l.b16 %v433
        %v675 = vunpack.c.h.b16 %v433
        %v676 = vunpack.c.l.b16 %v434
        %v677 = vunpack.c.h.b16 %v434
        %v678 = vunpack.c.l.b16 %v435
        %v679 = vunpack.c.l.b16 %v436
        %v680 = vunpack.c.h.b16 %v436
        %v681 = vunpack.c.l.b16 %v437
        %v682 = vunpack.c.h.b16 %v437
        %v683 = vunpack.c.l.b16 %v438
        %v684 = vunpack.c.h.b16 %v438
        %v685 = vunpack.c.l.b16 %v439
        %v686 = vunpack.c.l.b16 %v440
        %v687 = vunpack.c.h.b16 %v440
        %v688 = vunpack.c.l.b16 %v441
        %v689 = vunpack.c.h.b16 %v441
        %v690 = vunpack.c.l.b16 %v442
        %v691 = vunpack.c.h.b16 %v442
        %v692 = vunpack.c.l.b16 %v443
        %v693 = vunpack.c.l.b16 %v444
        %v694 = vunpack.c.h.b16 %v444
        %v695 = vunpack.c.l.b16 %v445
        %v696 = vunpack.c.h.b16 %v445
        %v697 = vunpack.c.l.b16 %v446
        %v698 = vunpack.c.h.b16 %v446
        %v699 = vunpack.c.l.b16 %v447
        %v700 = vunpack.c.l.b16 %v448
        %v701 = vunpack.c.h.b16 %v448
        %v702 = vunpack.c.l.b16 %v449
        %v703 = vunpack.c.h.b16 %v449
        %v704 = vunpack.c.l.b16 %v450
        %v705 = vunpack.c.h.b16 %v450
        %v706 = vunpack.c.l.b16 %v451
        %v707 = vunpack.c.l.b16 %v452
        %v708 = vunpack.c.h.b16 %v452
        %v709 = vunpack.c.l.b16 %v453
        %v710 = vunpack.c.h.b16 %v453
        %v711 = vunpack.c.l.b16 %v454
        %v712 = vunpack.c.h.b16 %v454
        %v713 = vunpack.c.l.b16 %v455
        %v714 = vunpack.c.l.b16 %v456
        %v715 = vunpack.c.h.b16 %v456
        %v716 = vunpack.c.l.b16 %v457
        %v717 = vunpack.c.h.b16 %v457
        %v718 = vunpack.c.l.b16 %v458
        %v719 = vunpack.c.h.b16 %v458
        %v720 = vunpack.c.l.b16 %v459
        %v721 = vunpack.c.l.b16 %v460
        %v722 = vunpack.c.h.b16 %v460
        %v723 = vunpack.c.l.b16 %v461
        %v724 = vunpack.c.h.b16 %v461
        %v725 = vunpack.c.l.b16 %v462
        %v726 = vunpack.c.h.b16 %v462
        %v727 = vunpack.c.l.b16 %v463
        %v728 = vunpack.c.l.b16 %v464
        %v729 = vunpack.c.h.b16 %v464
        %v730 = vunpack.c.l.b16 %v465
        %v731 = vunpack.c.h.b16 %v465
        %v732 = vunpack.c.l.b16 %v466
        %v733 = vunpack.c.h.b16 %v466
        %v734 = vunpack.c.l.b16 %v467
        %v735 = vunpack.c.l.b16 %v468
        %v736 = vunpack.c.h.b16 %v468
        %v737 = vunpack.c.l.b16 %v469
        %v738 = vunpack.c.h.b16 %v469
        %v739 = vunpack.c.l.b16 %v470
        %v740 = vunpack.c.h.b16 %v470
        %v741 = vunpack.c.l.b16 %v471
        %v742 = vunpack.c.l.b16 %v472
        %v743 = vunpack.c.h.b16 %v472
        %v744 = vunpack.c.l.b16 %v473
        %v745 = vunpack.c.h.b16 %v473
        %v746 = vunpack.c.l.b16 %v474
        %v747 = vunpack.c.h.b16 %v474
        %v748 = vunpack.c.l.b16 %v475
        %v749 = vunpack.c.l.b16 %v476
        %v750 = vunpack.c.h.b16 %v476
        %v751 = vunpack.c.l.b16 %v477
        %v752 = vunpack.c.h.b16 %v477
        %v753 = vunpack.c.l.b16 %v478
        %v754 = vunpack.c.h.b16 %v478
        %v755 = vunpack.c.l.b16 %v479
        %v756 = vunpack.c.l.b16 %v480
        %v757 = vunpack.c.h.b16 %v480
        %v758 = vunpack.c.l.b16 %v481
        %v759 = vunpack.c.h.b16 %v481
        %v760 = vunpack.c.l.b16 %v482
        %v761 = vunpack.c.h.b16 %v482
        %v762 = vunpack.c.l.b16 %v483
        %v763 = vunpack.c.l.b16 %v484
        %v764 = vunpack.c.h.b16 %v484
        %v765 = vunpack.c.l.b16 %v485
        %v766 = vunpack.c.h.b16 %v485
        %v767 = vunpack.c.l.b16 %v486
        %v768 = vunpack.c.h.b16 %v486
        %v769 = vunpack.c.l.b16 %v487
        %v770 = vunpack.c.l.b16 %v488
        %v771 = vunpack.c.h.b16 %v488
        %v772 = vunpack.c.l.b16 %v489
        %v773 = vunpack.c.h.b16 %v489
        %v774 = vunpack.c.l.b16 %v490
        %v775 = vunpack.c.h.b16 %v490
        %v776 = vunpack.c.l.b16 %v491
        %v777 = vunpack.c.l.b16 %v492
        %v778 = vunpack.c.h.b16 %v492
        %v779 = vunpack.c.l.b16 %v493
        %v780 = vunpack.c.h.b16 %v493
        %v781 = vunpack.c.l.b16 %v494
        %v782 = vunpack.c.h.b16 %v494
        %v783 = vunpack.c.l.b16 %v495
        %v784 = vpack.c.b16 %v679, %v672
        %v785 = vpack.c.b16 %v680, %v673
        %v786 = vpack.c.b16 %v681, %v674
        %v787 = vpack.c.b16 %v682, %v675
        %v788 = vpack.c.b16 %v683, %v676
        %v789 = vpack.c.b16 %v684, %v677
        %v790 = vpack.c.b16 %v685, %v678
        %v791 = vpack.c.b16 %v693, %v686
        %v792 = vpack.c.b16 %v694, %v687
        %v793 = vpack.c.b16 %v695, %v688
        %v794 = vpack.c.b16 %v696, %v689
        %v795 = vpack.c.b16 %v697, %v690
        %v796 = vpack.c.b16 %v698, %v691
        %v797 = vpack.c.b16 %v699, %v692
        %v798 = vpack.c.b16 %v707, %v700
        %v799 = vpack.c.b16 %v708, %v701
        %v800 = vpack.c.b16 %v709, %v702
        %v801 = vpack.c.b16 %v710, %v703
        %v802 = vpack.c.b16 %v711, %v704
        %v803 = vpack.c.b16 %v712, %v705
        %v804 = vpack.c.b16 %v713, %v706
        %v805 = vpack.c.b16 %v721, %v714
        %v806 = vpack.c.b16 %v722, %v715
        %v807 = vpack.c.b16 %v723, %v716
        %v808 = vpack.c.b16 %v724, %v717
        %v809 = vpack.c.b16 %v725, %v718
        %v810 = vpack.c.b16 %v726, %v719
        %v811 = vpack.c.b16 %v727, %v720
        %v812 = vpack.c.b16 %v735, %v728
        %v813 = vpack.c.b16 %v736, %v729
        %v814 = vpack.c.b16 %v737, %v730
        %v815 = vpack.c.b16 %v738, %v731
        %v816 = vpack.c.b16 %v739, %v732
        %v817 = vpack.c.b16 %v740, %v733
        %v818 = vpack.c.b16 %v741, %v734
        %v819 = vpack.c.b16 %v749, %v742
        %v820 = vpack.c.b16 %v750, %v743
        %v821 = vpack.c.b16 %v751, %v744
        %v822 = vpack.c.b16 %v752, %v745
        %v823 = vpack.c.b16 %v753, %v746
        %v824 = vpack.c.b16 %v754, %v747
        %v825 = vpack.c.b16 %v755, %v748
        %v826 = vpack.c.b16 %v763, %v756
        %v827 = vpack.c.b16 %v764, %v757
        %v828 = vpack.c.b16 %v765, %v758
        %v829 = vpack.c.b16 %v766, %v759
        %v830 = vpack.c.b16 %v767, %v760
        %v831 = vpack.c.b16 %v768, %v761
        %v832 = vpack.c.b16 %v769, %v762
        %v833 = vpack.c.b16 %v777, %v770
        %v834 = vpack.c.b16 %v778, %v771
        %v835 = vpack.c.b16 %v779, %v772
        %v836 = vpack.c.b16 %v780, %v773
        %v837 = vpack.c.b16 %v781, %v774
        %v838 = vpack.c.b16 %v782, %v775
        %v839 = vpack.c.b16 %v783, %v776
        %v1008 = vunpack.c.l.b16 %v496
        %v1009 = vunpack.c.h.b16 %v496
        %v1010 = vunpack.c.l.b16 %v497
        %v1011 = vunpack.c.h.b16 %v497
        %v1012 = vunpack.c.l.b16 %v498
        %v1013 = vunpack.c.h.b16 %v498
        %v1014 = vunpack.c.l.b16 %v499
        %v1015 = vunpack.c.h.b16 %v499
        %v1016 = vunpack.c.l.b16 %v500
        %v1017 = vunpack.c.h.b16 %v500
        %v1018 = vunpack.c.l.b16 %v501
        %v1019 = vunpack.c.h.b16 %v501
        %v1020 = vunpack.c.l.b16 %v502
        %v1021 = vunpack.c.h.b16 %v502
        %v1022 = vunpack.c.l.b16 %v503
        %v1023 = vunpack.c.h.b16 %v503
        %v1024 = vunpack.c.l.b16 %v504
        %v1025 = vunpack.c.h.b16 %v504
        %v1026 = vunpack.c.l.b16 %v505
        %v1027 = vunpack.c.h.b16 %v505
        %v1028 = vunpack.c.l.b16 %v506
        %v1029 = vunpack.c.h.b16 %v506
        %v1030 = vunpack.c.l.b16 %v507
        %v1031 = vunpack.c.h.b16 %v507
        %v1032 = vunpack.c.l.b16 %v508
        %v1033 = vunpack.c.h.b16 %v508
        %v1034 = vunpack.c.l.b16 %v509
        %v1035 = vunpack.c.h.b16 %v509
        %v1036 = vunpack.c.l.b16 %v510
        %v1037 = vunpack.c.h.b16 %v510
        %v1038 = vunpack.c.l.b16 %v511
        %v1039 = vunpack.c.h.b16 %v511
        %v1040 = vunpack.c.l.b16 %v512
        %v1041 = vunpack.c.h.b16 %v512
        %v1042 = vunpack.c.l.b16 %v513
        %v1043 = vunpack.c.h.b16 %v513
        %v1044 = vunpack.c.l.b16 %v514
        %v1045 = vunpack.c.h.b16 %v514
        %v1046 = vunpack.c.l.b16 %v515
        %v1047 = vunpack.c.h.b16 %v515
        %v1048 = vunpack.c.l.b16 %v516
        %v1049 = vunpack.c.h.b16 %v516
        %v1050 = vunpack.c.l.b16 %v517
        %v1051 = vunpack.c.h.b16 %v517
        %v1052 = vunpack.c.l.b16 %v518
        %v1053 = vunpack.c.h.b16 %v518
        %v1054 = vunpack.c.l.b16 %v519
        %v1055 = vunpack.c.h.b16 %v519
        %v1056 = vunpack.c.l.b16 %v520
        %v1057 = vunpack.c.h.b16 %v520
        %v1058 = vunpack.c.l.b16 %v521
        %v1059 = vunpack.c.h.b16 %v521
        %v1060 = vunpack.c.l.b16 %v522
        %v1061 = vunpack.c.h.b16 %v522
        %v1062 = vunpack.c.l.b16 %v523
        %v1063 = vunpack.c.h.b16 %v523
        %v1064 = vunpack.c.l.b16 %v524
        %v1065 = vunpack.c.h.b16 %v524
        %v1066 = vunpack.c.l.b16 %v525
        %v1067 = vunpack.c.h.b16 %v525
        %v1068 = vunpack.c.l.b16 %v526
        %v1069 = vunpack.c.h.b16 %v526
        %v1070 = vunpack.c.l.b16 %v527
        %v1071 = vunpack.c.h.b16 %v527
        %v1072 = vunpack.c.l.b16 %v528
        %v1073 = vunpack.c.h.b16 %v528
        %v1074 = vunpack.c.l.b16 %v529
        %v1075 = vunpack.c.h.b16 %v529
        %v1076 = vunpack.c.l.b16 %v530
        %v1077 = vunpack.c.h.b16 %v530
        %v1078 = vunpack.c.l.b16 %v531
        %v1079 = vunpack.c.h.b16 %v531
        %v1080 = vunpack.c.l.b16 %v532
        %v1081 = vunpack.c.h.b16 %v532
        %v1082 = vunpack.c.l.b16 %v533
        %v1083 = vunpack.c.h.b16 %v533
        %v1084 = vunpack.c.l.b16 %v534
        %v1085 = vunpack.c.h.b16 %v534
        %v1086 = vunpack.c.l.b16 %v535
        %v1087 = vunpack.c.h.b16 %v535
        %v1088 = vunpack.c.l.b16 %v536
        %v1089 = vunpack.c.h.b16 %v536
        %v1090 = vunpack.c.l.b16 %v537
        %v1091 = vunpack.c.h.b16 %v537
        %v1092 = vunpack.c.l.b16 %v538
        %v1093 = vunpack.c.h.b16 %v538
        %v1094 = vunpack.c.l.b16 %v539
        %v1095 = vunpack.c.h.b16 %v539
        %v1096 = vunpack.c.l.b16 %v540
        %v1097 = vunpack.c.h.b16 %v540
        %v1098 = vunpack.c.l.b16 %v541
        %v1099 = vunpack.c.h.b16 %v541
        %v1100 = vunpack.c.l.b16 %v542
        %v1101 = vunpack.c.h.b16 %v542
        %v1102 = vunpack.c.l.b16 %v543
        %v1103 = vunpack.c.h.b16 %v543
        %v1104 = vunpack.c.l.b16 %v544
        %v1105 = vunpack.c.h.b16 %v544
        %v1106 = vunpack.c.l.b16 %v545
        %v1107 = vunpack.c.h.b16 %v545
        %v1108 = vunpack.c.l.b16 %v546
        %v1109 = vunpack.c.h.b16 %v546
        %v1110 = vunpack.c.l.b16 %v547
        %v1111 = vunpack.c.h.b16 %v547
        %v1112 = vunpack.c.l.b16 %v548
        %v1113 = vunpack.c.h.b16 %v548
        %v1114 = vunpack.c.l.b16 %v549
        %v1115 = vunpack.c.h.b16 %v549
        %v1116 = vunpack.c.l.b16 %v550
        %v1117 = vunpack.c.h.b16 %v550
        %v1118 = vunpack.c.l.b16 %v551
        %v1119 = vunpack.c.h.b16 %v551
        %v1120 = vunpack.c.l.b16 %v552
        %v1121 = vunpack.c.h.b16 %v552
        %v1122 = vunpack.c.l.b16 %v553
        %v1123 = vunpack.c.h.b16 %v553
        %v1124 = vunpack.c.l.b16 %v554
        %v1125 = vunpack.c.h.b16 %v554
        %v1126 = vunpack.c.l.b16 %v555
        %v1127 = vunpack.c.h.b16 %v555
        %v1128 = vunpack.c.l.b16 %v556
        %v1129 = vunpack.c.h.b16 %v556
        %v1130 = vunpack.c.l.b16 %v557
        %v1131 = vunpack.c.h.b16 %v557
        %v1132 = vunpack.c.l.b16 %v558
        %v1133 = vunpack.c.h.b16 %v558
        %v1134 = vunpack.c.l.b16 %v559
        %v1135 = vunpack.c.h.b16 %v559
        %v1136 = vunpack.c.l.b16 %v560
        %v1137 = vunpack.c.h.b16 %v560
        %v1138 = vunpack.c.l.b16 %v561
        %v1139 = vunpack.c.h.b16 %v561
        %v1140 = vunpack.c.l.b16 %v562
        %v1141 = vunpack.c.h.b16 %v562
        %v1142 = vunpack.c.l.b16 %v563
        %v1143 = vunpack.c.h.b16 %v563
        %v1144 = vunpack.c.l.b16 %v564
        %v1145 = vunpack.c.h.b16 %v564
        %v1146 = vunpack.c.l.b16 %v565
        %v1147 = vunpack.c.h.b16 %v565
        %v1148 = vunpack.c.l.b16 %v566
        %v1149 = vunpack.c.h.b16 %v566
        %v1150 = vunpack.c.l.b16 %v567
        %v1151 = vunpack.c.h.b16 %v567
        %v1152 = vunpack.c.l.b16 %v568
        %v1153 = vunpack.c.h.b16 %v568
        %v1154 = vunpack.c.l.b16 %v569
        %v1155 = vunpack.c.h.b16 %v569
        %v1156 = vunpack.c.l.b16 %v570
        %v1157 = vunpack.c.h.b16 %v570
        %v1158 = vunpack.c.l.b16 %v571
        %v1159 = vunpack.c.h.b16 %v571
        %v1160 = vunpack.c.l.b16 %v572
        %v1161 = vunpack.c.h.b16 %v572
        %v1162 = vunpack.c.l.b16 %v573
        %v1163 = vunpack.c.h.b16 %v573
        %v1164 = vunpack.c.l.b16 %v574
        %v1165 = vunpack.c.h.b16 %v574
        %v1166 = vunpack.c.l.b16 %v575
        %v1167 = vunpack.c.h.b16 %v575
        %v1168 = vunpack.c.l.b16 %v576
        %v1169 = vunpack.c.h.b16 %v576
        %v1170 = vunpack.c.l.b16 %v577
        %v1171 = vunpack.c.h.b16 %v577
        %v1172 = vunpack.c.l.b16 %v578
        %v1173 = vunpack.c.h.b16 %v578
        %v1174 = vunpack.c.l.b16 %v579
        %v1175 = vunpack.c.h.b16 %v579
        %v1176 = vunpack.c.l.b16 %v580
        %v1177 = vunpack.c.h.b16 %v580
        %v1178 = vunpack.c.l.b16 %v581
        %v1179 = vunpack.c.h.b16 %v581
        %v1180 = vunpack.c.l.b16 %v582
        %v1181 = vunpack.c.h.b16 %v582
        %v1182 = vunpack.c.l.b16 %v583
        %v1183 = vunpack.c.h.b16 %v583
        %v1184 = vunpack.c.l.b16 %v584
        %v1185 = vunpack.c.h.b16 %v584
        %v1186 = vunpack.c.l.b16 %v585
        %v1187 = vunpack.c.h.b16 %v585
        %v1188 = vunpack.c.l.b16 %v586
        %v1189 = vunpack.c.h.b16 %v586
        %v1190 = vunpack.c.l.b16 %v587
        %v1191 = vunpack.c.h.b16 %v587
        %v1192 = vunpack.c.l.b16 %v588
        %v1193 = vunpack.c.h.b16 %v588
        %v1194 = vunpack.c.l.b16 %v589
        %v1195 = vunpack.c.h.b16 %v589
        %v1196 = vunpack.c.l.b16 %v590
        %v1197 = vunpack.c.h.b16 %v590
        %v1198 = vunpack.c.l.b16 %v591
        %v1199 = vunpack.c.h.b16 %v591
        %v1200 = vunpack.c.l.b16 %v592
        %v1201 = vunpack.c.h.b16 %v592
        %v1202 = vunpack.c.l.b16 %v593
        %v1203 = vunpack.c.h.b16 %v593
        %v1204 = vunpack.c.l.b16 %v594
        %v1205 = vunpack.c.h.b16 %v594
        %v1206 = vunpack.c.l.b16 %v595
        %v1207 = vunpack.c.h.b16 %v595
        %v1208 = vunpack.c.l.b16 %v596
        %v1209 = vunpack.c.h.b16 %v596
        %v1210 = vunpack.c.l.b16 %v597
        %v1211 = vunpack.c.h.b16 %v597
        %v1212 = vunpack.c.l.b16 %v598
        %v1213 = vunpack.c.h.b16 %v598
        %v1214 = vunpack.c.l.b16 %v599
        %v1215 = vunpack.c.h.b16 %v599
        %v1216 = vunpack.c.l.b16 %v600
        %v1217 = vunpack.c.h.b16 %v600
        %v1218 = vunpack.c.l.b16 %v601
        %v1219 = vunpack.c.h.b16 %v601
        %v1220 = vunpack.c.l.b16 %v602
        %v1221 = vunpack.c.h.b16 %v602
        %v1222 = vunpack.c.l.b16 %v603
        %v1223 = vunpack.c.h.b16 %v603
        %v1224 = vunpack.c.l.b16 %v604
        %v1225 = vunpack.c.h.b16 %v604
        %v1226 = vunpack.c.l.b16 %v605
        %v1227 = vunpack.c.h.b16 %v605
        %v1228 = vunpack.c.l.b16 %v606
        %v1229 = vunpack.c.h.b16 %v606
        %v1230 = vunpack.c.l.b16 %v607
        %v1231 = vunpack.c.h.b16 %v607
        %v1232 = vpack.c.b16 %v1010, %v1008
        %v1233 = vpack.c.b16 %v1011, %v1009
        %v1234 = vpack.c.b16 %v1014, %v1012
        %v1235 = vpack.c.b16 %v1015, %v1013
        %v1236 = vpack.c.b16 %v1018, %v1016
        %v1237 = vpack.c.b16 %v1019, %v1017
        %v1238 = vpack.c.b16 %v1022, %v1020
        %v1239 = vpack.c.b16 %v1023, %v1021
        %v1240 = vpack.c.b16 %v1026, %v1024
        %v1241 = vpack.c.b16 %v1027, %v1025
        %v1242 = vpack.c.b16 %v1030, %v1028
        %v1243 = vpack.c.b16 %v1031, %v1029
        %v1244 = vpack.c.b16 %v1034, %v1032
        %v1245 = vpack.c.b16 %v1035, %v1033
        %v1246 = vpack.c.b16 %v1038, %v1036
        %v1247 = vpack.c.b16 %v1039, %v1037
        %v1248 = vpack.c.b16 %v1042, %v1040
        %v1249 = vpack.c.b16 %v1043, %v1041
        %v1250 = vpack.c.b16 %v1046, %v1044
        %v1251 = vpack.c.b16 %v1047, %v1045
        %v1252 = vpack.c.b16 %v1050, %v1048
        %v1253 = vpack.c.b16 %v1051, %v1049
        %v1254 = vpack.c.b16 %v1054, %v1052
        %v1255 = vpack.c.b16 %v1055, %v1053
        %v1256 = vpack.c.b16 %v1058, %v1056
        %v1257 = vpack.c.b16 %v1059, %v1057
        %v1258 = vpack.c.b16 %v1062, %v1060
        %v1259 = vpack.c.b16 %v1063, %v1061
        %v1260 = vpack.c.b16 %v1066, %v1064
        %v1261 = vpack.c.b16 %v1067, %v1065
        %v1262 = vpack.c.b16 %v1070, %v1068
        %v1263 = vpack.c.b16 %v1071, %v1069
        %v1264 = vpack.c.b16 %v1074, %v1072
        %v1265 = vpack.c.b16 %v1075, %v1073
        %v1266 = vpack.c.b16 %v1078, %v1076
        %v1267 = vpack.c.b16 %v1079, %v1077
        %v1268 = vpack.c.b16 %v1082, %v1080
        %v1269 = vpack.c.b16 %v1083, %v1081
        %v1270 = vpack.c.b16 %v1086, %v1084
        %v1271 = vpack.c.b16 %v1087, %v1085
        %v1272 = vpack.c.b16 %v1090, %v1088
        %v1273 = vpack.c.b16 %v1091, %v1089
        %v1274 = vpack.c.b16 %v1094, %v1092
        %v1275 = vpack.c.b16 %v1095, %v1093
        %v1276 = vpack.c.b16 %v1098, %v1096
        %v1277 = vpack.c.b16 %v1099, %v1097
        %v1278 = vpack.c.b16 %v1102, %v1100
        %v1279 = vpack.c.b16 %v1103, %v1101
        %v1280 = vpack.c.b16 %v1106, %v1104
        %v1281 = vpack.c.b16 %v1107, %v1105
        %v1282 = vpack.c.b16 %v1110, %v1108
        %v1283 = vpack.c.b16 %v1111, %v1109
        %v1284 = vpack.c.b16 %v1114, %v1112
        %v1285 = vpack.c.b16 %v1115, %v1113
        %v1286 = vpack.c.b16 %v1118, %v1116
        %v1287 = vpack.c.b16 %v1119, %v1117
        %v1288 = vpack.c.b16 %v1122, %v1120
        %v1289 = vpack.c.b16 %v1123, %v1121
        %v1290 = vpack.c.b16 %v1126, %v1124
        %v1291 = vpack.c.b16 %v1127, %v1125
        %v1292 = vpack.c.b16 %v1130, %v1128
        %v1293 = vpack.c.b16 %v1131, %v1129
        %v1294 = vpack.c.b16 %v1134, %v1132
        %v1295 = vpack.c.b16 %v1135, %v1133
        %v1296 = vpack.c.b16 %v1138, %v1136
        %v1297 = vpack.c.b16 %v1139, %v1137
        %v1298 = vpack.c.b16 %v1142, %v1140
        %v1299 = vpack.c.b16 %v1143, %v1141
        %v1300 = vpack.c.b16 %v1146, %v1144
        %v1301 = vpack.c.b16 %v1147, %v1145
        %v1302 = vpack.c.b16 %v1150, %v1148
        %v1303 = vpack.c.b16 %v1151, %v1149
        %v1304 = vpack.c.b16 %v1154, %v1152
        %v1305 = vpack.c.b16 %v1155, %v1153
        %v1306 = vpack.c.b16 %v1158, %v1156
        %v1307 = vpack.c.b16 %v1159, %v1157
        %v1308 = vpack.c.b16 %v1162, %v1160
        %v1309 = vpack.c.b16 %v1163, %v1161
        %v1310 = vpack.c.b16 %v1166, %v1164
        %v1311 = vpack.c.b16 %v1167, %v1165
        %v1312 = vpack.c.b16 %v1170, %v1168
        %v1313 = vpack.c.b16 %v1171, %v1169
        %v1314 = vpack.c.b16 %v1174, %v1172
        %v1315 = vpack.c.b16 %v1175, %v1173
        %v1316 = vpack.c.b16 %v1178, %v1176
        %v1317 = vpack.c.b16 %v1179, %v1177
        %v1318 = vpack.c.b16 %v1182, %v1180
        %v1319 = vpack.c.b16 %v1183, %v1181
        %v1320 = vpack.c.b16 %v1186, %v1184
        %v1321 = vpack.c.b16 %v1187, %v1185
        %v1322 = vpack.c.b16 %v1190, %v1188
        %v1323 = vpack.c.b16 %v1191, %v1189
        %v1324 = vpack.c.b16 %v1194, %v1192
        %v1325 = vpack.c.b16 %v1195, %v1193
        %v1326 = vpack.c.b16 %v1198, %v1196
        %v1327 = vpack.c.b16 %v1199, %v1197
        %v1328 = vpack.c.b16 %v1202, %v1200
        %v1329 = vpack.c.b16 %v1203, %v1201
        %v1330 = vpack.c.b16 %v1206, %v1204
        %v1331 = vpack.c.b16 %v1207, %v1205
        %v1332 = vpack.c.b16 %v1210, %v1208
        %v1333 = vpack.c.b16 %v1211, %v1209
        %v1334 = vpack.c.b16 %v1214, %v1212
        %v1335 = vpack.c.b16 %v1215, %v1213
        %v1336 = vpack.c.b16 %v1218, %v1216
        %v1337 = vpack.c.b16 %v1219, %v1217
        %v1338 = vpack.c.b16 %v1222, %v1220
        %v1339 = vpack.c.b16 %v1223, %v1221
        %v1340 = vpack.c.b16 %v1226, %v1224
        %v1341 = vpack.c.b16 %v1227, %v1225
        %v1342 = vpack.c.b16 %v1230, %v1228
        %v1343 = vpack.c.b16 %v1231, %v1229
        %1456 = vmatpush.bf16.msra.mxu0 %v1246
        %1457 = vmatpush.bf16.msra.mxu0 %v1244
        %1458 = vmatpush.bf16.msra.mxu0 %v1242
        %1459 = vmatpush.bf16.msra.mxu0 %v1240
        %1460 = vmatpush.bf16.msra.mxu0 %v1238
        %1461 = vmatpush.bf16.msra.mxu0 %v1236
        %1462 = vmatpush.bf16.msra.mxu0 %v1234
        %1463 = vmatpush.bf16.msra.mxu0 %v1232
        %1464 = vmatmul.bf16.gmra.mxu0 %v784
        %v1465 = vpop.f32.mrf.mxu0
        %v1466 = vadd.f32 0.0, %v1465
        %v1467 = vpop.f32.mrf.mxu0
        %v1468 = vadd.f32 0.0, %v1467
        %1469 = vmatmul.bf16.gmra.mxu0 %v791
        %v1470 = vpop.f32.mrf.mxu0
        %v1471 = vadd.f32 0.0, %v1470
        %v1472 = vpop.f32.mrf.mxu0
        %v1473 = vadd.f32 0.0, %v1472
        %1474 = vmatmul.bf16.gmra.mxu0 %v798
        %v1475 = vpop.f32.mrf.mxu0
        %v1476 = vadd.f32 0.0, %v1475
        %v1477 = vpop.f32.mrf.mxu0
        %v1478 = vadd.f32 0.0, %v1477
        %1479 = vmatmul.bf16.gmra.mxu0 %v805
        %v1480 = vpop.f32.mrf.mxu0
        %v1481 = vadd.f32 0.0, %v1480
        %v1482 = vpop.f32.mrf.mxu0
        %v1483 = vadd.f32 0.0, %v1482
        %1484 = vmatmul.bf16.gmra.mxu0 %v812
        %v1485 = vpop.f32.mrf.mxu0
        %v1486 = vadd.f32 0.0, %v1485
        %v1487 = vpop.f32.mrf.mxu0
        %v1488 = vadd.f32 0.0, %v1487
        %1489 = vmatmul.bf16.gmra.mxu0 %v819
        %v1490 = vpop.f32.mrf.mxu0
        %v1491 = vadd.f32 0.0, %v1490
        %v1492 = vpop.f32.mrf.mxu0
        %v1493 = vadd.f32 0.0, %v1492
        %1494 = vmatmul.bf16.gmra.mxu0 %v826
        %v1495 = vpop.f32.mrf.mxu0
        %v1496 = vadd.f32 0.0, %v1495
        %v1497 = vpop.f32.mrf.mxu0
        %v1498 = vadd.f32 0.0, %v1497
        %1499 = vmatmul.bf16.gmra.mxu0 %v833
        %v1500 = vpop.f32.mrf.mxu0
        %v1501 = vadd.f32 0.0, %v1500
        %v1502 = vpop.f32.mrf.mxu0
        %v1503 = vadd.f32 0.0, %v1502
        %1504 = vdwg.mxu0
        %1505 = vmatpush.bf16.msra.mxu0 %v1262
        %1506 = vmatpush.bf16.msra.mxu0 %v1260
        %1507 = vmatpush.bf16.msra.mxu0 %v1258
        %1508 = vmatpush.bf16.msra.mxu0 %v1256
        %1509 = vmatpush.bf16.msra.mxu0 %v1254
        %1510 = vmatpush.bf16.msra.mxu0 %v1252
        %1511 = vmatpush.bf16.msra.mxu0 %v1250
        %1512 = vmatpush.bf16.msra.mxu0 %v1248
        %1513 = vmatmul.bf16.gmra.mxu0 %v785
        %v1514 = vpop.f32.mrf.mxu0
        %v1515 = vadd.f32 %v1466, %v1514
        %v1516 = vpop.f32.mrf.mxu0
        %v1517 = vadd.f32 %v1468, %v1516
        %1518 = vmatmul.bf16.gmra.mxu0 %v792
        %v1519 = vpop.f32.mrf.mxu0
        %v1520 = vadd.f32 %v1471, %v1519
        %v1521 = vpop.f32.mrf.mxu0
        %v1522 = vadd.f32 %v1473, %v1521
        %1523 = vmatmul.bf16.gmra.mxu0 %v799
        %v1524 = vpop.f32.mrf.mxu0
        %v1525 = vadd.f32 %v1476, %v1524
        %v1526 = vpop.f32.mrf.mxu0
        %v1527 = vadd.f32 %v1478, %v1526
        %1528 = vmatmul.bf16.gmra.mxu0 %v806
        %v1529 = vpop.f32.mrf.mxu0
        %v1530 = vadd.f32 %v1481, %v1529
        %v1531 = vpop.f32.mrf.mxu0
        %v1532 = vadd.f32 %v1483, %v1531
        %1533 = vmatmul.bf16.gmra.mxu0 %v813
        %v1534 = vpop.f32.mrf.mxu0
        %v1535 = vadd.f32 %v1486, %v1534
        %v1536 = vpop.f32.mrf.mxu0
        %v1537 = vadd.f32 %v1488, %v1536
        %1538 = vmatmul.bf16.gmra.mxu0 %v820
        %v1539 = vpop.f32.mrf.mxu0
        %v1540 = vadd.f32 %v1491, %v1539
        %v1541 = vpop.f32.mrf.mxu0
        %v1542 = vadd.f32 %v1493, %v1541
        %1543 = vmatmul.bf16.gmra.mxu0 %v827
        %v1544 = vpop.f32.mrf.mxu0
        %v1545 = vadd.f32 %v1496, %v1544
        %v1546 = vpop.f32.mrf.mxu0
        %v1547 = vadd.f32 %v1498, %v1546
        %1548 = vmatmul.bf16.gmra.mxu0 %v834
        %v1549 = vpop.f32.mrf.mxu0
        %v1550 = vadd.f32 %v1501, %v1549
        %v1551 = vpop.f32.mrf.mxu0
        %v1552 = vadd.f32 %v1503, %v1551
        %1553 = vdwg.mxu0
        %1554 = vmatpush.bf16.msra.mxu0 %v1278
        %1555 = vmatpush.bf16.msra.mxu0 %v1276
        %1556 = vmatpush.bf16.msra.mxu0 %v1274
        %1557 = vmatpush.bf16.msra.mxu0 %v1272
        %1558 = vmatpush.bf16.msra.mxu0 %v1270
        %1559 = vmatpush.bf16.msra.mxu0 %v1268
        %1560 = vmatpush.bf16.msra.mxu0 %v1266
        %1561 = vmatpush.bf16.msra.mxu0 %v1264
        %1562 = vmatmul.bf16.gmra.mxu0 %v786
        %v1563 = vpop.f32.mrf.mxu0
        %v1564 = vadd.f32 %v1515, %v1563
        %v1565 = vpop.f32.mrf.mxu0
        %v1566 = vadd.f32 %v1517, %v1565
        %1567 = vmatmul.bf16.gmra.mxu0 %v793
        %v1568 = vpop.f32.mrf.mxu0
        %v1569 = vadd.f32 %v1520, %v1568
        %v1570 = vpop.f32.mrf.mxu0
        %v1571 = vadd.f32 %v1522, %v1570
        %1572 = vmatmul.bf16.gmra.mxu0 %v800
        %v1573 = vpop.f32.mrf.mxu0
        %v1574 = vadd.f32 %v1525, %v1573
        %v1575 = vpop.f32.mrf.mxu0
        %v1576 = vadd.f32 %v1527, %v1575
        %1577 = vmatmul.bf16.gmra.mxu0 %v807
        %v1578 = vpop.f32.mrf.mxu0
        %v1579 = vadd.f32 %v1530, %v1578
        %v1580 = vpop.f32.mrf.mxu0
        %v1581 = vadd.f32 %v1532, %v1580
        %1582 = vmatmul.bf16.gmra.mxu0 %v814
        %v1583 = vpop.f32.mrf.mxu0
        %v1584 = vadd.f32 %v1535, %v1583
        %v1585 = vpop.f32.mrf.mxu0
        %v1586 = vadd.f32 %v1537, %v1585
        %1587 = vmatmul.bf16.gmra.mxu0 %v821
        %v1588 = vpop.f32.mrf.mxu0
        %v1589 = vadd.f32 %v1540, %v1588
        %v1590 = vpop.f32.mrf.mxu0
        %v1591 = vadd.f32 %v1542, %v1590
        %1592 = vmatmul.bf16.gmra.mxu0 %v828
        %v1593 = vpop.f32.mrf.mxu0
        %v1594 = vadd.f32 %v1545, %v1593
        %v1595 = vpop.f32.mrf.mxu0
        %v1596 = vadd.f32 %v1547, %v1595
        %1597 = vmatmul.bf16.gmra.mxu0 %v835
        %v1598 = vpop.f32.mrf.mxu0
        %v1599 = vadd.f32 %v1550, %v1598
        %v1600 = vpop.f32.mrf.mxu0
        %v1601 = vadd.f32 %v1552, %v1600
        %1602 = vdwg.mxu0
        %1603 = vmatpush.bf16.msra.mxu0 %v1294
        %1604 = vmatpush.bf16.msra.mxu0 %v1292
        %1605 = vmatpush.bf16.msra.mxu0 %v1290
        %1606 = vmatpush.bf16.msra.mxu0 %v1288
        %1607 = vmatpush.bf16.msra.mxu0 %v1286
        %1608 = vmatpush.bf16.msra.mxu0 %v1284
        %1609 = vmatpush.bf16.msra.mxu0 %v1282
        %1610 = vmatpush.bf16.msra.mxu0 %v1280
        %1611 = vmatmul.bf16.gmra.mxu0 %v787
        %v1612 = vpop.f32.mrf.mxu0
        %v1613 = vadd.f32 %v1564, %v1612
        %v1614 = vpop.f32.mrf.mxu0
        %v1615 = vadd.f32 %v1566, %v1614
        %1616 = vmatmul.bf16.gmra.mxu0 %v794
        %v1617 = vpop.f32.mrf.mxu0
        %v1618 = vadd.f32 %v1569, %v1617
        %v1619 = vpop.f32.mrf.mxu0
        %v1620 = vadd.f32 %v1571, %v1619
        %1621 = vmatmul.bf16.gmra.mxu0 %v801
        %v1622 = vpop.f32.mrf.mxu0
        %v1623 = vadd.f32 %v1574, %v1622
        %v1624 = vpop.f32.mrf.mxu0
        %v1625 = vadd.f32 %v1576, %v1624
        %1626 = vmatmul.bf16.gmra.mxu0 %v808
        %v1627 = vpop.f32.mrf.mxu0
        %v1628 = vadd.f32 %v1579, %v1627
        %v1629 = vpop.f32.mrf.mxu0
        %v1630 = vadd.f32 %v1581, %v1629
        %1631 = vmatmul.bf16.gmra.mxu0 %v815
        %v1632 = vpop.f32.mrf.mxu0
        %v1633 = vadd.f32 %v1584, %v1632
        %v1634 = vpop.f32.mrf.mxu0
        %v1635 = vadd.f32 %v1586, %v1634
        %1636 = vmatmul.bf16.gmra.mxu0 %v822
        %v1637 = vpop.f32.mrf.mxu0
        %v1638 = vadd.f32 %v1589, %v1637
        %v1639 = vpop.f32.mrf.mxu0
        %v1640 = vadd.f32 %v1591, %v1639
        %1641 = vmatmul.bf16.gmra.mxu0 %v829
        %v1642 = vpop.f32.mrf.mxu0
        %v1643 = vadd.f32 %v1594, %v1642
        %v1644 = vpop.f32.mrf.mxu0
        %v1645 = vadd.f32 %v1596, %v1644
        %1646 = vmatmul.bf16.gmra.mxu0 %v836
        %v1647 = vpop.f32.mrf.mxu0
        %v1648 = vadd.f32 %v1599, %v1647
        %v1649 = vpop.f32.mrf.mxu0
        %v1650 = vadd.f32 %v1601, %v1649
        %1651 = vdwg.mxu0
        %1652 = vmatpush.bf16.msra.mxu0 %v1310
        %1653 = vmatpush.bf16.msra.mxu0 %v1308
        %1654 = vmatpush.bf16.msra.mxu0 %v1306
        %1655 = vmatpush.bf16.msra.mxu0 %v1304
        %1656 = vmatpush.bf16.msra.mxu0 %v1302
        %1657 = vmatpush.bf16.msra.mxu0 %v1300
        %1658 = vmatpush.bf16.msra.mxu0 %v1298
        %1659 = vmatpush.bf16.msra.mxu0 %v1296
        %1660 = vmatmul.bf16.gmra.mxu0 %v788
        %v1661 = vpop.f32.mrf.mxu0
        %v1662 = vadd.f32 %v1613, %v1661
        %v1663 = vpop.f32.mrf.mxu0
        %v1664 = vadd.f32 %v1615, %v1663
        %1665 = vmatmul.bf16.gmra.mxu0 %v795
        %v1666 = vpop.f32.mrf.mxu0
        %v1667 = vadd.f32 %v1618, %v1666
        %v1668 = vpop.f32.mrf.mxu0
        %v1669 = vadd.f32 %v1620, %v1668
        %1670 = vmatmul.bf16.gmra.mxu0 %v802
        %v1671 = vpop.f32.mrf.mxu0
        %v1672 = vadd.f32 %v1623, %v1671
        %v1673 = vpop.f32.mrf.mxu0
        %v1674 = vadd.f32 %v1625, %v1673
        %1675 = vmatmul.bf16.gmra.mxu0 %v809
        %v1676 = vpop.f32.mrf.mxu0
        %v1677 = vadd.f32 %v1628, %v1676
        %v1678 = vpop.f32.mrf.mxu0
        %v1679 = vadd.f32 %v1630, %v1678
        %1680 = vmatmul.bf16.gmra.mxu0 %v816
        %v1681 = vpop.f32.mrf.mxu0
        %v1682 = vadd.f32 %v1633, %v1681
        %v1683 = vpop.f32.mrf.mxu0
        %v1684 = vadd.f32 %v1635, %v1683
        %1685 = vmatmul.bf16.gmra.mxu0 %v823
        %v1686 = vpop.f32.mrf.mxu0
        %v1687 = vadd.f32 %v1638, %v1686
        %v1688 = vpop.f32.mrf.mxu0
        %v1689 = vadd.f32 %v1640, %v1688
        %1690 = vmatmul.bf16.gmra.mxu0 %v830
        %v1691 = vpop.f32.mrf.mxu0
        %v1692 = vadd.f32 %v1643, %v1691
        %v1693 = vpop.f32.mrf.mxu0
        %v1694 = vadd.f32 %v1645, %v1693
        %1695 = vmatmul.bf16.gmra.mxu0 %v837
        %v1696 = vpop.f32.mrf.mxu0
        %v1697 = vadd.f32 %v1648, %v1696
        %v1698 = vpop.f32.mrf.mxu0
        %v1699 = vadd.f32 %v1650, %v1698
        %1700 = vdwg.mxu0
        %1701 = vmatpush.bf16.msra.mxu0 %v1326
        %1702 = vmatpush.bf16.msra.mxu0 %v1324
        %1703 = vmatpush.bf16.msra.mxu0 %v1322
        %1704 = vmatpush.bf16.msra.mxu0 %v1320
        %1705 = vmatpush.bf16.msra.mxu0 %v1318
        %1706 = vmatpush.bf16.msra.mxu0 %v1316
        %1707 = vmatpush.bf16.msra.mxu0 %v1314
        %1708 = vmatpush.bf16.msra.mxu0 %v1312
        %1709 = vmatmul.bf16.gmra.mxu0 %v789
        %v1710 = vpop.f32.mrf.mxu0
        %v1711 = vadd.f32 %v1662, %v1710
        %v1712 = vpop.f32.mrf.mxu0
        %v1713 = vadd.f32 %v1664, %v1712
        %1714 = vmatmul.bf16.gmra.mxu0 %v796
        %v1715 = vpop.f32.mrf.mxu0
        %v1716 = vadd.f32 %v1667, %v1715
        %v1717 = vpop.f32.mrf.mxu0
        %v1718 = vadd.f32 %v1669, %v1717
        %1719 = vmatmul.bf16.gmra.mxu0 %v803
        %v1720 = vpop.f32.mrf.mxu0
        %v1721 = vadd.f32 %v1672, %v1720
        %v1722 = vpop.f32.mrf.mxu0
        %v1723 = vadd.f32 %v1674, %v1722
        %1724 = vmatmul.bf16.gmra.mxu0 %v810
        %v1725 = vpop.f32.mrf.mxu0
        %v1726 = vadd.f32 %v1677, %v1725
        %v1727 = vpop.f32.mrf.mxu0
        %v1728 = vadd.f32 %v1679, %v1727
        %1729 = vmatmul.bf16.gmra.mxu0 %v817
        %v1730 = vpop.f32.mrf.mxu0
        %v1731 = vadd.f32 %v1682, %v1730
        %v1732 = vpop.f32.mrf.mxu0
        %v1733 = vadd.f32 %v1684, %v1732
        %1734 = vmatmul.bf16.gmra.mxu0 %v824
        %v1735 = vpop.f32.mrf.mxu0
        %v1736 = vadd.f32 %v1687, %v1735
        %v1737 = vpop.f32.mrf.mxu0
        %v1738 = vadd.f32 %v1689, %v1737
        %1739 = vmatmul.bf16.gmra.mxu0 %v831
        %v1740 = vpop.f32.mrf.mxu0
        %v1741 = vadd.f32 %v1692, %v1740
        %v1742 = vpop.f32.mrf.mxu0
        %v1743 = vadd.f32 %v1694, %v1742
        %1744 = vmatmul.bf16.gmra.mxu0 %v838
        %v1745 = vpop.f32.mrf.mxu0
        %v1746 = vadd.f32 %v1697, %v1745
        %v1747 = vpop.f32.mrf.mxu0
        %v1748 = vadd.f32 %v1699, %v1747
        %1749 = vdwg.mxu0
        %1750 = vmatpush.bf16.msra.mxu0 %v1342
        %1751 = vmatpush.bf16.msra.mxu0 %v1340
        %1752 = vmatpush.bf16.msra.mxu0 %v1338
        %1753 = vmatpush.bf16.msra.mxu0 %v1336
        %1754 = vmatpush.bf16.msra.mxu0 %v1334
        %1755 = vmatpush.bf16.msra.mxu0 %v1332
        %1756 = vmatpush.bf16.msra.mxu0 %v1330
        %1757 = vmatpush.bf16.msra.mxu0 %v1328
        %1758 = vmatmul.bf16.gmra.mxu0 %v790
        %v1759 = vpop.f32.mrf.mxu0
        %v1760 = vadd.f32 %v1711, %v1759
        %v1761 = vpop.f32.mrf.mxu0
        %v1762 = vadd.f32 %v1713, %v1761
        %1763 = vmatmul.bf16.gmra.mxu0 %v797
        %v1764 = vpop.f32.mrf.mxu0
        %v1765 = vadd.f32 %v1716, %v1764
        %v1766 = vpop.f32.mrf.mxu0
        %v1767 = vadd.f32 %v1718, %v1766
        %1768 = vmatmul.bf16.gmra.mxu0 %v804
        %v1769 = vpop.f32.mrf.mxu0
        %v1770 = vadd.f32 %v1721, %v1769
        %v1771 = vpop.f32.mrf.mxu0
        %v1772 = vadd.f32 %v1723, %v1771
        %1773 = vmatmul.bf16.gmra.mxu0 %v811
        %v1774 = vpop.f32.mrf.mxu0
        %v1775 = vadd.f32 %v1726, %v1774
        %v1776 = vpop.f32.mrf.mxu0
        %v1777 = vadd.f32 %v1728, %v1776
        %1778 = vmatmul.bf16.gmra.mxu0 %v818
        %v1779 = vpop.f32.mrf.mxu0
        %v1780 = vadd.f32 %v1731, %v1779
        %v1781 = vpop.f32.mrf.mxu0
        %v1782 = vadd.f32 %v1733, %v1781
        %1783 = vmatmul.bf16.gmra.mxu0 %v825
        %v1784 = vpop.f32.mrf.mxu0
        %v1785 = vadd.f32 %v1736, %v1784
        %v1786 = vpop.f32.mrf.mxu0
        %v1787 = vadd.f32 %v1738, %v1786
        %1788 = vmatmul.bf16.gmra.mxu0 %v832
        %v1789 = vpop.f32.mrf.mxu0
        %v1790 = vadd.f32 %v1741, %v1789
        %v1791 = vpop.f32.mrf.mxu0
        %v1792 = vadd.f32 %v1743, %v1791
        %1793 = vmatmul.bf16.gmra.mxu0 %v839
        %v1794 = vpop.f32.mrf.mxu0
        %v1795 = vadd.f32 %v1746, %v1794
        %v1796 = vpop.f32.mrf.mxu0
        %v1797 = vadd.f32 %v1748, %v1796
        %1798 = vdwg.mxu0
        %1799 = vmatpush.bf16.msra.mxu0 %v1247
        %1800 = vmatpush.bf16.msra.mxu0 %v1245
        %1801 = vmatpush.bf16.msra.mxu0 %v1243
        %1802 = vmatpush.bf16.msra.mxu0 %v1241
        %1803 = vmatpush.bf16.msra.mxu0 %v1239
        %1804 = vmatpush.bf16.msra.mxu0 %v1237
        %1805 = vmatpush.bf16.msra.mxu0 %v1235
        %1806 = vmatpush.bf16.msra.mxu0 %v1233
        %1807 = vmatmul.bf16.gmra.mxu0 %v784
        %v1808 = vpop.f32.mrf.mxu0
        %v1809 = vadd.f32 0.0, %v1808
        %v1810 = vpop.f32.mrf.mxu0
        %v1811 = vadd.f32 0.0, %v1810
        %1812 = vmatmul.bf16.gmra.mxu0 %v791
        %v1813 = vpop.f32.mrf.mxu0
        %v1814 = vadd.f32 0.0, %v1813
        %v1815 = vpop.f32.mrf.mxu0
        %v1816 = vadd.f32 0.0, %v1815
        %1817 = vmatmul.bf16.gmra.mxu0 %v798
        %v1818 = vpop.f32.mrf.mxu0
        %v1819 = vadd.f32 0.0, %v1818
        %v1820 = vpop.f32.mrf.mxu0
        %v1821 = vadd.f32 0.0, %v1820
        %1822 = vmatmul.bf16.gmra.mxu0 %v805
        %v1823 = vpop.f32.mrf.mxu0
        %v1824 = vadd.f32 0.0, %v1823
        %v1825 = vpop.f32.mrf.mxu0
        %v1826 = vadd.f32 0.0, %v1825
        %1827 = vmatmul.bf16.gmra.mxu0 %v812
        %v1828 = vpop.f32.mrf.mxu0
        %v1829 = vadd.f32 0.0, %v1828
        %v1830 = vpop.f32.mrf.mxu0
        %v1831 = vadd.f32 0.0, %v1830
        %1832 = vmatmul.bf16.gmra.mxu0 %v819
        %v1833 = vpop.f32.mrf.mxu0
        %v1834 = vadd.f32 0.0, %v1833
        %v1835 = vpop.f32.mrf.mxu0
        %v1836 = vadd.f32 0.0, %v1835
        %1837 = vmatmul.bf16.gmra.mxu0 %v826
        %v1838 = vpop.f32.mrf.mxu0
        %v1839 = vadd.f32 0.0, %v1838
        %v1840 = vpop.f32.mrf.mxu0
        %v1841 = vadd.f32 0.0, %v1840
        %1842 = vmatmul.bf16.gmra.mxu0 %v833
        %v1843 = vpop.f32.mrf.mxu0
        %v1844 = vadd.f32 0.0, %v1843
        %v1845 = vpop.f32.mrf.mxu0
        %v1846 = vadd.f32 0.0, %v1845
        %1847 = vdwg.mxu0
        %1848 = vmatpush.bf16.msra.mxu0 %v1263
        %1849 = vmatpush.bf16.msra.mxu0 %v1261
        %1850 = vmatpush.bf16.msra.mxu0 %v1259
        %1851 = vmatpush.bf16.msra.mxu0 %v1257
        %1852 = vmatpush.bf16.msra.mxu0 %v1255
        %1853 = vmatpush.bf16.msra.mxu0 %v1253
        %1854 = vmatpush.bf16.msra.mxu0 %v1251
        %1855 = vmatpush.bf16.msra.mxu0 %v1249
        %1856 = vmatmul.bf16.gmra.mxu0 %v785
        %v1857 = vpop.f32.mrf.mxu0
        %v1858 = vadd.f32 %v1809, %v1857
        %v1859 = vpop.f32.mrf.mxu0
        %v1860 = vadd.f32 %v1811, %v1859
        %1861 = vmatmul.bf16.gmra.mxu0 %v792
        %v1862 = vpop.f32.mrf.mxu0
        %v1863 = vadd.f32 %v1814, %v1862
        %v1864 = vpop.f32.mrf.mxu0
        %v1865 = vadd.f32 %v1816, %v1864
        %1866 = vmatmul.bf16.gmra.mxu0 %v799
        %v1867 = vpop.f32.mrf.mxu0
        %v1868 = vadd.f32 %v1819, %v1867
        %v1869 = vpop.f32.mrf.mxu0
        %v1870 = vadd.f32 %v1821, %v1869
        %1871 = vmatmul.bf16.gmra.mxu0 %v806
        %v1872 = vpop.f32.mrf.mxu0
        %v1873 = vadd.f32 %v1824, %v1872
        %v1874 = vpop.f32.mrf.mxu0
        %v1875 = vadd.f32 %v1826, %v1874
        %1876 = vmatmul.bf16.gmra.mxu0 %v813
        %v1877 = vpop.f32.mrf.mxu0
        %v1878 = vadd.f32 %v1829, %v1877
        %v1879 = vpop.f32.mrf.mxu0
        %v1880 = vadd.f32 %v1831, %v1879
        %1881 = vmatmul.bf16.gmra.mxu0 %v820
        %v1882 = vpop.f32.mrf.mxu0
        %v1883 = vadd.f32 %v1834, %v1882
        %v1884 = vpop.f32.mrf.mxu0
        %v1885 = vadd.f32 %v1836, %v1884
        %1886 = vmatmul.bf16.gmra.mxu0 %v827
        %v1887 = vpop.f32.mrf.mxu0
        %v1888 = vadd.f32 %v1839, %v1887
        %v1889 = vpop.f32.mrf.mxu0
        %v1890 = vadd.f32 %v1841, %v1889
        %1891 = vmatmul.bf16.gmra.mxu0 %v834
        %v1892 = vpop.f32.mrf.mxu0
        %v1893 = vadd.f32 %v1844, %v1892
        %v1894 = vpop.f32.mrf.mxu0
        %v1895 = vadd.f32 %v1846, %v1894
        %1896 = vdwg.mxu0
        %1897 = vmatpush.bf16.msra.mxu0 %v1279
        %1898 = vmatpush.bf16.msra.mxu0 %v1277
        %1899 = vmatpush.bf16.msra.mxu0 %v1275
        %1900 = vmatpush.bf16.msra.mxu0 %v1273
        %1901 = vmatpush.bf16.msra.mxu0 %v1271
        %1902 = vmatpush.bf16.msra.mxu0 %v1269
        %1903 = vmatpush.bf16.msra.mxu0 %v1267
        %1904 = vmatpush.bf16.msra.mxu0 %v1265
        %1905 = vmatmul.bf16.gmra.mxu0 %v786
        %v1906 = vpop.f32.mrf.mxu0
        %v1907 = vadd.f32 %v1858, %v1906
        %v1908 = vpop.f32.mrf.mxu0
        %v1909 = vadd.f32 %v1860, %v1908
        %1910 = vmatmul.bf16.gmra.mxu0 %v793
        %v1911 = vpop.f32.mrf.mxu0
        %v1912 = vadd.f32 %v1863, %v1911
        %v1913 = vpop.f32.mrf.mxu0
        %v1914 = vadd.f32 %v1865, %v1913
        %1915 = vmatmul.bf16.gmra.mxu0 %v800
        %v1916 = vpop.f32.mrf.mxu0
        %v1917 = vadd.f32 %v1868, %v1916
        %v1918 = vpop.f32.mrf.mxu0
        %v1919 = vadd.f32 %v1870, %v1918
        %1920 = vmatmul.bf16.gmra.mxu0 %v807
        %v1921 = vpop.f32.mrf.mxu0
        %v1922 = vadd.f32 %v1873, %v1921
        %v1923 = vpop.f32.mrf.mxu0
        %v1924 = vadd.f32 %v1875, %v1923
        %1925 = vmatmul.bf16.gmra.mxu0 %v814
        %v1926 = vpop.f32.mrf.mxu0
        %v1927 = vadd.f32 %v1878, %v1926
        %v1928 = vpop.f32.mrf.mxu0
        %v1929 = vadd.f32 %v1880, %v1928
        %1930 = vmatmul.bf16.gmra.mxu0 %v821
        %v1931 = vpop.f32.mrf.mxu0
        %v1932 = vadd.f32 %v1883, %v1931
        %v1933 = vpop.f32.mrf.mxu0
        %v1934 = vadd.f32 %v1885, %v1933
        %1935 = vmatmul.bf16.gmra.mxu0 %v828
        %v1936 = vpop.f32.mrf.mxu0
        %v1937 = vadd.f32 %v1888, %v1936
        %v1938 = vpop.f32.mrf.mxu0
        %v1939 = vadd.f32 %v1890, %v1938
        %1940 = vmatmul.bf16.gmra.mxu0 %v835
        %v1941 = vpop.f32.mrf.mxu0
        %v1942 = vadd.f32 %v1893, %v1941
        %v1943 = vpop.f32.mrf.mxu0
        %v1944 = vadd.f32 %v1895, %v1943
        %1945 = vdwg.mxu0
        %1946 = vmatpush.bf16.msra.mxu0 %v1295
        %1947 = vmatpush.bf16.msra.mxu0 %v1293
        %1948 = vmatpush.bf16.msra.mxu0 %v1291
        %1949 = vmatpush.bf16.msra.mxu0 %v1289
        %1950 = vmatpush.bf16.msra.mxu0 %v1287
        %1951 = vmatpush.bf16.msra.mxu0 %v1285
        %1952 = vmatpush.bf16.msra.mxu0 %v1283
        %1953 = vmatpush.bf16.msra.mxu0 %v1281
        %1954 = vmatmul.bf16.gmra.mxu0 %v787
        %v1955 = vpop.f32.mrf.mxu0
        %v1956 = vadd.f32 %v1907, %v1955
        %v1957 = vpop.f32.mrf.mxu0
        %v1958 = vadd.f32 %v1909, %v1957
        %1959 = vmatmul.bf16.gmra.mxu0 %v794
        %v1960 = vpop.f32.mrf.mxu0
        %v1961 = vadd.f32 %v1912, %v1960
        %v1962 = vpop.f32.mrf.mxu0
        %v1963 = vadd.f32 %v1914, %v1962
        %1964 = vmatmul.bf16.gmra.mxu0 %v801
        %v1965 = vpop.f32.mrf.mxu0
        %v1966 = vadd.f32 %v1917, %v1965
        %v1967 = vpop.f32.mrf.mxu0
        %v1968 = vadd.f32 %v1919, %v1967
        %1969 = vmatmul.bf16.gmra.mxu0 %v808
        %v1970 = vpop.f32.mrf.mxu0
        %v1971 = vadd.f32 %v1922, %v1970
        %v1972 = vpop.f32.mrf.mxu0
        %v1973 = vadd.f32 %v1924, %v1972
        %1974 = vmatmul.bf16.gmra.mxu0 %v815
        %v1975 = vpop.f32.mrf.mxu0
        %v1976 = vadd.f32 %v1927, %v1975
        %v1977 = vpop.f32.mrf.mxu0
        %v1978 = vadd.f32 %v1929, %v1977
        %1979 = vmatmul.bf16.gmra.mxu0 %v822
        %v1980 = vpop.f32.mrf.mxu0
        %v1981 = vadd.f32 %v1932, %v1980
        %v1982 = vpop.f32.mrf.mxu0
        %v1983 = vadd.f32 %v1934, %v1982
        %1984 = vmatmul.bf16.gmra.mxu0 %v829
        %v1985 = vpop.f32.mrf.mxu0
        %v1986 = vadd.f32 %v1937, %v1985
        %v1987 = vpop.f32.mrf.mxu0
        %v1988 = vadd.f32 %v1939, %v1987
        %1989 = vmatmul.bf16.gmra.mxu0 %v836
        %v1990 = vpop.f32.mrf.mxu0
        %v1991 = vadd.f32 %v1942, %v1990
        %v1992 = vpop.f32.mrf.mxu0
        %v1993 = vadd.f32 %v1944, %v1992
        %1994 = vdwg.mxu0
        %1995 = vmatpush.bf16.msra.mxu0 %v1311
        %1996 = vmatpush.bf16.msra.mxu0 %v1309
        %1997 = vmatpush.bf16.msra.mxu0 %v1307
        %1998 = vmatpush.bf16.msra.mxu0 %v1305
        %1999 = vmatpush.bf16.msra.mxu0 %v1303
        %2000 = vmatpush.bf16.msra.mxu0 %v1301
        %2001 = vmatpush.bf16.msra.mxu0 %v1299
        %2002 = vmatpush.bf16.msra.mxu0 %v1297
        %2003 = vmatmul.bf16.gmra.mxu0 %v788
        %v2004 = vpop.f32.mrf.mxu0
        %v2005 = vadd.f32 %v1956, %v2004
        %v2006 = vpop.f32.mrf.mxu0
        %v2007 = vadd.f32 %v1958, %v2006
        %2008 = vmatmul.bf16.gmra.mxu0 %v795
        %v2009 = vpop.f32.mrf.mxu0
        %v2010 = vadd.f32 %v1961, %v2009
        %v2011 = vpop.f32.mrf.mxu0
        %v2012 = vadd.f32 %v1963, %v2011
        %2013 = vmatmul.bf16.gmra.mxu0 %v802
        %v2014 = vpop.f32.mrf.mxu0
        %v2015 = vadd.f32 %v1966, %v2014
        %v2016 = vpop.f32.mrf.mxu0
        %v2017 = vadd.f32 %v1968, %v2016
        %2018 = vmatmul.bf16.gmra.mxu0 %v809
        %v2019 = vpop.f32.mrf.mxu0
        %v2020 = vadd.f32 %v1971, %v2019
        %v2021 = vpop.f32.mrf.mxu0
        %v2022 = vadd.f32 %v1973, %v2021
        %2023 = vmatmul.bf16.gmra.mxu0 %v816
        %v2024 = vpop.f32.mrf.mxu0
        %v2025 = vadd.f32 %v1976, %v2024
        %v2026 = vpop.f32.mrf.mxu0
        %v2027 = vadd.f32 %v1978, %v2026
        %2028 = vmatmul.bf16.gmra.mxu0 %v823
        %v2029 = vpop.f32.mrf.mxu0
        %v2030 = vadd.f32 %v1981, %v2029
        %v2031 = vpop.f32.mrf.mxu0
        %v2032 = vadd.f32 %v1983, %v2031
        %2033 = vmatmul.bf16.gmra.mxu0 %v830
        %v2034 = vpop.f32.mrf.mxu0
        %v2035 = vadd.f32 %v1986, %v2034
        %v2036 = vpop.f32.mrf.mxu0
        %v2037 = vadd.f32 %v1988, %v2036
        %2038 = vmatmul.bf16.gmra.mxu0 %v837
        %v2039 = vpop.f32.mrf.mxu0
        %v2040 = vadd.f32 %v1991, %v2039
        %v2041 = vpop.f32.mrf.mxu0
        %v2042 = vadd.f32 %v1993, %v2041
        %2043 = vdwg.mxu0
        %2044 = vmatpush.bf16.msra.mxu0 %v1327
        %2045 = vmatpush.bf16.msra.mxu0 %v1325
        %2046 = vmatpush.bf16.msra.mxu0 %v1323
        %2047 = vmatpush.bf16.msra.mxu0 %v1321
        %2048 = vmatpush.bf16.msra.mxu0 %v1319
        %2049 = vmatpush.bf16.msra.mxu0 %v1317
        %2050 = vmatpush.bf16.msra.mxu0 %v1315
        %2051 = vmatpush.bf16.msra.mxu0 %v1313
        %2052 = vmatmul.bf16.gmra.mxu0 %v789
        %v2053 = vpop.f32.mrf.mxu0
        %v2054 = vadd.f32 %v2005, %v2053
        %v2055 = vpop.f32.mrf.mxu0
        %v2056 = vadd.f32 %v2007, %v2055
        %2057 = vmatmul.bf16.gmra.mxu0 %v796
        %v2058 = vpop.f32.mrf.mxu0
        %v2059 = vadd.f32 %v2010, %v2058
        %v2060 = vpop.f32.mrf.mxu0
        %v2061 = vadd.f32 %v2012, %v2060
        %2062 = vmatmul.bf16.gmra.mxu0 %v803
        %v2063 = vpop.f32.mrf.mxu0
        %v2064 = vadd.f32 %v2015, %v2063
        %v2065 = vpop.f32.mrf.mxu0
        %v2066 = vadd.f32 %v2017, %v2065
        %2067 = vmatmul.bf16.gmra.mxu0 %v810
        %v2068 = vpop.f32.mrf.mxu0
        %v2069 = vadd.f32 %v2020, %v2068
        %v2070 = vpop.f32.mrf.mxu0
        %v2071 = vadd.f32 %v2022, %v2070
        %2072 = vmatmul.bf16.gmra.mxu0 %v817
        %v2073 = vpop.f32.mrf.mxu0
        %v2074 = vadd.f32 %v2025, %v2073
        %v2075 = vpop.f32.mrf.mxu0
        %v2076 = vadd.f32 %v2027, %v2075
        %2077 = vmatmul.bf16.gmra.mxu0 %v824
        %v2078 = vpop.f32.mrf.mxu0
        %v2079 = vadd.f32 %v2030, %v2078
        %v2080 = vpop.f32.mrf.mxu0
        %v2081 = vadd.f32 %v2032, %v2080
        %2082 = vmatmul.bf16.gmra.mxu0 %v831
        %v2083 = vpop.f32.mrf.mxu0
        %v2084 = vadd.f32 %v2035, %v2083
        %v2085 = vpop.f32.mrf.mxu0
        %v2086 = vadd.f32 %v2037, %v2085
        %2087 = vmatmul.bf16.gmra.mxu0 %v838
        %v2088 = vpop.f32.mrf.mxu0
        %v2089 = vadd.f32 %v2040, %v2088
        %v2090 = vpop.f32.mrf.mxu0
        %v2091 = vadd.f32 %v2042, %v2090
        %2092 = vdwg.mxu0
        %2093 = vmatpush.bf16.msra.mxu0 %v1343
        %2094 = vmatpush.bf16.msra.mxu0 %v1341
        %2095 = vmatpush.bf16.msra.mxu0 %v1339
        %2096 = vmatpush.bf16.msra.mxu0 %v1337
        %2097 = vmatpush.bf16.msra.mxu0 %v1335
        %2098 = vmatpush.bf16.msra.mxu0 %v1333
        %2099 = vmatpush.bf16.msra.mxu0 %v1331
        %2100 = vmatpush.bf16.msra.mxu0 %v1329
        %2101 = vmatmul.bf16.gmra.mxu0 %v790
        %v2102 = vpop.f32.mrf.mxu0
        %v2103 = vadd.f32 %v2054, %v2102
        %v2104 = vpop.f32.mrf.mxu0
        %v2105 = vadd.f32 %v2056, %v2104
        %2106 = vmatmul.bf16.gmra.mxu0 %v797
        %v2107 = vpop.f32.mrf.mxu0
        %v2108 = vadd.f32 %v2059, %v2107
        %v2109 = vpop.f32.mrf.mxu0
        %v2110 = vadd.f32 %v2061, %v2109
        %2111 = vmatmul.bf16.gmra.mxu0 %v804
        %v2112 = vpop.f32.mrf.mxu0
        %v2113 = vadd.f32 %v2064, %v2112
        %v2114 = vpop.f32.mrf.mxu0
        %v2115 = vadd.f32 %v2066, %v2114
        %2116 = vmatmul.bf16.gmra.mxu0 %v811
        %v2117 = vpop.f32.mrf.mxu0
        %v2118 = vadd.f32 %v2069, %v2117
        %v2119 = vpop.f32.mrf.mxu0
        %v2120 = vadd.f32 %v2071, %v2119
        %2121 = vmatmul.bf16.gmra.mxu0 %v818
        %v2122 = vpop.f32.mrf.mxu0
        %v2123 = vadd.f32 %v2074, %v2122
        %v2124 = vpop.f32.mrf.mxu0
        %v2125 = vadd.f32 %v2076, %v2124
        %2126 = vmatmul.bf16.gmra.mxu0 %v825
        %v2127 = vpop.f32.mrf.mxu0
        %v2128 = vadd.f32 %v2079, %v2127
        %v2129 = vpop.f32.mrf.mxu0
        %v2130 = vadd.f32 %v2081, %v2129
        %2131 = vmatmul.bf16.gmra.mxu0 %v832
        %v2132 = vpop.f32.mrf.mxu0
        %v2133 = vadd.f32 %v2084, %v2132
        %v2134 = vpop.f32.mrf.mxu0
        %v2135 = vadd.f32 %v2086, %v2134
        %2136 = vmatmul.bf16.gmra.mxu0 %v839
        %v2137 = vpop.f32.mrf.mxu0
        %v2138 = vadd.f32 %v2089, %v2137
        %v2139 = vpop.f32.mrf.mxu0
        %v2140 = vadd.f32 %v2091, %v2139
        %2141 = vdwg.mxu0
        %v2142 = vpack.c.bf16 %v2103, %v1760
        %v2143 = vpack.c.bf16 %v2105, %v1762
        %v2144 = vpack.c.bf16 %v2108, %v1765
        %v2145 = vpack.c.bf16 %v2110, %v1767
        %v2146 = vpack.c.bf16 %v2113, %v1770
        %v2147 = vpack.c.bf16 %v2115, %v1772
        %v2148 = vpack.c.bf16 %v2118, %v1775
        %v2149 = vpack.c.bf16 %v2120, %v1777
        %v2150 = vpack.c.bf16 %v2123, %v1780
        %v2151 = vpack.c.bf16 %v2125, %v1782
        %v2152 = vpack.c.bf16 %v2128, %v1785
        %v2153 = vpack.c.bf16 %v2130, %v1787
        %v2154 = vpack.c.bf16 %v2133, %v1790
        %v2155 = vpack.c.bf16 %v2135, %v1792
        %v2156 = vpack.c.bf16 %v2138, %v1795
        %v2157 = vpack.c.bf16 %v2140, %v1797
        %v2158 = vld [vmem:[%s3] sm:$0x3]
        %v2160 = vperm.slane %v2158, 0
        %v2161 = vperm.slane %v2158, 1
        %v2164 = vpack.c.bf16 %v2161, %v2160
        %v2166 = vunpack.c.l.b16 %v2164
        %v2167 = vunpack.c.h.b16 %v2164
        %v2168 = vpack.c.b16 %v2166, %v2166
        %v2169 = vpack.c.b16 %v2167, %v2167
        %v2171 = vpack.i.b16 %v2168, %v2168
        %v2173 = vperm.slane %v2171, 0
        %v2175 = vpack.i.b16 %v2169, %v2169
        %v2177 = vperm.slane %v2175, 0
        %v2178 = vunpack.c.l.bf16 %v2142
        %v2179 = vunpack.c.h.bf16 %v2142
        %v2180 = vunpack.c.l.bf16 %v2143
        %v2181 = vunpack.c.h.bf16 %v2143
        %v2182 = vunpack.c.l.bf16 %v2144
        %v2183 = vunpack.c.h.bf16 %v2144
        %v2184 = vunpack.c.l.bf16 %v2145
        %v2185 = vunpack.c.h.bf16 %v2145
        %v2186 = vunpack.c.l.bf16 %v2146
        %v2187 = vunpack.c.h.bf16 %v2146
        %v2188 = vunpack.c.l.bf16 %v2147
        %v2189 = vunpack.c.h.bf16 %v2147
        %v2190 = vunpack.c.l.bf16 %v2148
        %v2191 = vunpack.c.h.bf16 %v2148
        %v2192 = vunpack.c.l.bf16 %v2149
        %v2193 = vunpack.c.h.bf16 %v2149
        %v2194 = vunpack.c.l.bf16 %v2150
        %v2195 = vunpack.c.h.bf16 %v2150
        %v2196 = vunpack.c.l.bf16 %v2151
        %v2197 = vunpack.c.h.bf16 %v2151
        %v2198 = vunpack.c.l.bf16 %v2152
        %v2199 = vunpack.c.h.bf16 %v2152
        %v2200 = vunpack.c.l.bf16 %v2153
        %v2201 = vunpack.c.h.bf16 %v2153
        %v2202 = vunpack.c.l.bf16 %v2154
        %v2203 = vunpack.c.h.bf16 %v2154
        %v2204 = vunpack.c.l.bf16 %v2155
        %v2205 = vunpack.c.h.bf16 %v2155
        %v2206 = vunpack.c.l.bf16 %v2156
        %v2207 = vunpack.c.h.bf16 %v2156
        %v2208 = vunpack.c.l.bf16 %v2157
        %v2209 = vunpack.c.h.bf16 %v2157
        %v2210 = vunpack.c.l.bf16 %v2173
        %v2211 = vunpack.c.l.bf16 %v2177
        %v2212 = vadd.f32 %v2178, %v2210
        %v2213 = vadd.f32 %v2179, %v2211
        %v2214 = vadd.f32 %v2180, %v2210
        %v2215 = vadd.f32 %v2181, %v2211
        %v2216 = vadd.f32 %v2182, %v2210
        %v2217 = vadd.f32 %v2183, %v2211
        %v2218 = vadd.f32 %v2184, %v2210
        %v2219 = vadd.f32 %v2185, %v2211
        %v2220 = vadd.f32 %v2186, %v2210
        %v2221 = vadd.f32 %v2187, %v2211
        %v2222 = vadd.f32 %v2188, %v2210
        %v2223 = vadd.f32 %v2189, %v2211
        %v2224 = vadd.f32 %v2190, %v2210
        %v2225 = vadd.f32 %v2191, %v2211
        %v2226 = vadd.f32 %v2192, %v2210
        %v2227 = vadd.f32 %v2193, %v2211
        %v2228 = vadd.f32 %v2194, %v2210
        %v2229 = vadd.f32 %v2195, %v2211
        %v2230 = vadd.f32 %v2196, %v2210
        %v2231 = vadd.f32 %v2197, %v2211
        %v2232 = vadd.f32 %v2198, %v2210
        %v2233 = vadd.f32 %v2199, %v2211
        %v2234 = vadd.f32 %v2200, %v2210
        %v2235 = vadd.f32 %v2201, %v2211
        %v2236 = vadd.f32 %v2202, %v2210
        %v2237 = vadd.f32 %v2203, %v2211
        %v2238 = vadd.f32 %v2204, %v2210
        %v2239 = vadd.f32 %v2205, %v2211
        %v2240 = vadd.f32 %v2206, %v2210
        %v2241 = vadd.f32 %v2207, %v2211
        %v2242 = vadd.f32 %v2208, %v2210
        %v2243 = vadd.f32 %v2209, %v2211
        %v2244 = vpack.c.bf16 %v2213, %v2212
        %v2245 = vpack.c.bf16 %v2215, %v2214
        %v2246 = vpack.c.bf16 %v2217, %v2216
        %v2247 = vpack.c.bf16 %v2219, %v2218
        %v2248 = vpack.c.bf16 %v2221, %v2220
        %v2249 = vpack.c.bf16 %v2223, %v2222
        %v2250 = vpack.c.bf16 %v2225, %v2224
        %v2251 = vpack.c.bf16 %v2227, %v2226
        %v2252 = vpack.c.bf16 %v2229, %v2228
        %v2253 = vpack.c.bf16 %v2231, %v2230
        %v2254 = vpack.c.bf16 %v2233, %v2232
        %v2255 = vpack.c.bf16 %v2235, %v2234
        %v2256 = vpack.c.bf16 %v2237, %v2236
        %v2257 = vpack.c.bf16 %v2239, %v2238
        %v2258 = vpack.c.bf16 %v2241, %v2240
        %v2259 = vpack.c.bf16 %v2243, %v2242
        %v2260 = vunpack.c.l.bf16 %v2244
        %v2261 = vunpack.c.h.bf16 %v2244
        %v2262 = vunpack.c.l.bf16 %v2245
        %v2263 = vunpack.c.h.bf16 %v2245
        %v2264 = vunpack.c.l.bf16 %v2246
        %v2265 = vunpack.c.h.bf16 %v2246
        %v2266 = vunpack.c.l.bf16 %v2247
        %v2267 = vunpack.c.h.bf16 %v2247
        %v2268 = vunpack.c.l.bf16 %v2248
        %v2269 = vunpack.c.h.bf16 %v2248
        %v2270 = vunpack.c.l.bf16 %v2249
        %v2271 = vunpack.c.h.bf16 %v2249
        %v2272 = vunpack.c.l.bf16 %v2250
        %v2273 = vunpack.c.h.bf16 %v2250
        %v2274 = vunpack.c.l.bf16 %v2251
        %v2275 = vunpack.c.h.bf16 %v2251
        %v2276 = vunpack.c.l.bf16 %v2252
        %v2277 = vunpack.c.h.bf16 %v2252
        %v2278 = vunpack.c.l.bf16 %v2253
        %v2279 = vunpack.c.h.bf16 %v2253
        %v2280 = vunpack.c.l.bf16 %v2254
        %v2281 = vunpack.c.h.bf16 %v2254
        %v2282 = vunpack.c.l.bf16 %v2255
        %v2283 = vunpack.c.h.bf16 %v2255
        %v2284 = vunpack.c.l.bf16 %v2256
        %v2285 = vunpack.c.h.bf16 %v2256
        %v2286 = vunpack.c.l.bf16 %v2257
        %v2287 = vunpack.c.h.bf16 %v2257
        %v2288 = vunpack.c.l.bf16 %v2258
        %v2289 = vunpack.c.h.bf16 %v2258
        %v2290 = vunpack.c.l.bf16 %v2259
        %v2291 = vunpack.c.h.bf16 %v2259
        %vm2292 = vcmp.ge.f32.partialorder %v2260, 0.0
        %vm2293 = vcmp.ge.f32.partialorder %v2261, 0.0
        %vm2294 = vcmp.ge.f32.partialorder %v2262, 0.0
        %vm2295 = vcmp.ge.f32.partialorder %v2263, 0.0
        %vm2296 = vcmp.ge.f32.partialorder %v2264, 0.0
        %vm2297 = vcmp.ge.f32.partialorder %v2265, 0.0
        %vm2298 = vcmp.ge.f32.partialorder %v2266, 0.0
        %vm2299 = vcmp.ge.f32.partialorder %v2267, 0.0
        %vm2300 = vcmp.ge.f32.partialorder %v2268, 0.0
        %vm2301 = vcmp.ge.f32.partialorder %v2269, 0.0
        %vm2302 = vcmp.ge.f32.partialorder %v2270, 0.0
        %vm2303 = vcmp.ge.f32.partialorder %v2271, 0.0
        %vm2304 = vcmp.ge.f32.partialorder %v2272, 0.0
        %vm2305 = vcmp.ge.f32.partialorder %v2273, 0.0
        %vm2306 = vcmp.ge.f32.partialorder %v2274, 0.0
        %vm2307 = vcmp.ge.f32.partialorder %v2275, 0.0
        %vm2308 = vcmp.ge.f32.partialorder %v2276, 0.0
        %vm2309 = vcmp.ge.f32.partialorder %v2277, 0.0
        %vm2310 = vcmp.ge.f32.partialorder %v2278, 0.0
        %vm2311 = vcmp.ge.f32.partialorder %v2279, 0.0
        %vm2312 = vcmp.ge.f32.partialorder %v2280, 0.0
        %vm2313 = vcmp.ge.f32.partialorder %v2281, 0.0
        %vm2314 = vcmp.ge.f32.partialorder %v2282, 0.0
        %vm2315 = vcmp.ge.f32.partialorder %v2283, 0.0
        %vm2316 = vcmp.ge.f32.partialorder %v2284, 0.0
        %vm2317 = vcmp.ge.f32.partialorder %v2285, 0.0
        %vm2318 = vcmp.ge.f32.partialorder %v2286, 0.0
        %vm2319 = vcmp.ge.f32.partialorder %v2287, 0.0
        %vm2320 = vcmp.ge.f32.partialorder %v2288, 0.0
        %vm2321 = vcmp.ge.f32.partialorder %v2289, 0.0
        %vm2322 = vcmp.ge.f32.partialorder %v2290, 0.0
        %vm2323 = vcmp.ge.f32.partialorder %v2291, 0.0
        %s2324 = sshll.u32 %s420, 16
        %s2325 = sor.u32 %s420, %s2324
        %v2326 = vstv %s2325
        %v2328 = vunpack.c.l.bf16 %v2326
        %v2329 = vmul.f32 %v2328, %v2260
        %v2330 = vmul.f32 %v2328, %v2261
        %v2331 = vmul.f32 %v2328, %v2262
        %v2332 = vmul.f32 %v2328, %v2263
        %v2333 = vmul.f32 %v2328, %v2264
        %v2334 = vmul.f32 %v2328, %v2265
        %v2335 = vmul.f32 %v2328, %v2266
        %v2336 = vmul.f32 %v2328, %v2267
        %v2337 = vmul.f32 %v2328, %v2268
        %v2338 = vmul.f32 %v2328, %v2269
        %v2339 = vmul.f32 %v2328, %v2270
        %v2340 = vmul.f32 %v2328, %v2271
        %v2341 = vmul.f32 %v2328, %v2272
        %v2342 = vmul.f32 %v2328, %v2273
        %v2343 = vmul.f32 %v2328, %v2274
        %v2344 = vmul.f32 %v2328, %v2275
        %v2345 = vmul.f32 %v2328, %v2276
        %v2346 = vmul.f32 %v2328, %v2277
        %v2347 = vmul.f32 %v2328, %v2278
        %v2348 = vmul.f32 %v2328, %v2279
        %v2349 = vmul.f32 %v2328, %v2280
        %v2350 = vmul.f32 %v2328, %v2281
        %v2351 = vmul.f32 %v2328, %v2282
        %v2352 = vmul.f32 %v2328, %v2283
        %v2353 = vmul.f32 %v2328, %v2284
        %v2354 = vmul.f32 %v2328, %v2285
        %v2355 = vmul.f32 %v2328, %v2286
        %v2356 = vmul.f32 %v2328, %v2287
        %v2357 = vmul.f32 %v2328, %v2288
        %v2358 = vmul.f32 %v2328, %v2289
        %v2359 = vmul.f32 %v2328, %v2290
        %v2360 = vmul.f32 %v2328, %v2291
        %v2361 = vpack.c.bf16 %v2330, %v2329
        %v2362 = vpack.c.bf16 %v2332, %v2331
        %v2363 = vpack.c.bf16 %v2334, %v2333
        %v2364 = vpack.c.bf16 %v2336, %v2335
        %v2365 = vpack.c.bf16 %v2338, %v2337
        %v2366 = vpack.c.bf16 %v2340, %v2339
        %v2367 = vpack.c.bf16 %v2342, %v2341
        %v2368 = vpack.c.bf16 %v2344, %v2343
        %v2369 = vpack.c.bf16 %v2346, %v2345
        %v2370 = vpack.c.bf16 %v2348, %v2347
        %v2371 = vpack.c.bf16 %v2350, %v2349
        %v2372 = vpack.c.bf16 %v2352, %v2351
        %v2373 = vpack.c.bf16 %v2354, %v2353
        %v2374 = vpack.c.bf16 %v2356, %v2355
        %v2375 = vpack.c.bf16 %v2358, %v2357
        %v2376 = vpack.c.bf16 %v2360, %v2359
        %vm2377 = vmpackc.low %vm2293, %vm2292
        %vm2378 = vmpackc.low %vm2295, %vm2294
        %vm2379 = vmpackc.low %vm2297, %vm2296
        %vm2380 = vmpackc.low %vm2299, %vm2298
        %vm2381 = vmpackc.low %vm2301, %vm2300
        %vm2382 = vmpackc.low %vm2303, %vm2302
        %vm2383 = vmpackc.low %vm2305, %vm2304
        %vm2384 = vmpackc.low %vm2307, %vm2306
        %vm2385 = vmpackc.low %vm2309, %vm2308
        %vm2386 = vmpackc.low %vm2311, %vm2310
        %vm2387 = vmpackc.low %vm2313, %vm2312
        %vm2388 = vmpackc.low %vm2315, %vm2314
        %vm2389 = vmpackc.low %vm2317, %vm2316
        %vm2390 = vmpackc.low %vm2319, %vm2318
        %vm2391 = vmpackc.low %vm2321, %vm2320
        %vm2392 = vmpackc.low %vm2323, %vm2322
        %v2393 = vsel %vm2377, %v2244, %v2361
        %v2394 = vsel %vm2378, %v2245, %v2362
        %v2395 = vsel %vm2379, %v2246, %v2363
        %v2396 = vsel %vm2380, %v2247, %v2364
        %v2397 = vsel %vm2381, %v2248, %v2365
        %v2398 = vsel %vm2382, %v2249, %v2366
        %v2399 = vsel %vm2383, %v2250, %v2367
        %v2400 = vsel %vm2384, %v2251, %v2368
        %v2401 = vsel %vm2385, %v2252, %v2369
        %v2402 = vsel %vm2386, %v2253, %v2370
        %v2403 = vsel %vm2387, %v2254, %v2371
        %v2404 = vsel %vm2388, %v2255, %v2372
        %v2405 = vsel %vm2389, %v2256, %v2373
        %v2406 = vsel %vm2390, %v2257, %v2374
        %v2407 = vsel %vm2391, %v2258, %v2375
        %v2408 = vsel %vm2392, %v2259, %v2376
        %v2409 = vld [vmem:[#allocation9] sm:$0xff]
        %v2410 = vld [vmem:[#allocation9 + $0x8] sm:$0xff]
        %v2411 = vld [vmem:[#allocation9 + $0x10] sm:$0xff]
        %v2412 = vld [vmem:[#allocation9 + $0x18] sm:$0xff]
        %v2413 = vld [vmem:[#allocation9 + $0x20] sm:$0xff]
        %v2414 = vld [vmem:[#allocation9 + $0x28] sm:$0xff]
        %v2415 = vld [vmem:[#allocation9 + $0x30] sm:$0xff]
        %v2416 = vld [vmem:[#allocation9 + $0x38] sm:$0xff]
        %v2417 = vld [vmem:[#allocation9 + $0x40] sm:$0xff]
        %v2418 = vld [vmem:[#allocation9 + $0x48] sm:$0xff]
        %v2419 = vld [vmem:[#allocation9 + $0x50] sm:$0xff]
        %v2420 = vld [vmem:[#allocation9 + $0x58] sm:$0xff]
        %v2421 = vld [vmem:[#allocation9 + $0x60] sm:$0xff]
        %v2422 = vld [vmem:[#allocation9 + $0x68] sm:$0xff]
        %v2423 = vld [vmem:[#allocation9 + $0x70] sm:$0xff]
        %v2424 = vld [vmem:[#allocation9 + $0x78] sm:$0xff]
        %v2425 = vld [vmem:[#allocation9 + $0x80] sm:$0xff]
        %v2426 = vld [vmem:[#allocation9 + $0x88] sm:$0xff]
        %v2427 = vld [vmem:[#allocation9 + $0x90] sm:$0xff]
        %v2428 = vld [vmem:[#allocation9 + $0x98] sm:$0xff]
        %v2429 = vld [vmem:[#allocation9 + $0xa0] sm:$0xff]
        %v2430 = vld [vmem:[#allocation9 + $0xa8] sm:$0xff]
        %v2431 = vld [vmem:[#allocation9 + $0xb0] sm:$0xff]
        %v2432 = vld [vmem:[#allocation9 + $0xb8] sm:$0xff]
        %v2433 = vld [vmem:[#allocation9 + $0xc0] sm:$0xff]
        %v2434 = vld [vmem:[#allocation9 + $0xc8] sm:$0xff]
        %v2435 = vld [vmem:[#allocation9 + $0xd0] sm:$0xff]
        %v2436 = vld [vmem:[#allocation9 + $0xd8] sm:$0xff]
        %v2437 = vld [vmem:[#allocation9 + $0xe0] sm:$0xff]
        %v2438 = vld [vmem:[#allocation9 + $0xe8] sm:$0xff]
        %v2439 = vld [vmem:[#allocation9 + $0xf0] sm:$0xff]
        %v2440 = vld [vmem:[#allocation9 + $0xf8] sm:$0xff]
        %v2457 = vunpack.c.l.b16 %v2393
        %v2458 = vunpack.c.h.b16 %v2393
        %v2459 = vunpack.c.l.b16 %v2394
        %v2460 = vunpack.c.h.b16 %v2394
        %v2461 = vunpack.c.l.b16 %v2395
        %v2462 = vunpack.c.h.b16 %v2395
        %v2463 = vunpack.c.l.b16 %v2396
        %v2464 = vunpack.c.h.b16 %v2396
        %v2465 = vunpack.c.l.b16 %v2397
        %v2466 = vunpack.c.h.b16 %v2397
        %v2467 = vunpack.c.l.b16 %v2398
        %v2468 = vunpack.c.h.b16 %v2398
        %v2469 = vunpack.c.l.b16 %v2399
        %v2470 = vunpack.c.h.b16 %v2399
        %v2471 = vunpack.c.l.b16 %v2400
        %v2472 = vunpack.c.h.b16 %v2400
        %v2473 = vunpack.c.l.b16 %v2401
        %v2474 = vunpack.c.h.b16 %v2401
        %v2475 = vunpack.c.l.b16 %v2402
        %v2476 = vunpack.c.h.b16 %v2402
        %v2477 = vunpack.c.l.b16 %v2403
        %v2478 = vunpack.c.h.b16 %v2403
        %v2479 = vunpack.c.l.b16 %v2404
        %v2480 = vunpack.c.h.b16 %v2404
        %v2481 = vunpack.c.l.b16 %v2405
        %v2482 = vunpack.c.h.b16 %v2405
        %v2483 = vunpack.c.l.b16 %v2406
        %v2484 = vunpack.c.h.b16 %v2406
        %v2485 = vunpack.c.l.b16 %v2407
        %v2486 = vunpack.c.h.b16 %v2407
        %v2487 = vunpack.c.l.b16 %v2408
        %v2488 = vunpack.c.h.b16 %v2408
        %v2489 = vpack.c.b16 %v2459, %v2457
        %v2490 = vpack.c.b16 %v2460, %v2458
        %v2491 = vpack.c.b16 %v2463, %v2461
        %v2492 = vpack.c.b16 %v2464, %v2462
        %v2493 = vpack.c.b16 %v2467, %v2465
        %v2494 = vpack.c.b16 %v2468, %v2466
        %v2495 = vpack.c.b16 %v2471, %v2469
        %v2496 = vpack.c.b16 %v2472, %v2470
        %v2497 = vpack.c.b16 %v2475, %v2473
        %v2498 = vpack.c.b16 %v2476, %v2474
        %v2499 = vpack.c.b16 %v2479, %v2477
        %v2500 = vpack.c.b16 %v2480, %v2478
        %v2501 = vpack.c.b16 %v2483, %v2481
        %v2502 = vpack.c.b16 %v2484, %v2482
        %v2503 = vpack.c.b16 %v2487, %v2485
        %v2504 = vpack.c.b16 %v2488, %v2486
        %v2553 = vunpack.c.l.b16 %v2409
        %v2554 = vunpack.c.h.b16 %v2409
        %v2555 = vunpack.c.l.b16 %v2410
        %v2556 = vunpack.c.h.b16 %v2410
        %v2557 = vunpack.c.l.b16 %v2411
        %v2558 = vunpack.c.h.b16 %v2411
        %v2559 = vunpack.c.l.b16 %v2412
        %v2560 = vunpack.c.h.b16 %v2412
        %v2561 = vunpack.c.l.b16 %v2413
        %v2562 = vunpack.c.h.b16 %v2413
        %v2563 = vunpack.c.l.b16 %v2414
        %v2564 = vunpack.c.h.b16 %v2414
        %v2565 = vunpack.c.l.b16 %v2415
        %v2566 = vunpack.c.h.b16 %v2415
        %v2567 = vunpack.c.l.b16 %v2416
        %v2568 = vunpack.c.h.b16 %v2416
        %v2569 = vunpack.c.l.b16 %v2417
        %v2570 = vunpack.c.h.b16 %v2417
        %v2571 = vunpack.c.l.b16 %v2418
        %v2572 = vunpack.c.h.b16 %v2418
        %v2573 = vunpack.c.l.b16 %v2419
        %v2574 = vunpack.c.h.b16 %v2419
        %v2575 = vunpack.c.l.b16 %v2420
        %v2576 = vunpack.c.h.b16 %v2420
        %v2577 = vunpack.c.l.b16 %v2421
        %v2578 = vunpack.c.h.b16 %v2421
        %v2579 = vunpack.c.l.b16 %v2422
        %v2580 = vunpack.c.h.b16 %v2422
        %v2581 = vunpack.c.l.b16 %v2423
        %v2582 = vunpack.c.h.b16 %v2423
        %v2583 = vunpack.c.l.b16 %v2424
        %v2584 = vunpack.c.h.b16 %v2424
        %v2585 = vunpack.c.l.b16 %v2425
        %v2586 = vunpack.c.h.b16 %v2425
        %v2587 = vunpack.c.l.b16 %v2426
        %v2588 = vunpack.c.h.b16 %v2426
        %v2589 = vunpack.c.l.b16 %v2427
        %v2590 = vunpack.c.h.b16 %v2427
        %v2591 = vunpack.c.l.b16 %v2428
        %v2592 = vunpack.c.h.b16 %v2428
        %v2593 = vunpack.c.l.b16 %v2429
        %v2594 = vunpack.c.h.b16 %v2429
        %v2595 = vunpack.c.l.b16 %v2430
        %v2596 = vunpack.c.h.b16 %v2430
        %v2597 = vunpack.c.l.b16 %v2431
        %v2598 = vunpack.c.h.b16 %v2431
        %v2599 = vunpack.c.l.b16 %v2432
        %v2600 = vunpack.c.h.b16 %v2432
        %v2601 = vunpack.c.l.b16 %v2433
        %v2602 = vunpack.c.h.b16 %v2433
        %v2603 = vunpack.c.l.b16 %v2434
        %v2604 = vunpack.c.h.b16 %v2434
        %v2605 = vunpack.c.l.b16 %v2435
        %v2606 = vunpack.c.h.b16 %v2435
        %v2607 = vunpack.c.l.b16 %v2436
        %v2608 = vunpack.c.h.b16 %v2436
        %v2609 = vunpack.c.l.b16 %v2437
        %v2610 = vunpack.c.h.b16 %v2437
        %v2611 = vunpack.c.l.b16 %v2438
        %v2612 = vunpack.c.h.b16 %v2438
        %v2613 = vunpack.c.l.b16 %v2439
        %v2614 = vunpack.c.h.b16 %v2439
        %v2615 = vunpack.c.l.b16 %v2440
        %v2616 = vunpack.c.h.b16 %v2440
        %v2617 = vpack.c.b16 %v2555, %v2553
        %v2618 = vpack.c.b16 %v2556, %v2554
        %v2619 = vpack.c.b16 %v2559, %v2557
        %v2620 = vpack.c.b16 %v2560, %v2558
        %v2621 = vpack.c.b16 %v2563, %v2561
        %v2622 = vpack.c.b16 %v2564, %v2562
        %v2623 = vpack.c.b16 %v2567, %v2565
        %v2624 = vpack.c.b16 %v2568, %v2566
        %v2625 = vpack.c.b16 %v2571, %v2569
        %v2626 = vpack.c.b16 %v2572, %v2570
        %v2627 = vpack.c.b16 %v2575, %v2573
        %v2628 = vpack.c.b16 %v2576, %v2574
        %v2629 = vpack.c.b16 %v2579, %v2577
        %v2630 = vpack.c.b16 %v2580, %v2578
        %v2631 = vpack.c.b16 %v2583, %v2581
        %v2632 = vpack.c.b16 %v2584, %v2582
        %v2633 = vpack.c.b16 %v2587, %v2585
        %v2634 = vpack.c.b16 %v2588, %v2586
        %v2635 = vpack.c.b16 %v2591, %v2589
        %v2636 = vpack.c.b16 %v2592, %v2590
        %v2637 = vpack.c.b16 %v2595, %v2593
        %v2638 = vpack.c.b16 %v2596, %v2594
        %v2639 = vpack.c.b16 %v2599, %v2597
        %v2640 = vpack.c.b16 %v2600, %v2598
        %v2641 = vpack.c.b16 %v2603, %v2601
        %v2642 = vpack.c.b16 %v2604, %v2602
        %v2643 = vpack.c.b16 %v2607, %v2605
        %v2644 = vpack.c.b16 %v2608, %v2606
        %v2645 = vpack.c.b16 %v2611, %v2609
        %v2646 = vpack.c.b16 %v2612, %v2610
        %v2647 = vpack.c.b16 %v2615, %v2613
        %v2648 = vpack.c.b16 %v2616, %v2614
        %2681 = vmatpush.bf16.msra.mxu0 %v2631
        %2682 = vmatpush.bf16.msra.mxu0 %v2629
        %2683 = vmatpush.bf16.msra.mxu0 %v2627
        %2684 = vmatpush.bf16.msra.mxu0 %v2625
        %2685 = vmatpush.bf16.msra.mxu0 %v2623
        %2686 = vmatpush.bf16.msra.mxu0 %v2621
        %2687 = vmatpush.bf16.msra.mxu0 %v2619
        %2688 = vmatpush.bf16.msra.mxu0 %v2617
        %2689 = vmatmul.bf16.gmra.mxu0 %v2489
        %v2690 = vpop.f32.mrf.mxu0
        %v2691 = vadd.f32 0.0, %v2690
        %v2692 = vpop.f32.mrf.mxu0
        %v2693 = vadd.f32 0.0, %v2692
        %2694 = vmatmul.bf16.gmra.mxu0 %v2491
        %v2695 = vpop.f32.mrf.mxu0
        %v2696 = vadd.f32 0.0, %v2695
        %v2697 = vpop.f32.mrf.mxu0
        %v2698 = vadd.f32 0.0, %v2697
        %2699 = vmatmul.bf16.gmra.mxu0 %v2493
        %v2700 = vpop.f32.mrf.mxu0
        %v2701 = vadd.f32 0.0, %v2700
        %v2702 = vpop.f32.mrf.mxu0
        %v2703 = vadd.f32 0.0, %v2702
        %2704 = vmatmul.bf16.gmra.mxu0 %v2495
        %v2705 = vpop.f32.mrf.mxu0
        %v2706 = vadd.f32 0.0, %v2705
        %v2707 = vpop.f32.mrf.mxu0
        %v2708 = vadd.f32 0.0, %v2707
        %2709 = vmatmul.bf16.gmra.mxu0 %v2497
        %v2710 = vpop.f32.mrf.mxu0
        %v2711 = vadd.f32 0.0, %v2710
        %v2712 = vpop.f32.mrf.mxu0
        %v2713 = vadd.f32 0.0, %v2712
        %2714 = vmatmul.bf16.gmra.mxu0 %v2499
        %v2715 = vpop.f32.mrf.mxu0
        %v2716 = vadd.f32 0.0, %v2715
        %v2717 = vpop.f32.mrf.mxu0
        %v2718 = vadd.f32 0.0, %v2717
        %2719 = vmatmul.bf16.gmra.mxu0 %v2501
        %v2720 = vpop.f32.mrf.mxu0
        %v2721 = vadd.f32 0.0, %v2720
        %v2722 = vpop.f32.mrf.mxu0
        %v2723 = vadd.f32 0.0, %v2722
        %2724 = vmatmul.bf16.gmra.mxu0 %v2503
        %v2725 = vpop.f32.mrf.mxu0
        %v2726 = vadd.f32 0.0, %v2725
        %v2727 = vpop.f32.mrf.mxu0
        %v2728 = vadd.f32 0.0, %v2727
        %2729 = vdwg.mxu0
        %2730 = vmatpush.bf16.msra.mxu0 %v2647
        %2731 = vmatpush.bf16.msra.mxu0 %v2645
        %2732 = vmatpush.bf16.msra.mxu0 %v2643
        %2733 = vmatpush.bf16.msra.mxu0 %v2641
        %2734 = vmatpush.bf16.msra.mxu0 %v2639
        %2735 = vmatpush.bf16.msra.mxu0 %v2637
        %2736 = vmatpush.bf16.msra.mxu0 %v2635
        %2737 = vmatpush.bf16.msra.mxu0 %v2633
        %2738 = vmatmul.bf16.gmra.mxu0 %v2490
        %v2739 = vpop.f32.mrf.mxu0
        %v2740 = vadd.f32 %v2691, %v2739
        %v2741 = vpop.f32.mrf.mxu0
        %v2742 = vadd.f32 %v2693, %v2741
        %2743 = vmatmul.bf16.gmra.mxu0 %v2492
        %v2744 = vpop.f32.mrf.mxu0
        %v2745 = vadd.f32 %v2696, %v2744
        %v2746 = vpop.f32.mrf.mxu0
        %v2747 = vadd.f32 %v2698, %v2746
        %2748 = vmatmul.bf16.gmra.mxu0 %v2494
        %v2749 = vpop.f32.mrf.mxu0
        %v2750 = vadd.f32 %v2701, %v2749
        %v2751 = vpop.f32.mrf.mxu0
        %v2752 = vadd.f32 %v2703, %v2751
        %2753 = vmatmul.bf16.gmra.mxu0 %v2496
        %v2754 = vpop.f32.mrf.mxu0
        %v2755 = vadd.f32 %v2706, %v2754
        %v2756 = vpop.f32.mrf.mxu0
        %v2757 = vadd.f32 %v2708, %v2756
        %2758 = vmatmul.bf16.gmra.mxu0 %v2498
        %v2759 = vpop.f32.mrf.mxu0
        %v2760 = vadd.f32 %v2711, %v2759
        %v2761 = vpop.f32.mrf.mxu0
        %v2762 = vadd.f32 %v2713, %v2761
        %2763 = vmatmul.bf16.gmra.mxu0 %v2500
        %v2764 = vpop.f32.mrf.mxu0
        %v2765 = vadd.f32 %v2716, %v2764
        %v2766 = vpop.f32.mrf.mxu0
        %v2767 = vadd.f32 %v2718, %v2766
        %2768 = vmatmul.bf16.gmra.mxu0 %v2502
        %v2769 = vpop.f32.mrf.mxu0
        %v2770 = vadd.f32 %v2721, %v2769
        %v2771 = vpop.f32.mrf.mxu0
        %v2772 = vadd.f32 %v2723, %v2771
        %2773 = vmatmul.bf16.gmra.mxu0 %v2504
        %v2774 = vpop.f32.mrf.mxu0
        %v2775 = vadd.f32 %v2726, %v2774
        %v2776 = vpop.f32.mrf.mxu0
        %v2777 = vadd.f32 %v2728, %v2776
        %2778 = vdwg.mxu0
        %2779 = vmatpush.bf16.msra.mxu0 %v2632
        %2780 = vmatpush.bf16.msra.mxu0 %v2630
        %2781 = vmatpush.bf16.msra.mxu0 %v2628
        %2782 = vmatpush.bf16.msra.mxu0 %v2626
        %2783 = vmatpush.bf16.msra.mxu0 %v2624
        %2784 = vmatpush.bf16.msra.mxu0 %v2622
        %2785 = vmatpush.bf16.msra.mxu0 %v2620
        %2786 = vmatpush.bf16.msra.mxu0 %v2618
        %2787 = vmatmul.bf16.gmra.mxu0 %v2489
        %v2788 = vpop.f32.mrf.mxu0
        %v2789 = vadd.f32 0.0, %v2788
        %v2790 = vpop.f32.mrf.mxu0
        %v2791 = vadd.f32 0.0, %v2790
        %2792 = vmatmul.bf16.gmra.mxu0 %v2491
        %v2793 = vpop.f32.mrf.mxu0
        %v2794 = vadd.f32 0.0, %v2793
        %v2795 = vpop.f32.mrf.mxu0
        %v2796 = vadd.f32 0.0, %v2795
        %2797 = vmatmul.bf16.gmra.mxu0 %v2493
        %v2798 = vpop.f32.mrf.mxu0
        %v2799 = vadd.f32 0.0, %v2798
        %v2800 = vpop.f32.mrf.mxu0
        %v2801 = vadd.f32 0.0, %v2800
        %2802 = vmatmul.bf16.gmra.mxu0 %v2495
        %v2803 = vpop.f32.mrf.mxu0
        %v2804 = vadd.f32 0.0, %v2803
        %v2805 = vpop.f32.mrf.mxu0
        %v2806 = vadd.f32 0.0, %v2805
        %2807 = vmatmul.bf16.gmra.mxu0 %v2497
        %v2808 = vpop.f32.mrf.mxu0
        %v2809 = vadd.f32 0.0, %v2808
        %v2810 = vpop.f32.mrf.mxu0
        %v2811 = vadd.f32 0.0, %v2810
        %2812 = vmatmul.bf16.gmra.mxu0 %v2499
        %v2813 = vpop.f32.mrf.mxu0
        %v2814 = vadd.f32 0.0, %v2813
        %v2815 = vpop.f32.mrf.mxu0
        %v2816 = vadd.f32 0.0, %v2815
        %2817 = vmatmul.bf16.gmra.mxu0 %v2501
        %v2818 = vpop.f32.mrf.mxu0
        %v2819 = vadd.f32 0.0, %v2818
        %v2820 = vpop.f32.mrf.mxu0
        %v2821 = vadd.f32 0.0, %v2820
        %2822 = vmatmul.bf16.gmra.mxu0 %v2503
        %v2823 = vpop.f32.mrf.mxu0
        %v2824 = vadd.f32 0.0, %v2823
        %v2825 = vpop.f32.mrf.mxu0
        %v2826 = vadd.f32 0.0, %v2825
        %2827 = vdwg.mxu0
        %2828 = vmatpush.bf16.msra.mxu0 %v2648
        %2829 = vmatpush.bf16.msra.mxu0 %v2646
        %2830 = vmatpush.bf16.msra.mxu0 %v2644
        %2831 = vmatpush.bf16.msra.mxu0 %v2642
        %2832 = vmatpush.bf16.msra.mxu0 %v2640
        %2833 = vmatpush.bf16.msra.mxu0 %v2638
        %2834 = vmatpush.bf16.msra.mxu0 %v2636
        %2835 = vmatpush.bf16.msra.mxu0 %v2634
        %2836 = vmatmul.bf16.gmra.mxu0 %v2490
        %v2837 = vpop.f32.mrf.mxu0
        %v2838 = vadd.f32 %v2789, %v2837
        %v2839 = vpop.f32.mrf.mxu0
        %v2840 = vadd.f32 %v2791, %v2839
        %2841 = vmatmul.bf16.gmra.mxu0 %v2492
        %v2842 = vpop.f32.mrf.mxu0
        %v2843 = vadd.f32 %v2794, %v2842
        %v2844 = vpop.f32.mrf.mxu0
        %v2845 = vadd.f32 %v2796, %v2844
        %2846 = vmatmul.bf16.gmra.mxu0 %v2494
        %v2847 = vpop.f32.mrf.mxu0
        %v2848 = vadd.f32 %v2799, %v2847
        %v2849 = vpop.f32.mrf.mxu0
        %v2850 = vadd.f32 %v2801, %v2849
        %2851 = vmatmul.bf16.gmra.mxu0 %v2496
        %v2852 = vpop.f32.mrf.mxu0
        %v2853 = vadd.f32 %v2804, %v2852
        %v2854 = vpop.f32.mrf.mxu0
        %v2855 = vadd.f32 %v2806, %v2854
        %2856 = vmatmul.bf16.gmra.mxu0 %v2498
        %v2857 = vpop.f32.mrf.mxu0
        %v2858 = vadd.f32 %v2809, %v2857
        %v2859 = vpop.f32.mrf.mxu0
        %v2860 = vadd.f32 %v2811, %v2859
        %2861 = vmatmul.bf16.gmra.mxu0 %v2500
        %v2862 = vpop.f32.mrf.mxu0
        %v2863 = vadd.f32 %v2814, %v2862
        %v2864 = vpop.f32.mrf.mxu0
        %v2865 = vadd.f32 %v2816, %v2864
        %2866 = vmatmul.bf16.gmra.mxu0 %v2502
        %v2867 = vpop.f32.mrf.mxu0
        %v2868 = vadd.f32 %v2819, %v2867
        %v2869 = vpop.f32.mrf.mxu0
        %v2870 = vadd.f32 %v2821, %v2869
        %2871 = vmatmul.bf16.gmra.mxu0 %v2504
        %v2872 = vpop.f32.mrf.mxu0
        %v2873 = vadd.f32 %v2824, %v2872
        %v2874 = vpop.f32.mrf.mxu0
        %v2875 = vadd.f32 %v2826, %v2874
        %2876 = vdwg.mxu0
        %v2877 = vpack.c.bf16 %v2838, %v2740
        %v2878 = vpack.c.bf16 %v2840, %v2742
        %v2879 = vpack.c.bf16 %v2843, %v2745
        %v2880 = vpack.c.bf16 %v2845, %v2747
        %v2881 = vpack.c.bf16 %v2848, %v2750
        %v2882 = vpack.c.bf16 %v2850, %v2752
        %v2883 = vpack.c.bf16 %v2853, %v2755
        %v2884 = vpack.c.bf16 %v2855, %v2757
        %v2885 = vpack.c.bf16 %v2858, %v2760
        %v2886 = vpack.c.bf16 %v2860, %v2762
        %v2887 = vpack.c.bf16 %v2863, %v2765
        %v2888 = vpack.c.bf16 %v2865, %v2767
        %v2889 = vpack.c.bf16 %v2868, %v2770
        %v2890 = vpack.c.bf16 %v2870, %v2772
        %v2891 = vpack.c.bf16 %v2873, %v2775
        %v2892 = vpack.c.bf16 %v2875, %v2777
        %v2893 = vld [vmem:[%s5] sm:$0x3]
        %v2895 = vperm.slane %v2893, 0
        %v2896 = vperm.slane %v2893, 1
        %v2899 = vpack.c.bf16 %v2896, %v2895
        %v2901 = vunpack.c.l.b16 %v2899
        %v2902 = vunpack.c.h.b16 %v2899
        %v2903 = vpack.c.b16 %v2901, %v2901
        %v2904 = vpack.c.b16 %v2902, %v2902
        %v2906 = vpack.i.b16 %v2903, %v2903
        %v2908 = vperm.slane %v2906, 0
        %v2910 = vpack.i.b16 %v2904, %v2904
        %v2912 = vperm.slane %v2910, 0
        %v2913 = vunpack.c.l.bf16 %v2877
        %v2914 = vunpack.c.h.bf16 %v2877
        %v2915 = vunpack.c.l.bf16 %v2878
        %v2916 = vunpack.c.h.bf16 %v2878
        %v2917 = vunpack.c.l.bf16 %v2879
        %v2918 = vunpack.c.h.bf16 %v2879
        %v2919 = vunpack.c.l.bf16 %v2880
        %v2920 = vunpack.c.h.bf16 %v2880
        %v2921 = vunpack.c.l.bf16 %v2881
        %v2922 = vunpack.c.h.bf16 %v2881
        %v2923 = vunpack.c.l.bf16 %v2882
        %v2924 = vunpack.c.h.bf16 %v2882
        %v2925 = vunpack.c.l.bf16 %v2883
        %v2926 = vunpack.c.h.bf16 %v2883
        %v2927 = vunpack.c.l.bf16 %v2884
        %v2928 = vunpack.c.h.bf16 %v2884
        %v2929 = vunpack.c.l.bf16 %v2885
        %v2930 = vunpack.c.h.bf16 %v2885
        %v2931 = vunpack.c.l.bf16 %v2886
        %v2932 = vunpack.c.h.bf16 %v2886
        %v2933 = vunpack.c.l.bf16 %v2887
        %v2934 = vunpack.c.h.bf16 %v2887
        %v2935 = vunpack.c.l.bf16 %v2888
        %v2936 = vunpack.c.h.bf16 %v2888
        %v2937 = vunpack.c.l.bf16 %v2889
        %v2938 = vunpack.c.h.bf16 %v2889
        %v2939 = vunpack.c.l.bf16 %v2890
        %v2940 = vunpack.c.h.bf16 %v2890
        %v2941 = vunpack.c.l.bf16 %v2891
        %v2942 = vunpack.c.h.bf16 %v2891
        %v2943 = vunpack.c.l.bf16 %v2892
        %v2944 = vunpack.c.h.bf16 %v2892
        %v2945 = vunpack.c.l.bf16 %v2908
        %v2946 = vunpack.c.l.bf16 %v2912
        %v2947 = vadd.f32 %v2913, %v2945
        %v2948 = vadd.f32 %v2914, %v2946
        %v2949 = vadd.f32 %v2915, %v2945
        %v2950 = vadd.f32 %v2916, %v2946
        %v2951 = vadd.f32 %v2917, %v2945
        %v2952 = vadd.f32 %v2918, %v2946
        %v2953 = vadd.f32 %v2919, %v2945
        %v2954 = vadd.f32 %v2920, %v2946
        %v2955 = vadd.f32 %v2921, %v2945
        %v2956 = vadd.f32 %v2922, %v2946
        %v2957 = vadd.f32 %v2923, %v2945
        %v2958 = vadd.f32 %v2924, %v2946
        %v2959 = vadd.f32 %v2925, %v2945
        %v2960 = vadd.f32 %v2926, %v2946
        %v2961 = vadd.f32 %v2927, %v2945
        %v2962 = vadd.f32 %v2928, %v2946
        %v2963 = vadd.f32 %v2929, %v2945
        %v2964 = vadd.f32 %v2930, %v2946
        %v2965 = vadd.f32 %v2931, %v2945
        %v2966 = vadd.f32 %v2932, %v2946
        %v2967 = vadd.f32 %v2933, %v2945
        %v2968 = vadd.f32 %v2934, %v2946
        %v2969 = vadd.f32 %v2935, %v2945
        %v2970 = vadd.f32 %v2936, %v2946
        %v2971 = vadd.f32 %v2937, %v2945
        %v2972 = vadd.f32 %v2938, %v2946
        %v2973 = vadd.f32 %v2939, %v2945
        %v2974 = vadd.f32 %v2940, %v2946
        %v2975 = vadd.f32 %v2941, %v2945
        %v2976 = vadd.f32 %v2942, %v2946
        %v2977 = vadd.f32 %v2943, %v2945
        %v2978 = vadd.f32 %v2944, %v2946
        %v2979 = vpack.c.bf16 %v2948, %v2947
        %v2980 = vpack.c.bf16 %v2950, %v2949
        %v2981 = vpack.c.bf16 %v2952, %v2951
        %v2982 = vpack.c.bf16 %v2954, %v2953
        %v2983 = vpack.c.bf16 %v2956, %v2955
        %v2984 = vpack.c.bf16 %v2958, %v2957
        %v2985 = vpack.c.bf16 %v2960, %v2959
        %v2986 = vpack.c.bf16 %v2962, %v2961
        %v2987 = vpack.c.bf16 %v2964, %v2963
        %v2988 = vpack.c.bf16 %v2966, %v2965
        %v2989 = vpack.c.bf16 %v2968, %v2967
        %v2990 = vpack.c.bf16 %v2970, %v2969
        %v2991 = vpack.c.bf16 %v2972, %v2971
        %v2992 = vpack.c.bf16 %v2974, %v2973
        %v2993 = vpack.c.bf16 %v2976, %v2975
        %v2994 = vpack.c.bf16 %v2978, %v2977
        %v2995 = vunpack.c.l.bf16 %v2979
        %v2996 = vunpack.c.h.bf16 %v2979
        %v2997 = vunpack.c.l.bf16 %v2980
        %v2998 = vunpack.c.h.bf16 %v2980
        %v2999 = vunpack.c.l.bf16 %v2981
        %v3000 = vunpack.c.h.bf16 %v2981
        %v3001 = vunpack.c.l.bf16 %v2982
        %v3002 = vunpack.c.h.bf16 %v2982
        %v3003 = vunpack.c.l.bf16 %v2983
        %v3004 = vunpack.c.h.bf16 %v2983
        %v3005 = vunpack.c.l.bf16 %v2984
        %v3006 = vunpack.c.h.bf16 %v2984
        %v3007 = vunpack.c.l.bf16 %v2985
        %v3008 = vunpack.c.h.bf16 %v2985
        %v3009 = vunpack.c.l.bf16 %v2986
        %v3010 = vunpack.c.h.bf16 %v2986
        %v3011 = vunpack.c.l.bf16 %v2987
        %v3012 = vunpack.c.h.bf16 %v2987
        %v3013 = vunpack.c.l.bf16 %v2988
        %v3014 = vunpack.c.h.bf16 %v2988
        %v3015 = vunpack.c.l.bf16 %v2989
        %v3016 = vunpack.c.h.bf16 %v2989
        %v3017 = vunpack.c.l.bf16 %v2990
        %v3018 = vunpack.c.h.bf16 %v2990
        %v3019 = vunpack.c.l.bf16 %v2991
        %v3020 = vunpack.c.h.bf16 %v2991
        %v3021 = vunpack.c.l.bf16 %v2992
        %v3022 = vunpack.c.h.bf16 %v2992
        %v3023 = vunpack.c.l.bf16 %v2993
        %v3024 = vunpack.c.h.bf16 %v2993
        %v3025 = vunpack.c.l.bf16 %v2994
        %v3026 = vunpack.c.h.bf16 %v2994
        %vm3027 = vcmp.ge.f32.partialorder %v2995, 0.0
        %vm3028 = vcmp.ge.f32.partialorder %v2996, 0.0
        %vm3029 = vcmp.ge.f32.partialorder %v2997, 0.0
        %vm3030 = vcmp.ge.f32.partialorder %v2998, 0.0
        %vm3031 = vcmp.ge.f32.partialorder %v2999, 0.0
        %vm3032 = vcmp.ge.f32.partialorder %v3000, 0.0
        %vm3033 = vcmp.ge.f32.partialorder %v3001, 0.0
        %vm3034 = vcmp.ge.f32.partialorder %v3002, 0.0
        %vm3035 = vcmp.ge.f32.partialorder %v3003, 0.0
        %vm3036 = vcmp.ge.f32.partialorder %v3004, 0.0
        %vm3037 = vcmp.ge.f32.partialorder %v3005, 0.0
        %vm3038 = vcmp.ge.f32.partialorder %v3006, 0.0
        %vm3039 = vcmp.ge.f32.partialorder %v3007, 0.0
        %vm3040 = vcmp.ge.f32.partialorder %v3008, 0.0
        %vm3041 = vcmp.ge.f32.partialorder %v3009, 0.0
        %vm3042 = vcmp.ge.f32.partialorder %v3010, 0.0
        %vm3043 = vcmp.ge.f32.partialorder %v3011, 0.0
        %vm3044 = vcmp.ge.f32.partialorder %v3012, 0.0
        %vm3045 = vcmp.ge.f32.partialorder %v3013, 0.0
        %vm3046 = vcmp.ge.f32.partialorder %v3014, 0.0
        %vm3047 = vcmp.ge.f32.partialorder %v3015, 0.0
        %vm3048 = vcmp.ge.f32.partialorder %v3016, 0.0
        %vm3049 = vcmp.ge.f32.partialorder %v3017, 0.0
        %vm3050 = vcmp.ge.f32.partialorder %v3018, 0.0
        %vm3051 = vcmp.ge.f32.partialorder %v3019, 0.0
        %vm3052 = vcmp.ge.f32.partialorder %v3020, 0.0
        %vm3053 = vcmp.ge.f32.partialorder %v3021, 0.0
        %vm3054 = vcmp.ge.f32.partialorder %v3022, 0.0
        %vm3055 = vcmp.ge.f32.partialorder %v3023, 0.0
        %vm3056 = vcmp.ge.f32.partialorder %v3024, 0.0
        %vm3057 = vcmp.ge.f32.partialorder %v3025, 0.0
        %vm3058 = vcmp.ge.f32.partialorder %v3026, 0.0
        %s3059 = sshll.u32 %s431, 16
        %s3060 = sor.u32 %s431, %s3059
        %v3061 = vstv %s3060
        %v3063 = vunpack.c.l.bf16 %v3061
        %v3064 = vmul.f32 %v3063, %v2995
        %v3065 = vmul.f32 %v3063, %v2996
        %v3066 = vmul.f32 %v3063, %v2997
        %v3067 = vmul.f32 %v3063, %v2998
        %v3068 = vmul.f32 %v3063, %v2999
        %v3069 = vmul.f32 %v3063, %v3000
        %v3070 = vmul.f32 %v3063, %v3001
        %v3071 = vmul.f32 %v3063, %v3002
        %v3072 = vmul.f32 %v3063, %v3003
        %v3073 = vmul.f32 %v3063, %v3004
        %v3074 = vmul.f32 %v3063, %v3005
        %v3075 = vmul.f32 %v3063, %v3006
        %v3076 = vmul.f32 %v3063, %v3007
        %v3077 = vmul.f32 %v3063, %v3008
        %v3078 = vmul.f32 %v3063, %v3009
        %v3079 = vmul.f32 %v3063, %v3010
        %v3080 = vmul.f32 %v3063, %v3011
        %v3081 = vmul.f32 %v3063, %v3012
        %v3082 = vmul.f32 %v3063, %v3013
        %v3083 = vmul.f32 %v3063, %v3014
        %v3084 = vmul.f32 %v3063, %v3015
        %v3085 = vmul.f32 %v3063, %v3016
        %v3086 = vmul.f32 %v3063, %v3017
        %v3087 = vmul.f32 %v3063, %v3018
        %v3088 = vmul.f32 %v3063, %v3019
        %v3089 = vmul.f32 %v3063, %v3020
        %v3090 = vmul.f32 %v3063, %v3021
        %v3091 = vmul.f32 %v3063, %v3022
        %v3092 = vmul.f32 %v3063, %v3023
        %v3093 = vmul.f32 %v3063, %v3024
        %v3094 = vmul.f32 %v3063, %v3025
        %v3095 = vmul.f32 %v3063, %v3026
        %v3096 = vpack.c.bf16 %v3065, %v3064
        %v3097 = vpack.c.bf16 %v3067, %v3066
        %v3098 = vpack.c.bf16 %v3069, %v3068
        %v3099 = vpack.c.bf16 %v3071, %v3070
        %v3100 = vpack.c.bf16 %v3073, %v3072
        %v3101 = vpack.c.bf16 %v3075, %v3074
        %v3102 = vpack.c.bf16 %v3077, %v3076
        %v3103 = vpack.c.bf16 %v3079, %v3078
        %v3104 = vpack.c.bf16 %v3081, %v3080
        %v3105 = vpack.c.bf16 %v3083, %v3082
        %v3106 = vpack.c.bf16 %v3085, %v3084
        %v3107 = vpack.c.bf16 %v3087, %v3086
        %v3108 = vpack.c.bf16 %v3089, %v3088
        %v3109 = vpack.c.bf16 %v3091, %v3090
        %v3110 = vpack.c.bf16 %v3093, %v3092
        %v3111 = vpack.c.bf16 %v3095, %v3094
        %vm3112 = vmpackc.low %vm3028, %vm3027
        %vm3113 = vmpackc.low %vm3030, %vm3029
        %vm3114 = vmpackc.low %vm3032, %vm3031
        %vm3115 = vmpackc.low %vm3034, %vm3033
        %vm3116 = vmpackc.low %vm3036, %vm3035
        %vm3117 = vmpackc.low %vm3038, %vm3037
        %vm3118 = vmpackc.low %vm3040, %vm3039
        %vm3119 = vmpackc.low %vm3042, %vm3041
        %vm3120 = vmpackc.low %vm3044, %vm3043
        %vm3121 = vmpackc.low %vm3046, %vm3045
        %vm3122 = vmpackc.low %vm3048, %vm3047
        %vm3123 = vmpackc.low %vm3050, %vm3049
        %vm3124 = vmpackc.low %vm3052, %vm3051
        %vm3125 = vmpackc.low %vm3054, %vm3053
        %vm3126 = vmpackc.low %vm3056, %vm3055
        %vm3127 = vmpackc.low %vm3058, %vm3057
        %v3128 = vsel %vm3112, %v2979, %v3096
        %v3129 = vsel %vm3113, %v2980, %v3097
        %v3130 = vsel %vm3114, %v2981, %v3098
        %v3131 = vsel %vm3115, %v2982, %v3099
        %v3132 = vsel %vm3116, %v2983, %v3100
        %v3133 = vsel %vm3117, %v2984, %v3101
        %v3134 = vsel %vm3118, %v2985, %v3102
        %v3135 = vsel %vm3119, %v2986, %v3103
        %v3136 = vsel %vm3120, %v2987, %v3104
        %v3137 = vsel %vm3121, %v2988, %v3105
        %v3138 = vsel %vm3122, %v2989, %v3106
        %v3139 = vsel %vm3123, %v2990, %v3107
        %v3140 = vsel %vm3124, %v2991, %v3108
        %v3141 = vsel %vm3125, %v2992, %v3109
        %v3142 = vsel %vm3126, %v2993, %v3110
        %v3143 = vsel %vm3127, %v2994, %v3111
        %v3144 = vld [vmem:[#allocation10] sm:$0xf]
        %v3145 = vld [vmem:[#allocation10 + $0x4] sm:$0xf]
        %v3146 = vld [vmem:[#allocation10 + $0x8] sm:$0xf]
        %v3147 = vld [vmem:[#allocation10 + $0xc] sm:$0xf]
        %v3148 = vld [vmem:[#allocation10 + $0x10] sm:$0xf]
        %v3149 = vld [vmem:[#allocation10 + $0x14] sm:$0xf]
        %v3150 = vld [vmem:[#allocation10 + $0x18] sm:$0xf]
        %v3151 = vld [vmem:[#allocation10 + $0x1c] sm:$0xf]
        %v3152 = vld [vmem:[#allocation10 + $0x20] sm:$0xf]
        %v3153 = vld [vmem:[#allocation10 + $0x24] sm:$0xf]
        %v3154 = vld [vmem:[#allocation10 + $0x28] sm:$0xf]
        %v3155 = vld [vmem:[#allocation10 + $0x2c] sm:$0xf]
        %v3156 = vld [vmem:[#allocation10 + $0x30] sm:$0xf]
        %v3157 = vld [vmem:[#allocation10 + $0x34] sm:$0xf]
        %v3158 = vld [vmem:[#allocation10 + $0x38] sm:$0xf]
        %v3159 = vld [vmem:[#allocation10 + $0x3c] sm:$0xf]
        %v3160 = vld [vmem:[#allocation10 + $0x40] sm:$0xf]
        %v3161 = vld [vmem:[#allocation10 + $0x44] sm:$0xf]
        %v3162 = vld [vmem:[#allocation10 + $0x48] sm:$0xf]
        %v3163 = vld [vmem:[#allocation10 + $0x4c] sm:$0xf]
        %v3164 = vld [vmem:[#allocation10 + $0x50] sm:$0xf]
        %v3165 = vld [vmem:[#allocation10 + $0x54] sm:$0xf]
        %v3166 = vld [vmem:[#allocation10 + $0x58] sm:$0xf]
        %v3167 = vld [vmem:[#allocation10 + $0x5c] sm:$0xf]
        %v3168 = vld [vmem:[#allocation10 + $0x60] sm:$0xf]
        %v3169 = vld [vmem:[#allocation10 + $0x64] sm:$0xf]
        %v3170 = vld [vmem:[#allocation10 + $0x68] sm:$0xf]
        %v3171 = vld [vmem:[#allocation10 + $0x6c] sm:$0xf]
        %v3172 = vld [vmem:[#allocation10 + $0x70] sm:$0xf]
        %v3173 = vld [vmem:[#allocation10 + $0x74] sm:$0xf]
        %v3174 = vld [vmem:[#allocation10 + $0x78] sm:$0xf]
        %v3175 = vld [vmem:[#allocation10 + $0x7c] sm:$0xf]
        %v3176 = vld [vmem:[%s7] sm:$0x1]
        %v3178 = vperm.slane %v3176, 0
        %v3196 = vunpack.c.l.b16 %v3128
        %v3197 = vunpack.c.h.b16 %v3128
        %v3198 = vunpack.c.l.b16 %v3129
        %v3199 = vunpack.c.h.b16 %v3129
        %v3200 = vunpack.c.l.b16 %v3130
        %v3201 = vunpack.c.h.b16 %v3130
        %v3202 = vunpack.c.l.b16 %v3131
        %v3203 = vunpack.c.h.b16 %v3131
        %v3204 = vunpack.c.l.b16 %v3132
        %v3205 = vunpack.c.h.b16 %v3132
        %v3206 = vunpack.c.l.b16 %v3133
        %v3207 = vunpack.c.h.b16 %v3133
        %v3208 = vunpack.c.l.b16 %v3134
        %v3209 = vunpack.c.h.b16 %v3134
        %v3210 = vunpack.c.l.b16 %v3135
        %v3211 = vunpack.c.h.b16 %v3135
        %v3212 = vunpack.c.l.b16 %v3136
        %v3213 = vunpack.c.h.b16 %v3136
        %v3214 = vunpack.c.l.b16 %v3137
        %v3215 = vunpack.c.h.b16 %v3137
        %v3216 = vunpack.c.l.b16 %v3138
        %v3217 = vunpack.c.h.b16 %v3138
        %v3218 = vunpack.c.l.b16 %v3139
        %v3219 = vunpack.c.h.b16 %v3139
        %v3220 = vunpack.c.l.b16 %v3140
        %v3221 = vunpack.c.h.b16 %v3140
        %v3222 = vunpack.c.l.b16 %v3141
        %v3223 = vunpack.c.h.b16 %v3141
        %v3224 = vunpack.c.l.b16 %v3142
        %v3225 = vunpack.c.h.b16 %v3142
        %v3226 = vunpack.c.l.b16 %v3143
        %v3227 = vunpack.c.h.b16 %v3143
        %v3228 = vpack.c.b16 %v3198, %v3196
        %v3229 = vpack.c.b16 %v3199, %v3197
        %v3230 = vpack.c.b16 %v3202, %v3200
        %v3231 = vpack.c.b16 %v3203, %v3201
        %v3232 = vpack.c.b16 %v3206, %v3204
        %v3233 = vpack.c.b16 %v3207, %v3205
        %v3234 = vpack.c.b16 %v3210, %v3208
        %v3235 = vpack.c.b16 %v3211, %v3209
        %v3236 = vpack.c.b16 %v3214, %v3212
        %v3237 = vpack.c.b16 %v3215, %v3213
        %v3238 = vpack.c.b16 %v3218, %v3216
        %v3239 = vpack.c.b16 %v3219, %v3217
        %v3240 = vpack.c.b16 %v3222, %v3220
        %v3241 = vpack.c.b16 %v3223, %v3221
        %v3242 = vpack.c.b16 %v3226, %v3224
        %v3243 = vpack.c.b16 %v3227, %v3225
        %v3292 = vunpack.c.l.b16 %v3144
        %v3293 = vunpack.c.l.b16 %v3145
        %v3294 = vunpack.c.l.b16 %v3146
        %v3295 = vunpack.c.l.b16 %v3147
        %v3296 = vunpack.c.l.b16 %v3148
        %v3297 = vunpack.c.l.b16 %v3149
        %v3298 = vunpack.c.l.b16 %v3150
        %v3299 = vunpack.c.l.b16 %v3151
        %v3300 = vunpack.c.l.b16 %v3152
        %v3301 = vunpack.c.l.b16 %v3153
        %v3302 = vunpack.c.l.b16 %v3154
        %v3303 = vunpack.c.l.b16 %v3155
        %v3304 = vunpack.c.l.b16 %v3156
        %v3305 = vunpack.c.l.b16 %v3157
        %v3306 = vunpack.c.l.b16 %v3158
        %v3307 = vunpack.c.l.b16 %v3159
        %v3308 = vunpack.c.l.b16 %v3160
        %v3309 = vunpack.c.l.b16 %v3161
        %v3310 = vunpack.c.l.b16 %v3162
        %v3311 = vunpack.c.l.b16 %v3163
        %v3312 = vunpack.c.l.b16 %v3164
        %v3313 = vunpack.c.l.b16 %v3165
        %v3314 = vunpack.c.l.b16 %v3166
        %v3315 = vunpack.c.l.b16 %v3167
        %v3316 = vunpack.c.l.b16 %v3168
        %v3317 = vunpack.c.l.b16 %v3169
        %v3318 = vunpack.c.l.b16 %v3170
        %v3319 = vunpack.c.l.b16 %v3171
        %v3320 = vunpack.c.l.b16 %v3172
        %v3321 = vunpack.c.l.b16 %v3173
        %v3322 = vunpack.c.l.b16 %v3174
        %v3323 = vunpack.c.l.b16 %v3175
        %v3324 = vpack.c.b16 %v3293, %v3292
        %v3325 = vpack.c.b16 %v3295, %v3294
        %v3326 = vpack.c.b16 %v3297, %v3296
        %v3327 = vpack.c.b16 %v3299, %v3298
        %v3328 = vpack.c.b16 %v3301, %v3300
        %v3329 = vpack.c.b16 %v3303, %v3302
        %v3330 = vpack.c.b16 %v3305, %v3304
        %v3331 = vpack.c.b16 %v3307, %v3306
        %v3332 = vpack.c.b16 %v3309, %v3308
        %v3333 = vpack.c.b16 %v3311, %v3310
        %v3334 = vpack.c.b16 %v3313, %v3312
        %v3335 = vpack.c.b16 %v3315, %v3314
        %v3336 = vpack.c.b16 %v3317, %v3316
        %v3337 = vpack.c.b16 %v3319, %v3318
        %v3338 = vpack.c.b16 %v3321, %v3320
        %v3339 = vpack.c.b16 %v3323, %v3322
        %3356 = vmatpush.bf16.msra.mxu0 %v3331
        %3357 = vmatpush.bf16.msra.mxu0 %v3330
        %3358 = vmatpush.bf16.msra.mxu0 %v3329
        %3359 = vmatpush.bf16.msra.mxu0 %v3328
        %3360 = vmatpush.bf16.msra.mxu0 %v3327
        %3361 = vmatpush.bf16.msra.mxu0 %v3326
        %3362 = vmatpush.bf16.msra.mxu0 %v3325
        %3363 = vmatpush.bf16.msra.mxu0 %v3324
        %3364 = vmatmul.bf16.gmra.mxu0 %v3228
        %v3365 = vpop.f32.mrf.mxu0
        %v3366 = vadd.f32 %v3178, %v3365
        %v3367 = vpop.f32.mrf.mxu0
        %v3368 = vadd.f32 %v3178, %v3367
        %3369 = vmatmul.bf16.gmra.mxu0 %v3230
        %v3370 = vpop.f32.mrf.mxu0
        %v3371 = vadd.f32 %v3178, %v3370
        %v3372 = vpop.f32.mrf.mxu0
        %v3373 = vadd.f32 %v3178, %v3372
        %3374 = vmatmul.bf16.gmra.mxu0 %v3232
        %v3375 = vpop.f32.mrf.mxu0
        %v3376 = vadd.f32 %v3178, %v3375
        %v3377 = vpop.f32.mrf.mxu0
        %v3378 = vadd.f32 %v3178, %v3377
        %3379 = vmatmul.bf16.gmra.mxu0 %v3234
        %v3380 = vpop.f32.mrf.mxu0
        %v3381 = vadd.f32 %v3178, %v3380
        %v3382 = vpop.f32.mrf.mxu0
        %v3383 = vadd.f32 %v3178, %v3382
        %3384 = vmatmul.bf16.gmra.mxu0 %v3236
        %v3385 = vpop.f32.mrf.mxu0
        %v3386 = vadd.f32 %v3178, %v3385
        %v3387 = vpop.f32.mrf.mxu0
        %v3388 = vadd.f32 %v3178, %v3387
        %3389 = vmatmul.bf16.gmra.mxu0 %v3238
        %v3390 = vpop.f32.mrf.mxu0
        %v3391 = vadd.f32 %v3178, %v3390
        %v3392 = vpop.f32.mrf.mxu0
        %v3393 = vadd.f32 %v3178, %v3392
        %3394 = vmatmul.bf16.gmra.mxu0 %v3240
        %v3395 = vpop.f32.mrf.mxu0
        %v3396 = vadd.f32 %v3178, %v3395
        %v3397 = vpop.f32.mrf.mxu0
        %v3398 = vadd.f32 %v3178, %v3397
        %3399 = vmatmul.bf16.gmra.mxu0 %v3242
        %v3400 = vpop.f32.mrf.mxu0
        %v3401 = vadd.f32 %v3178, %v3400
        %v3402 = vpop.f32.mrf.mxu0
        %v3403 = vadd.f32 %v3178, %v3402
        %3404 = vdwg.mxu0
        %3405 = vmatpush.bf16.msra.mxu0 %v3339
        %3406 = vmatpush.bf16.msra.mxu0 %v3338
        %3407 = vmatpush.bf16.msra.mxu0 %v3337
        %3408 = vmatpush.bf16.msra.mxu0 %v3336
        %3409 = vmatpush.bf16.msra.mxu0 %v3335
        %3410 = vmatpush.bf16.msra.mxu0 %v3334
        %3411 = vmatpush.bf16.msra.mxu0 %v3333
        %3412 = vmatpush.bf16.msra.mxu0 %v3332
        %3413 = vmatmul.bf16.gmra.mxu0 %v3229
        %v3414 = vpop.f32.mrf.mxu0
        %v3415 = vadd.f32 %v3366, %v3414
        %v3416 = vpop.f32.mrf.mxu0
        %v3417 = vadd.f32 %v3368, %v3416
        %3418 = vmatmul.bf16.gmra.mxu0 %v3231
        %v3419 = vpop.f32.mrf.mxu0
        %v3420 = vadd.f32 %v3371, %v3419
        %v3421 = vpop.f32.mrf.mxu0
        %v3422 = vadd.f32 %v3373, %v3421
        %3423 = vmatmul.bf16.gmra.mxu0 %v3233
        %v3424 = vpop.f32.mrf.mxu0
        %v3425 = vadd.f32 %v3376, %v3424
        %v3426 = vpop.f32.mrf.mxu0
        %v3427 = vadd.f32 %v3378, %v3426
        %3428 = vmatmul.bf16.gmra.mxu0 %v3235
        %v3429 = vpop.f32.mrf.mxu0
        %v3430 = vadd.f32 %v3381, %v3429
        %v3431 = vpop.f32.mrf.mxu0
        %v3432 = vadd.f32 %v3383, %v3431
        %3433 = vmatmul.bf16.gmra.mxu0 %v3237
        %v3434 = vpop.f32.mrf.mxu0
        %v3435 = vadd.f32 %v3386, %v3434
        %v3436 = vpop.f32.mrf.mxu0
        %v3437 = vadd.f32 %v3388, %v3436
        %3438 = vmatmul.bf16.gmra.mxu0 %v3239
        %v3439 = vpop.f32.mrf.mxu0
        %v3440 = vadd.f32 %v3391, %v3439
        %v3441 = vpop.f32.mrf.mxu0
        %v3442 = vadd.f32 %v3393, %v3441
        %3443 = vmatmul.bf16.gmra.mxu0 %v3241
        %v3444 = vpop.f32.mrf.mxu0
        %v3445 = vadd.f32 %v3396, %v3444
        %v3446 = vpop.f32.mrf.mxu0
        %v3447 = vadd.f32 %v3398, %v3446
        %3448 = vmatmul.bf16.gmra.mxu0 %v3243
        %v3449 = vpop.f32.mrf.mxu0
        %v3450 = vadd.f32 %v3401, %v3449
        %v3451 = vpop.f32.mrf.mxu0
        %v3452 = vadd.f32 %v3403, %v3451
        %3453 = vdwg.mxu0
        %3454 = vst [vmem:[%s398] sm:$0xff] %v3415
        %3455 = vst [vmem:[%s398 + $0x8] sm:$0xff] %v3417
        %3456 = vst [vmem:[%s398 + $0x10] sm:$0xff] %v3420
        %3457 = vst [vmem:[%s398 + $0x18] sm:$0xff] %v3422
        %3458 = vst [vmem:[%s398 + $0x20] sm:$0xff] %v3425
        %3459 = vst [vmem:[%s398 + $0x28] sm:$0xff] %v3427
        %3460 = vst [vmem:[%s398 + $0x30] sm:$0xff] %v3430
        %3461 = vst [vmem:[%s398 + $0x38] sm:$0xff] %v3432
        %3462 = vst [vmem:[%s398 + $0x40] sm:$0xff] %v3435
        %3463 = vst [vmem:[%s398 + $0x48] sm:$0xff] %v3437
        %3464 = vst [vmem:[%s398 + $0x50] sm:$0xff] %v3440
        %3465 = vst [vmem:[%s398 + $0x58] sm:$0xff] %v3442
        %3466 = vst [vmem:[%s398 + $0x60] sm:$0xff] %v3445
        %3467 = vst [vmem:[%s398 + $0x68] sm:$0xff] %v3447
        %3468 = vst [vmem:[%s398 + $0x70] sm:$0xff] %v3450
        %3469 = vst [vmem:[%s398 + $0x78] sm:$0xff] %v3452
        %s3470 = sand.u32 %s209, 1
        %s3471 = scalar_lea.sflag [#allocation4], %s3470
        %s3472 = sand.u32 %s209, 1
        %s3473 = smul.addr %s3472, 128
        %s3474 = scalar_lea.vmem [#allocation12], %s3473
        // Predicated region
        $region73: #{tpu_custom_call.1} parent=51 // pred_check
          %p3475 = pneg %p219
        $region74: #{tpu_custom_call.1} parent=51 // pred_check_branch
          %3477 = sbr.rel (%p3475) target = $region76
        $region75: #{tpu_custom_call.1} parent=51 // pred_region
          %s3478 = smul.u32 16, %s28
          %s3479 = ssub.s32 25, %s3478
          %p3480 = scmp.lt.s32.totalorder %s3479, 16
          %s3481 = scalar_select %p3480, %s3479, 16
          %s3482 = smul.u32 8, %s3481
          %s3483 = ssub.s32 128, %s3482
          %s3484 = sshll.u32 %s3483, 4
          %3485 = vsyncadd %s3471, %s3484
          %p3486 = scmp.ne.s32.totalorder 0, %s3482
          %s3487 = smul.addr %s3478, 8
          %s3488 = scalar_lea.hbm %s8, %s3487
          %s3489 = smul.u32 8, %s3481
          %s3490 = sshll.u32 %s3474, 4
          %s3491 = int_to_ptr.vmem [resolvable:$true] %s3490
          %s3492 = sshll.u32 %s3488, 4
          %s3493 = int_to_ptr.hbm [resolvable:$true] %s3492
          %s3494 = sshll.u32 %s3489, 4
          %3498 = dma.vmem_to_hbm [thread:$0]  (%p3486), %s3491, %s3494, %s3493, %s3471, 128, 128, 8
        $region76: #{tpu_custom_call.1} parent=51 // pred_fallthru
          _
      $region52: #{tpu_custom_call.1} parent=5 // pred_fallthru
        _
      %p3499 = scmp.le.s32.totalorder 2, %s23
      // Predicated region
      $region77: #{tpu_custom_call.1} parent=5 // pred_check
        %p3500 = pneg %p3499
      $region78: #{tpu_custom_call.1} parent=5 // pred_check_branch
        %3502 = sbr.rel (%p3500) target = $region80
      $region79: #{tpu_custom_call.1} parent=5 // pred_region
        %s3503 = ssub.s32 %s23, 2
        // Predicated region
        $region81: #{tpu_custom_call.1} parent=79 // pred_check
          %p3504 = pneg %p225
        $region82: #{tpu_custom_call.1} parent=79 // pred_check_branch
          %3506 = sbr.rel (%p3504) target = $region84
        $region83: #{tpu_custom_call.1} parent=79 // pred_region
          %s3507 = sand.u32 %s210, 1
          %s3508 = scalar_lea.sflag [#allocation4], %s3507
          %s3509 = sand.u32 %s210, 1
          %s3510 = smul.addr %s3509, 128
          %s3511 = scalar_lea.vmem [#allocation12], %s3510
          %3513 = dma.done %s3508, 2048
        $region84: #{tpu_custom_call.1} parent=79 // pred_fallthru
          _
      $region80: #{tpu_custom_call.1} parent=5 // pred_fallthru
        _
    $region6: #{tpu_custom_call.1} parent=1 // loop_footer
      %s27 = sadd.s32 1, %s23
    $region7: #{tpu_custom_call.1} parent=1 // loop_footer_branch
      %22 = sbr.rel target = $region3
    $region8: #{tpu_custom_call.1} parent=1 // loop_exit
      _
    %3514 = vsyncpa [#allocation3], 1
    %s3515 = scalar_lea.sflag [#allocation3], 1
    %3516 = vsyncpa %s3515, 1
    %3517 = vsyncpa [#allocation8], 1
    %3518 = vsyncpa [#allocation11], 1
    %3519 = vsyncpa [#allocation4], 1
    %s3520 = scalar_lea.sflag [#allocation4], 1
    %3521 = vsyncpa %s3520, 1
    %3522 = vsyncpa [#allocation5], 1
    %s3523 = scalar_lea.sflag [#allocation5], 1
    %3524 = vsyncpa %s3523, 1

// kernel: tpu_custom_call.1
$region0: #{tpu_custom_call.1}
  #allocation0 [shape = 'u32[]', space=smem, size = 0x4, offset = 0x4, fixed_abs, tag = 'smem constant byte address 0x4 - core index']
  #allocation1 [shape = 'u32[72,128]{1,0:T(1,128)}', space=vmem, size = 0x9000, scoped, tag = 'internal scratch']
  %s0 = inlined_call_operand.hbm [shape: f32[2], index: 0, kind: input, shape index: {}]
  %s1 = inlined_call_operand.hbm [shape: bf16[200,896], index: 1, kind: input, shape index: {}]
  %s2 = inlined_call_operand.hbm [shape: bf16[896,256], index: 2, kind: input, shape index: {}]
  %s3 = inlined_call_operand.vmem [shape: f32[1,256], index: 3, kind: input, shape index: {}]
  %s4 = inlined_call_operand.hbm [shape: bf16[256,256], index: 4, kind: input, shape index: {}]
  %s5 = inlined_call_operand.vmem [shape: f32[1,256], index: 5, kind: input, shape index: {}]
  %s6 = inlined_call_operand.hbm [shape: bf16[256,128], index: 6, kind: input, shape index: {}]
  %s7 = inlined_call_operand.vmem [shape: f32[1,128], index: 7, kind: input, shape index: {}]
  %s8 = inlined_call_operand.hbm [shape: f32[200,128], index: 8, kind: output, shape index: {}]
  %s9 = sld [smem:[#allocation0]]
  $region85: #{tpu_custom_call.1} parent=0
    _
  %s11 = ssub.s32 1, %s9
  %s12 = scalar_select 0, %s11, %s9
  $region1: #{tpu_custom_call.1} parent=0
    #allocation2 [shape = 'u8[512]{0}', space=smem, size = 0x200, scoped, tag = 'input window, operand 0, single buffered']
    #allocation3 [shape = 's32[2]{0}', space=sflag, size = 0x8, scoped, tag = 'scoped memory for tpu_custom_call.1']
    #allocation4 [shape = 's32[2]{0}', space=sflag, size = 0x8, scoped, tag = 'scoped memory for tpu_custom_call.1']
    #allocation5 [shape = 's32[2]{0}', space=sflag, size = 0x8, scoped, tag = 'scoped memory for tpu_custom_call.1']
    #allocation6 [shape = 'u8[458752]{0}', space=vmem, size = 0x70000, scoped, tag = 'input window, operand 1']
    #allocation7 [shape = 'u8[458752]{0}', space=vmem, size = 0x70000, scoped, tag = 'input window, operand 2, single buffered']
    #allocation8 [shape = 's32[1]{0}', space=sflag, size = 0x4, scoped, tag = 'scoped memory for tpu_custom_call.1']
    #allocation9 [shape = 'u8[131072]{0}', space=vmem, size = 0x20000, scoped, tag = 'input window, operand 4, single buffered']
    #allocation10 [shape = 'u8[65536]{0}', space=vmem, size = 0x10000, scoped, tag = 'input window, operand 6, single buffered']
    #allocation11 [shape = 's32[1]{0}', space=sflag, size = 0x4, scoped, tag = 'scoped memory for tpu_custom_call.1']
    #allocation12 [shape = 'u8[131072]{0}', space=vmem, size = 0x20000, scoped, tag = 'output window, operand 0']
    %13 = vsyncpa [#allocation5], 0
    %14 = vsyncpa [#allocation3], 0
    %s15 = scalar_lea.sflag [#allocation3], 1
    %16 = vsyncpa %s15, 0
    %17 = vsyncpa [#allocation8], 0
    %18 = vsyncpa [#allocation11], 0
    %19 = vsyncpa [#allocation4], 0
    %s20 = scalar_lea.sflag [#allocation4], 1
    %21 = vsyncpa %s20, 0
    loop: start=0, step=1, limit=4
    $region2: #{tpu_custom_call.1} parent=1 // loop_pre_header
      _
    $region3: #{tpu_custom_call.1} parent=1 // loop_header
      %s23 = sphi 0, %s27
      %p24 = scmp.ge.s32.totalorder %s23, 4
      %s31 = sphi 0, %s31
      %s33 = sphi 0, %s31
      %s34 = sphi 0, %s33
      %s48 = sphi 0, %s34
      %s54 = sphi 0, %s56
      %s57 = sphi 0, %s54
      %s58 = sphi 0, %s57
      %s74 = sphi 0, %s58
      %s78 = sphi 0, %s78
      %s80 = sphi 0, %s78
      %s81 = sphi 0, %s80
      %s95 = sphi 0, %s81
      %s99 = sphi 0, %s99
      %s101 = sphi 0, %s99
      %s102 = sphi 0, %s101
      %s116 = sphi 0, %s102
      %s120 = sphi 0, %s120
      %s122 = sphi 0, %s120
      %s123 = sphi 0, %s122
      %s137 = sphi 0, %s123
      %s141 = sphi 0, %s141
      %s143 = sphi 0, %s141
      %s144 = sphi 0, %s143
      %s158 = sphi 0, %s144
      %s162 = sphi 0, %s162
      %s164 = sphi 0, %s162
      %s165 = sphi 0, %s164
      %s179 = sphi 0, %s165
      %s183 = sphi 0, %s183
      %s185 = sphi 0, %s183
      %s186 = sphi 0, %s185
      %s200 = sphi 0, %s186
      %s206 = sphi 0, %s208
      %s209 = sphi 0, %s206
      %s210 = sphi 0, %s209
      %s226 = sphi 0, %s210
    $region4: #{tpu_custom_call.1} parent=1 // loop_header_branch
      %26 = sbr.rel (%p24) target = $region8
    $region5: #{tpu_custom_call.1} parent=1 // loop_body
      %s28 = ssub.s32 %s23, 1
      %s29 = ssub.s32 %s23, 2
      %s30 = sadd.s32 %s23, 1
      %s32 = sadd.s32 %s31, 1
      %p35 = scmp.eq.s32.totalorder %s23, 1
      %p36 = scmp.ne.s32.totalorder %s31, %s33
      %p37 = scmp.eq.s32.totalorder %s23, 0
      %p38 = por %p36, %p37
      %p39 = scmp.ne.s32.totalorder %s31, %s33
      %p40 = scmp.eq.s32.totalorder %s28, 1
      %p41 = por %p39, %p40
      %p42 = scmp.ne.s32.totalorder %s33, %s34
      %p43 = scmp.eq.s32.totalorder %s28, 0
      %p44 = por %p42, %p43
      %p45 = scmp.ne.s32.totalorder %s33, %s34
      %p46 = scmp.eq.s32.totalorder %s29, 1
      %p47 = por %p45, %p46
      %p49 = scmp.ne.s32.totalorder %s34, %s48
      %p50 = scmp.eq.s32.totalorder %s29, 0
      %p51 = por %p49, %p50
      %s52 = ssub.s32 %s23, %s30
      %p53 = scmp.eq.s32.totalorder %s52, 0
      %s55 = sadd.s32 %s54, 1
      %s56 = scalar_select %p53, %s54, %s55
      %p59 = pneg %p53
      %p60 = scmp.eq.s32.totalorder %s23, 1
      %p61 = por %p59, %p60
      %p62 = scmp.ne.s32.totalorder %s54, %s57
      %p63 = scmp.eq.s32.totalorder %s23, 0
      %p64 = por %p62, %p63
      %p65 = scmp.ne.s32.totalorder %s54, %s57
      %p66 = scmp.eq.s32.totalorder %s28, 1
      %p67 = por %p65, %p66
      %p68 = scmp.ne.s32.totalorder %s57, %s58
      %p69 = scmp.eq.s32.totalorder %s28, 0
      %p70 = por %p68, %p69
      %p71 = scmp.ne.s32.totalorder %s57, %s58
      %p72 = scmp.eq.s32.totalorder %s29, 1
      %p73 = por %p71, %p72
      %p75 = scmp.ne.s32.totalorder %s58, %s74
      %p76 = scmp.eq.s32.totalorder %s29, 0
      %p77 = por %p75, %p76
      %s79 = sadd.s32 %s78, 1
      %p82 = scmp.eq.s32.totalorder %s23, 1
      %p83 = scmp.ne.s32.totalorder %s78, %s80
      %p84 = scmp.eq.s32.totalorder %s23, 0
      %p85 = por %p83, %p84
      %p86 = scmp.ne.s32.totalorder %s78, %s80
      %p87 = scmp.eq.s32.totalorder %s28, 1
      %p88 = por %p86, %p87
      %p89 = scmp.ne.s32.totalorder %s80, %s81
      %p90 = scmp.eq.s32.totalorder %s28, 0
      %p91 = por %p89, %p90
      %p92 = scmp.ne.s32.totalorder %s80, %s81
      %p93 = scmp.eq.s32.totalorder %s29, 1
      %p94 = por %p92, %p93
      %p96 = scmp.ne.s32.totalorder %s81, %s95
      %p97 = scmp.eq.s32.totalorder %s29, 0
      %p98 = por %p96, %p97
      %s100 = sadd.s32 %s99, 1
      %p103 = scmp.eq.s32.totalorder %s23, 1
      %p104 = scmp.ne.s32.totalorder %s99, %s101
      %p105 = scmp.eq.s32.totalorder %s23, 0
      %p106 = por %p104, %p105
      %p107 = scmp.ne.s32.totalorder %s99, %s101
      %p108 = scmp.eq.s32.totalorder %s28, 1
      %p109 = por %p107, %p108
      %p110 = scmp.ne.s32.totalorder %s101, %s102
      %p111 = scmp.eq.s32.totalorder %s28, 0
      %p112 = por %p110, %p111
      %p113 = scmp.ne.s32.totalorder %s101, %s102
      %p114 = scmp.eq.s32.totalorder %s29, 1
      %p115 = por %p113, %p114
      %p117 = scmp.ne.s32.totalorder %s102, %s116
      %p118 = scmp.eq.s32.totalorder %s29, 0
      %p119 = por %p117, %p118
      %s121 = sadd.s32 %s120, 1
      %p124 = scmp.eq.s32.totalorder %s23, 1
      %p125 = scmp.ne.s32.totalorder %s120, %s122
      %p126 = scmp.eq.s32.totalorder %s23, 0
      %p127 = por %p125, %p126
      %p128 = scmp.ne.s32.totalorder %s120, %s122
      %p129 = scmp.eq.s32.totalorder %s28, 1
      %p130 = por %p128, %p129
      %p131 = scmp.ne.s32.totalorder %s122, %s123
      %p132 = scmp.eq.s32.totalorder %s28, 0
      %p133 = por %p131, %p132
      %p134 = scmp.ne.s32.totalorder %s122, %s123
      %p135 = scmp.eq.s32.totalorder %s29, 1
      %p136 = por %p134, %p135
      %p138 = scmp.ne.s32.totalorder %s123, %s137
      %p139 = scmp.eq.s32.totalorder %s29, 0
      %p140 = por %p138, %p139
      %s142 = sadd.s32 %s141, 1
      %p145 = scmp.eq.s32.totalorder %s23, 1
      %p146 = scmp.ne.s32.totalorder %s141, %s143
      %p147 = scmp.eq.s32.totalorder %s23, 0
      %p148 = por %p146, %p147
      %p149 = scmp.ne.s32.totalorder %s141, %s143
      %p150 = scmp.eq.s32.totalorder %s28, 1
      %p151 = por %p149, %p150
      %p152 = scmp.ne.s32.totalorder %s143, %s144
      %p153 = scmp.eq.s32.totalorder %s28, 0
      %p154 = por %p152, %p153
      %p155 = scmp.ne.s32.totalorder %s143, %s144
      %p156 = scmp.eq.s32.totalorder %s29, 1
      %p157 = por %p155, %p156
      %p159 = scmp.ne.s32.totalorder %s144, %s158
      %p160 = scmp.eq.s32.totalorder %s29, 0
      %p161 = por %p159, %p160
      %s163 = sadd.s32 %s162, 1
      %p166 = scmp.eq.s32.totalorder %s23, 1
      %p167 = scmp.ne.s32.totalorder %s162, %s164
      %p168 = scmp.eq.s32.totalorder %s23, 0
      %p169 = por %p167, %p168
      %p170 = scmp.ne.s32.totalorder %s162, %s164
      %p171 = scmp.eq.s32.totalorder %s28, 1
      %p172 = por %p170, %p171
      %p173 = scmp.ne.s32.totalorder %s164, %s165
      %p174 = scmp.eq.s32.totalorder %s28, 0
      %p175 = por %p173, %p174
      %p176 = scmp.ne.s32.totalorder %s164, %s165
      %p177 = scmp.eq.s32.totalorder %s29, 1
      %p178 = por %p176, %p177
      %p180 = scmp.ne.s32.totalorder %s165, %s179
      %p181 = scmp.eq.s32.totalorder %s29, 0
      %p182 = por %p180, %p181
      %s184 = sadd.s32 %s183, 1
      %p187 = scmp.eq.s32.totalorder %s23, 1
      %p188 = scmp.ne.s32.totalorder %s183, %s185
      %p189 = scmp.eq.s32.totalorder %s23, 0
      %p190 = por %p188, %p189
      %p191 = scmp.ne.s32.totalorder %s183, %s185
      %p192 = scmp.eq.s32.totalorder %s28, 1
      %p193 = por %p191, %p192
      %p194 = scmp.ne.s32.totalorder %s185, %s186
      %p195 = scmp.eq.s32.totalorder %s28, 0
      %p196 = por %p194, %p195
      %p197 = scmp.ne.s32.totalorder %s185, %s186
      %p198 = scmp.eq.s32.totalorder %s29, 1
      %p199 = por %p197, %p198
      %p201 = scmp.ne.s32.totalorder %s186, %s200
      %p202 = scmp.eq.s32.totalorder %s29, 0
      %p203 = por %p201, %p202
      %s204 = ssub.s32 %s23, %s30
      %p205 = scmp.eq.s32.totalorder %s204, 0
      %s207 = sadd.s32 %s206, 1
      %s208 = scalar_select %p205, %s206, %s207
      %p211 = pneg %p205
      %p212 = scmp.eq.s32.totalorder %s23, 1
      %p213 = por %p211, %p212
      %p214 = scmp.ne.s32.totalorder %s206, %s209
      %p215 = scmp.eq.s32.totalorder %s23, 0
      %p216 = por %p214, %p215
      %p217 = scmp.ne.s32.totalorder %s206, %s209
      %p218 = scmp.eq.s32.totalorder %s28, 1
      %p219 = por %p217, %p218
      %p220 = scmp.ne.s32.totalorder %s209, %s210
      %p221 = scmp.eq.s32.totalorder %s28, 0
      %p222 = por %p220, %p221
      %p223 = scmp.ne.s32.totalorder %s209, %s210
      %p224 = scmp.eq.s32.totalorder %s29, 1
      %p225 = por %p223, %p224
      %p227 = scmp.ne.s32.totalorder %s210, %s226
      %p228 = scmp.eq.s32.totalorder %s29, 0
      %p229 = por %p227, %p228
      %p230 = scmp.le.s32.totalorder 1, %s23
      %p231 = scmp.lt.s32.totalorder %s23, 3
      %p232 = pnand %p230, %p231
      %p233 = pneg %p232
      // Predicated region
      $region9: #{tpu_custom_call.1} parent=5 // pred_check
        _
      $region10: #{tpu_custom_call.1} parent=5 // pred_check_branch
        %235 = sbr.rel (%p232) target = $region12
      $region11: #{tpu_custom_call.1} parent=5 // pred_region
        %s236 = ssub.s32 %s23, 1
        // Predicated region
        $region13: #{tpu_custom_call.1} parent=11 // pred_check
          %p237 = pneg %p44
        $region14: #{tpu_custom_call.1} parent=11 // pred_check_branch
          %239 = sbr.rel (%p237) target = $region16
        $region15: #{tpu_custom_call.1} parent=11 // pred_region
          %241 = vsyncadd [#allocation5], 0
          %s243 = sshll.u32 %s0, 4
          %s244 = int_to_ptr.hbm [resolvable:$true] %s243
          %246 = dma.hbm_to_smem %s244, 16, [#allocation2], [#allocation5]
        $region16: #{tpu_custom_call.1} parent=11 // pred_fallthru
          _
        // Predicated region
        $region17: #{tpu_custom_call.1} parent=11 // pred_check
          %p247 = pneg %p91
        $region18: #{tpu_custom_call.1} parent=11 // pred_check_branch
          %249 = sbr.rel (%p247) target = $region20
        $region19: #{tpu_custom_call.1} parent=11 // pred_region
          %251 = vsyncadd [#allocation8], 0
          %s252 = sshll.u32 %s2, 4
          %s253 = int_to_ptr.hbm [resolvable:$true] %s252
          %s254 = sshll.u32 [#allocation7], 4
          %s255 = int_to_ptr.vmem [resolvable:$true] %s254
          %260 = dma.hbm_to_vmem [thread:$0]  %s253, 14336, %s255, [#allocation8], 128, 128, 8
        $region20: #{tpu_custom_call.1} parent=11 // pred_fallthru
          _
        // Predicated region
        $region21: #{tpu_custom_call.1} parent=11 // pred_check
          %p261 = pneg %p112
        $region22: #{tpu_custom_call.1} parent=11 // pred_check_branch
          %263 = sbr.rel (%p261) target = $region24
        $region23: #{tpu_custom_call.1} parent=11 // pred_region
          _
        $region24: #{tpu_custom_call.1} parent=11 // pred_fallthru
          _
        // Predicated region
        $region25: #{tpu_custom_call.1} parent=11 // pred_check
          %p264 = pneg %p133
        $region26: #{tpu_custom_call.1} parent=11 // pred_check_branch
          %266 = sbr.rel (%p264) target = $region28
        $region27: #{tpu_custom_call.1} parent=11 // pred_region
          %268 = vsyncadd [#allocation8], 0
          %s269 = sshll.u32 %s4, 4
          %s270 = int_to_ptr.hbm [resolvable:$true] %s269
          %s271 = sshll.u32 [#allocation9], 4
          %s272 = int_to_ptr.vmem [resolvable:$true] %s271
          %277 = dma.hbm_to_vmem [thread:$0]  %s270, 4096, %s272, [#allocation8], 128, 128, 8
        $region28: #{tpu_custom_call.1} parent=11 // pred_fallthru
          _
        // Predicated region
        $region29: #{tpu_custom_call.1} parent=11 // pred_check
          %p278 = pneg %p154
        $region30: #{tpu_custom_call.1} parent=11 // pred_check_branch
          %280 = sbr.rel (%p278) target = $region32
        $region31: #{tpu_custom_call.1} parent=11 // pred_region
          _
        $region32: #{tpu_custom_call.1} parent=11 // pred_fallthru
          _
        // Predicated region
        $region33: #{tpu_custom_call.1} parent=11 // pred_check
          %p281 = pneg %p175
        $region34: #{tpu_custom_call.1} parent=11 // pred_check_branch
          %283 = sbr.rel (%p281) target = $region36
        $region35: #{tpu_custom_call.1} parent=11 // pred_region
          %285 = vsyncadd [#allocation11], 0
          %s286 = sshll.u32 %s6, 4
          %s287 = int_to_ptr.hbm [resolvable:$true] %s286
          %s288 = sshll.u32 [#allocation10], 4
          %s289 = int_to_ptr.vmem [resolvable:$true] %s288
          %294 = dma.hbm_to_vmem [thread:$0]  %s287, 2048, %s289, [#allocation11], 64, 64, 4
        $region36: #{tpu_custom_call.1} parent=11 // pred_fallthru
          _
        // Predicated region
        $region37: #{tpu_custom_call.1} parent=11 // pred_check
          %p295 = pneg %p196
        $region38: #{tpu_custom_call.1} parent=11 // pred_check_branch
          %297 = sbr.rel (%p295) target = $region40
        $region39: #{tpu_custom_call.1} parent=11 // pred_region
          _
        $region40: #{tpu_custom_call.1} parent=11 // pred_fallthru
          _
      $region12: #{tpu_custom_call.1} parent=5 // pred_fallthru
        _
      %p298 = scmp.lt.s32.totalorder %s23, 2
      // Predicated region
      $region41: #{tpu_custom_call.1} parent=5 // pred_check
        %p299 = pneg %p298
      $region42: #{tpu_custom_call.1} parent=5 // pred_check_branch
        %301 = sbr.rel (%p299) target = $region44
      $region43: #{tpu_custom_call.1} parent=5 // pred_region
        // Predicated region
        $region45: #{tpu_custom_call.1} parent=43 // pred_check
          %p302 = pneg %p64
        $region46: #{tpu_custom_call.1} parent=43 // pred_check_branch
          %304 = sbr.rel (%p302) target = $region48
        $region47: #{tpu_custom_call.1} parent=43 // pred_region
          %s305 = sand.u32 %s54, 1
          %s306 = scalar_lea.sflag [#allocation3], %s305
          %s307 = sand.u32 %s54, 1
          %s308 = smul.addr %s307, 448
          %s309 = scalar_lea.vmem [#allocation6], %s308
          %s310 = smul.u32 16, %s23
          %s311 = ssub.s32 25, %s310
          %p312 = scmp.lt.s32.totalorder %s311, 16
          %s313 = scalar_select %p312, %s311, 16
          %s314 = smul.u32 4, %s313
          %s315 = smul.u32 %s314, 7
          %s316 = ssub.s32 448, %s315
          %s317 = sshll.u32 %s316, 4
          %318 = vsyncadd %s306, %s317
          %p319 = scmp.ne.s32.totalorder 0, %s315
          %s320 = smul.addr %s310, 7
          %s321 = smul.addr %s320, 4
          %s322 = scalar_lea.hbm %s1, %s321
          %s323 = smul.u32 28, %s313
          %s324 = sshll.u32 %s322, 4
          %s325 = int_to_ptr.hbm [resolvable:$true] %s324
          %s326 = sshll.u32 %s309, 4
          %s327 = int_to_ptr.vmem [resolvable:$true] %s326
          %s328 = sshll.u32 %s323, 4
          %332 = dma.hbm_to_vmem [thread:$0]  (%p319), %s325, %s328, %s327, %s306, 448, 448, 28
        $region48: #{tpu_custom_call.1} parent=43 // pred_fallthru
          _
      $region44: #{tpu_custom_call.1} parent=5 // pred_fallthru
        _
      %p333 = scmp.le.s32.totalorder 1, %s23
      %p334 = scmp.lt.s32.totalorder %s23, 3
      %p335 = pnand %p333, %p334
      %p336 = pneg %p335
      // Predicated region
      $region49: #{tpu_custom_call.1} parent=5 // pred_check
        _
      $region50: #{tpu_custom_call.1} parent=5 // pred_check_branch
        %338 = sbr.rel (%p335) target = $region52
      $region51: #{tpu_custom_call.1} parent=5 // pred_region
        %s339 = ssub.s32 %s23, 1
        // Predicated region
        $region53: #{tpu_custom_call.1} parent=51 // pred_check
          %p340 = pneg %p44
        $region54: #{tpu_custom_call.1} parent=51 // pred_check_branch
          %342 = sbr.rel (%p340) target = $region56
        $region55: #{tpu_custom_call.1} parent=51 // pred_region
          %344 = dma.done [#allocation5], 16
        $region56: #{tpu_custom_call.1} parent=51 // pred_fallthru
          _
        %s345 = sand.u32 %s57, 1
        %s346 = scalar_lea.sflag [#allocation3], %s345
        %s347 = sand.u32 %s57, 1
        %s348 = smul.addr %s347, 448
        %s349 = scalar_lea.vmem [#allocation6], %s348
        // Predicated region
        $region57: #{tpu_custom_call.1} parent=51 // pred_check
          %p350 = pneg %p70
        $region58: #{tpu_custom_call.1} parent=51 // pred_check_branch
          %352 = sbr.rel (%p350) target = $region60
        $region59: #{tpu_custom_call.1} parent=51 // pred_region
          %354 = dma.done %s346, 7168
        $region60: #{tpu_custom_call.1} parent=51 // pred_fallthru
          _
        // Predicated region
        $region61: #{tpu_custom_call.1} parent=51 // pred_check
          %p355 = pneg %p91
        $region62: #{tpu_custom_call.1} parent=51 // pred_check_branch
          %357 = sbr.rel (%p355) target = $region64
        $region63: #{tpu_custom_call.1} parent=51 // pred_region
          %359 = dma.done [#allocation8], 14336
        $region64: #{tpu_custom_call.1} parent=51 // pred_fallthru
          _
        // Predicated region
        $region65: #{tpu_custom_call.1} parent=51 // pred_check
          %p360 = pneg %p133
        $region66: #{tpu_custom_call.1} parent=51 // pred_check_branch
          %362 = sbr.rel (%p360) target = $region68
        $region67: #{tpu_custom_call.1} parent=51 // pred_region
          %364 = dma.done [#allocation8], 4096
        $region68: #{tpu_custom_call.1} parent=51 // pred_fallthru
          _
        // Predicated region
        $region69: #{tpu_custom_call.1} parent=51 // pred_check
          %p365 = pneg %p175
        $region70: #{tpu_custom_call.1} parent=51 // pred_check_branch
          %367 = sbr.rel (%p365) target = $region72
        $region71: #{tpu_custom_call.1} parent=51 // pred_region
          %369 = dma.done [#allocation11], 2048
        $region72: #{tpu_custom_call.1} parent=51 // pred_fallthru
          _
        %370 = sfence
        %p371 = pneg %p44
        %p372 = pneg %p41
        %s373 = sand.u32 %s57, 1
        %s374 = scalar_lea.sflag [#allocation3], %s373
        %s375 = sand.u32 %s57, 1
        %s376 = smul.addr %s375, 448
        %s377 = scalar_lea.vmem [#allocation6], %s376
        %p378 = pneg %p70
        %p379 = pneg %p67
        %p380 = pneg %p91
        %p381 = pneg %p88
        %p382 = pneg %p112
        %p383 = pneg %p109
        %p384 = pneg %p133
        %p385 = pneg %p130
        %p386 = pneg %p154
        %p387 = pneg %p151
        %p388 = pneg %p175
        %p389 = pneg %p172
        %p390 = pneg %p196
        %p391 = pneg %p193
        %p392 = pneg %p222
        %p393 = pneg %p219
        %s394 = sand.u32 %s209, 1
        %s395 = scalar_lea.sflag [#allocation4], %s394
        %s396 = sand.u32 %s209, 1
        %s397 = smul.addr %s396, 128
        %s398 = scalar_lea.vmem [#allocation12], %s397
        %s399 = smul.u32 16, %s28
        %s400 = ssub.s32 25, %s399
        %p401 = scmp.lt.s32.totalorder %s400, 16
        %s402 = scalar_select %p401, %s400, 16
        %s403 = smul.u32 4, %s402
        %s404 = smul.u32 %s403, 7
        %s405 = smul.u32 16, %s28
        %s406 = ssub.s32 25, %s405
        %p407 = scmp.lt.s32.totalorder %s406, 16
        %s408 = scalar_select %p407, %s406, 16
        %s409 = smul.u32 8, %s408
        %s410 = sld [smem:[#allocation2]]
        %p412 = scmp.ne.f32.partialorder %s410, %s410
        %s413 = sshrl.u32 %s410, 16
        %s414 = sand.u32 %s413, 1
        %s415 = sadd.s32 32767, %s414
        %s416 = sadd.s32 %s410, %s415
        %s417 = sand.u32 %s416, 4294901760
        %s418 = scalar_select %p412, 2143289344, %s417
        %s420 = sshrl.u32 %s418, 16
        %s421 = sld [smem:[#allocation2 + $0x1]]
        %p423 = scmp.ne.f32.partialorder %s421, %s421
        %s424 = sshrl.u32 %s421, 16
        %s425 = sand.u32 %s424, 1
        %s426 = sadd.s32 32767, %s425
        %s427 = sadd.s32 %s421, %s426
        %s428 = sand.u32 %s427, 4294901760
        %s429 = scalar_select %p423, 2143289344, %s428
        %s431 = sshrl.u32 %s429, 16
        %v432 = vld [vmem:[%s349] sm:$0xff]
        %v433 = vld [vmem:[%s349 + $0x8] sm:$0xff]
        %v434 = vld [vmem:[%s349 + $0x10] sm:$0xff]
        %v435 = vld [vmem:[%s349 + $0x18] sm:$0xf]
        %v436 = vld [vmem:[%s349 + $0x1c] sm:$0xff]
        %v437 = vld [vmem:[%s349 + $0x24] sm:$0xff]
        %v438 = vld [vmem:[%s349 + $0x2c] sm:$0xff]
        %v439 = vld [vmem:[%s349 + $0x34] sm:$0xf]
        %v440 = vld [vmem:[%s349 + $0x38] sm:$0xff]
        %v441 = vld [vmem:[%s349 + $0x40] sm:$0xff]
        %v442 = vld [vmem:[%s349 + $0x48] sm:$0xff]
        %v443 = vld [vmem:[%s349 + $0x50] sm:$0xf]
        %v444 = vld [vmem:[%s349 + $0x54] sm:$0xff]
        %v445 = vld [vmem:[%s349 + $0x5c] sm:$0xff]
        %v446 = vld [vmem:[%s349 + $0x64] sm:$0xff]
        %v447 = vld [vmem:[%s349 + $0x6c] sm:$0xf]
        %v448 = vld [vmem:[%s349 + $0x70] sm:$0xff]
        %v449 = vld [vmem:[%s349 + $0x78] sm:$0xff]
        %v450 = vld [vmem:[%s349 + $0x80] sm:$0xff]
        %v451 = vld [vmem:[%s349 + $0x88] sm:$0xf]
        %v452 = vld [vmem:[%s349 + $0x8c] sm:$0xff]
        %v453 = vld [vmem:[%s349 + $0x94] sm:$0xff]
        %v454 = vld [vmem:[%s349 + $0x9c] sm:$0xff]
        %v455 = vld [vmem:[%s349 + $0xa4] sm:$0xf]
        %v456 = vld [vmem:[%s349 + $0xa8] sm:$0xff]
        %v457 = vld [vmem:[%s349 + $0xb0] sm:$0xff]
        %v458 = vld [vmem:[%s349 + $0xb8] sm:$0xff]
        %v459 = vld [vmem:[%s349 + $0xc0] sm:$0xf]
        %v460 = vld [vmem:[%s349 + $0xc4] sm:$0xff]
        %v461 = vld [vmem:[%s349 + $0xcc] sm:$0xff]
        %v462 = vld [vmem:[%s349 + $0xd4] sm:$0xff]
        %v463 = vld [vmem:[%s349 + $0xdc] sm:$0xf]
        %v464 = vld [vmem:[%s349 + $0xe0] sm:$0xff]
        %v465 = vld [vmem:[%s349 + $0xe8] sm:$0xff]
        %v466 = vld [vmem:[%s349 + $0xf0] sm:$0xff]
        %v467 = vld [vmem:[%s349 + $0xf8] sm:$0xf]
        %v468 = vld [vmem:[%s349 + $0xfc] sm:$0xff]
        %v469 = vld [vmem:[%s349 + $0x104] sm:$0xff]
        %v470 = vld [vmem:[%s349 + $0x10c] sm:$0xff]
        %v471 = vld [vmem:[%s349 + $0x114] sm:$0xf]
        %v472 = vld [vmem:[%s349 + $0x118] sm:$0xff]
        %v473 = vld [vmem:[%s349 + $0x120] sm:$0xff]
        %v474 = vld [vmem:[%s349 + $0x128] sm:$0xff]
        %v475 = vld [vmem:[%s349 + $0x130] sm:$0xf]
        %v476 = vld [vmem:[%s349 + $0x134] sm:$0xff]
        %v477 = vld [vmem:[%s349 + $0x13c] sm:$0xff]
        %v478 = vld [vmem:[%s349 + $0x144] sm:$0xff]
        %v479 = vld [vmem:[%s349 + $0x14c] sm:$0xf]
        %v480 = vld [vmem:[%s349 + $0x150] sm:$0xff]
        %v481 = vld [vmem:[%s349 + $0x158] sm:$0xff]
        %v482 = vld [vmem:[%s349 + $0x160] sm:$0xff]
        %v483 = vld [vmem:[%s349 + $0x168] sm:$0xf]
        %v484 = vld [vmem:[%s349 + $0x16c] sm:$0xff]
        %v485 = vld [vmem:[%s349 + $0x174] sm:$0xff]
        %v486 = vld [vmem:[%s349 + $0x17c] sm:$0xff]
        %v487 = vld [vmem:[%s349 + $0x184] sm:$0xf]
        %v488 = vld [vmem:[%s349 + $0x188] sm:$0xff]
        %v489 = vld [vmem:[%s349 + $0x190] sm:$0xff]
        %v490 = vld [vmem:[%s349 + $0x198] sm:$0xff]
        %v491 = vld [vmem:[%s349 + $0x1a0] sm:$0xf]
        %v492 = vld [vmem:[%s349 + $0x1a4] sm:$0xff]
        %v493 = vld [vmem:[%s349 + $0x1ac] sm:$0xff]
        %v494 = vld [vmem:[%s349 + $0x1b4] sm:$0xff]
        %v495 = vld [vmem:[%s349 + $0x1bc] sm:$0xf]
        %v496 = vld [vmem:[#allocation7] sm:$0xff]
        %v497 = vld [vmem:[#allocation7 + $0x8] sm:$0xff]
        %v498 = vld [vmem:[#allocation7 + $0x10] sm:$0xff]
        %v499 = vld [vmem:[#allocation7 + $0x18] sm:$0xff]
        %v500 = vld [vmem:[#allocation7 + $0x20] sm:$0xff]
        %v501 = vld [vmem:[#allocation7 + $0x28] sm:$0xff]
        %v502 = vld [vmem:[#allocation7 + $0x30] sm:$0xff]
        %v503 = vld [vmem:[#allocation7 + $0x38] sm:$0xff]
        %v504 = vld [vmem:[#allocation7 + $0x40] sm:$0xff]
        %v505 = vld [vmem:[#allocation7 + $0x48] sm:$0xff]
        %v506 = vld [vmem:[#allocation7 + $0x50] sm:$0xff]
        %v507 = vld [vmem:[#allocation7 + $0x58] sm:$0xff]
        %v508 = vld [vmem:[#allocation7 + $0x60] sm:$0xff]
        %v509 = vld [vmem:[#allocation7 + $0x68] sm:$0xff]
        %v510 = vld [vmem:[#allocation7 + $0x70] sm:$0xff]
        %v511 = vld [vmem:[#allocation7 + $0x78] sm:$0xff]
        %v512 = vld [vmem:[#allocation7 + $0x80] sm:$0xff]
        %v513 = vld [vmem:[#allocation7 + $0x88] sm:$0xff]
        %v514 = vld [vmem:[#allocation7 + $0x90] sm:$0xff]
        %v515 = vld [vmem:[#allocation7 + $0x98] sm:$0xff]
        %v516 = vld [vmem:[#allocation7 + $0xa0] sm:$0xff]
        %v517 = vld [vmem:[#allocation7 + $0xa8] sm:$0xff]
        %v518 = vld [vmem:[#allocation7 + $0xb0] sm:$0xff]
        %v519 = vld [vmem:[#allocation7 + $0xb8] sm:$0xff]
        %v520 = vld [vmem:[#allocation7 + $0xc0] sm:$0xff]
        %v521 = vld [vmem:[#allocation7 + $0xc8] sm:$0xff]
        %v522 = vld [vmem:[#allocation7 + $0xd0] sm:$0xff]
        %v523 = vld [vmem:[#allocation7 + $0xd8] sm:$0xff]
        %v524 = vld [vmem:[#allocation7 + $0xe0] sm:$0xff]
        %v525 = vld [vmem:[#allocation7 + $0xe8] sm:$0xff]
        %v526 = vld [vmem:[#allocation7 + $0xf0] sm:$0xff]
        %v527 = vld [vmem:[#allocation7 + $0xf8] sm:$0xff]
        %v528 = vld [vmem:[#allocation7 + $0x100] sm:$0xff]
        %v529 = vld [vmem:[#allocation7 + $0x108] sm:$0xff]
        %v530 = vld [vmem:[#allocation7 + $0x110] sm:$0xff]
        %v531 = vld [vmem:[#allocation7 + $0x118] sm:$0xff]
        %v532 = vld [vmem:[#allocation7 + $0x120] sm:$0xff]
        %v533 = vld [vmem:[#allocation7 + $0x128] sm:$0xff]
        %v534 = vld [vmem:[#allocation7 + $0x130] sm:$0xff]
        %v535 = vld [vmem:[#allocation7 + $0x138] sm:$0xff]
        %v536 = vld [vmem:[#allocation7 + $0x140] sm:$0xff]
        %v537 = vld [vmem:[#allocation7 + $0x148] sm:$0xff]
        %v538 = vld [vmem:[#allocation7 + $0x150] sm:$0xff]
        %v539 = vld [vmem:[#allocation7 + $0x158] sm:$0xff]
        %v540 = vld [vmem:[#allocation7 + $0x160] sm:$0xff]
        %v541 = vld [vmem:[#allocation7 + $0x168] sm:$0xff]
        %v542 = vld [vmem:[#allocation7 + $0x170] sm:$0xff]
        %v543 = vld [vmem:[#allocation7 + $0x178] sm:$0xff]
        %v544 = vld [vmem:[#allocation7 + $0x180] sm:$0xff]
        %v545 = vld [vmem:[#allocation7 + $0x188] sm:$0xff]
        %v546 = vld [vmem:[#allocation7 + $0x190] sm:$0xff]
        %v547 = vld [vmem:[#allocation7 + $0x198] sm:$0xff]
        %v548 = vld [vmem:[#allocation7 + $0x1a0] sm:$0xff]
        %v549 = vld [vmem:[#allocation7 + $0x1a8] sm:$0xff]
        %v550 = vld [vmem:[#allocation7 + $0x1b0] sm:$0xff]
        %v551 = vld [vmem:[#allocation7 + $0x1b8] sm:$0xff]
        %v552 = vld [vmem:[#allocation7 + $0x1c0] sm:$0xff]
        %v553 = vld [vmem:[#allocation7 + $0x1c8] sm:$0xff]
        %v554 = vld [vmem:[#allocation7 + $0x1d0] sm:$0xff]
        %v555 = vld [vmem:[#allocation7 + $0x1d8] sm:$0xff]
        %v556 = vld [vmem:[#allocation7 + $0x1e0] sm:$0xff]
        %v557 = vld [vmem:[#allocation7 + $0x1e8] sm:$0xff]
        %v558 = vld [vmem:[#allocation7 + $0x1f0] sm:$0xff]
        %v559 = vld [vmem:[#allocation7 + $0x1f8] sm:$0xff]
        %v560 = vld [vmem:[#allocation7 + $0x200] sm:$0xff]
        %v561 = vld [vmem:[#allocation7 + $0x208] sm:$0xff]
        %v562 = vld [vmem:[#allocation7 + $0x210] sm:$0xff]
        %v563 = vld [vmem:[#allocation7 + $0x218] sm:$0xff]
        %v564 = vld [vmem:[#allocation7 + $0x220] sm:$0xff]
        %v565 = vld [vmem:[#allocation7 + $0x228] sm:$0xff]
        %v566 = vld [vmem:[#allocation7 + $0x230] sm:$0xff]
        %v567 = vld [vmem:[#allocation7 + $0x238] sm:$0xff]
        %v568 = vld [vmem:[#allocation7 + $0x240] sm:$0xff]
        %v569 = vld [vmem:[#allocation7 + $0x248] sm:$0xff]
        %v570 = vld [vmem:[#allocation7 + $0x250] sm:$0xff]
        %v571 = vld [vmem:[#allocation7 + $0x258] sm:$0xff]
        %v572 = vld [vmem:[#allocation7 + $0x260] sm:$0xff]
        %v573 = vld [vmem:[#allocation7 + $0x268] sm:$0xff]
        %v574 = vld [vmem:[#allocation7 + $0x270] sm:$0xff]
        %v575 = vld [vmem:[#allocation7 + $0x278] sm:$0xff]
        %v576 = vld [vmem:[#allocation7 + $0x280] sm:$0xff]
        %v577 = vld [vmem:[#allocation7 + $0x288] sm:$0xff]
        %v578 = vld [vmem:[#allocation7 + $0x290] sm:$0xff]
        %v579 = vld [vmem:[#allocation7 + $0x298] sm:$0xff]
        %v580 = vld [vmem:[#allocation7 + $0x2a0] sm:$0xff]
        %v581 = vld [vmem:[#allocation7 + $0x2a8] sm:$0xff]
        %v582 = vld [vmem:[#allocation7 + $0x2b0] sm:$0xff]
        %v583 = vld [vmem:[#allocation7 + $0x2b8] sm:$0xff]
        %v584 = vld [vmem:[#allocation7 + $0x2c0] sm:$0xff]
        %v585 = vld [vmem:[#allocation7 + $0x2c8] sm:$0xff]
        %v586 = vld [vmem:[#allocation7 + $0x2d0] sm:$0xff]
        %v587 = vld [vmem:[#allocation7 + $0x2d8] sm:$0xff]
        %v588 = vld [vmem:[#allocation7 + $0x2e0] sm:$0xff]
        %v589 = vld [vmem:[#allocation7 + $0x2e8] sm:$0xff]
        %v590 = vld [vmem:[#allocation7 + $0x2f0] sm:$0xff]
        %v591 = vld [vmem:[#allocation7 + $0x2f8] sm:$0xff]
        %v592 = vld [vmem:[#allocation7 + $0x300] sm:$0xff]
        %v593 = vld [vmem:[#allocation7 + $0x308] sm:$0xff]
        %v594 = vld [vmem:[#allocation7 + $0x310] sm:$0xff]
        %v595 = vld [vmem:[#allocation7 + $0x318] sm:$0xff]
        %v596 = vld [vmem:[#allocation7 + $0x320] sm:$0xff]
        %v597 = vld [vmem:[#allocation7 + $0x328] sm:$0xff]
        %v598 = vld [vmem:[#allocation7 + $0x330] sm:$0xff]
        %v599 = vld [vmem:[#allocation7 + $0x338] sm:$0xff]
        %v600 = vld [vmem:[#allocation7 + $0x340] sm:$0xff]
        %v601 = vld [vmem:[#allocation7 + $0x348] sm:$0xff]
        %v602 = vld [vmem:[#allocation7 + $0x350] sm:$0xff]
        %v603 = vld [vmem:[#allocation7 + $0x358] sm:$0xff]
        %v604 = vld [vmem:[#allocation7 + $0x360] sm:$0xff]
        %v605 = vld [vmem:[#allocation7 + $0x368] sm:$0xff]
        %v606 = vld [vmem:[#allocation7 + $0x370] sm:$0xff]
        %v607 = vld [vmem:[#allocation7 + $0x378] sm:$0xff]
        %v672 = vunpack.c.l.b16 %v432
        %v673 = vunpack.c.h.b16 %v432
        %v674 = vunpack.c.l.b16 %v433
        %v675 = vunpack.c.h.b16 %v433
        %v676 = vunpack.c.l.b16 %v434
        %v677 = vunpack.c.h.b16 %v434
        %v678 = vunpack.c.l.b16 %v435
        %v679 = vunpack.c.l.b16 %v436
        %v680 = vunpack.c.h.b16 %v436
        %v681 = vunpack.c.l.b16 %v437
        %v682 = vunpack.c.h.b16 %v437
        %v683 = vunpack.c.l.b16 %v438
        %v684 = vunpack.c.h.b16 %v438
        %v685 = vunpack.c.l.b16 %v439
        %v686 = vunpack.c.l.b16 %v440
        %v687 = vunpack.c.h.b16 %v440
        %v688 = vunpack.c.l.b16 %v441
        %v689 = vunpack.c.h.b16 %v441
        %v690 = vunpack.c.l.b16 %v442
        %v691 = vunpack.c.h.b16 %v442
        %v692 = vunpack.c.l.b16 %v443
        %v693 = vunpack.c.l.b16 %v444
        %v694 = vunpack.c.h.b16 %v444
        %v695 = vunpack.c.l.b16 %v445
        %v696 = vunpack.c.h.b16 %v445
        %v697 = vunpack.c.l.b16 %v446
        %v698 = vunpack.c.h.b16 %v446
        %v699 = vunpack.c.l.b16 %v447
        %v700 = vunpack.c.l.b16 %v448
        %v701 = vunpack.c.h.b16 %v448
        %v702 = vunpack.c.l.b16 %v449
        %v703 = vunpack.c.h.b16 %v449
        %v704 = vunpack.c.l.b16 %v450
        %v705 = vunpack.c.h.b16 %v450
        %v706 = vunpack.c.l.b16 %v451
        %v707 = vunpack.c.l.b16 %v452
        %v708 = vunpack.c.h.b16 %v452
        %v709 = vunpack.c.l.b16 %v453
        %v710 = vunpack.c.h.b16 %v453
        %v711 = vunpack.c.l.b16 %v454
        %v712 = vunpack.c.h.b16 %v454
        %v713 = vunpack.c.l.b16 %v455
        %v714 = vunpack.c.l.b16 %v456
        %v715 = vunpack.c.h.b16 %v456
        %v716 = vunpack.c.l.b16 %v457
        %v717 = vunpack.c.h.b16 %v457
        %v718 = vunpack.c.l.b16 %v458
        %v719 = vunpack.c.h.b16 %v458
        %v720 = vunpack.c.l.b16 %v459
        %v721 = vunpack.c.l.b16 %v460
        %v722 = vunpack.c.h.b16 %v460
        %v723 = vunpack.c.l.b16 %v461
        %v724 = vunpack.c.h.b16 %v461
        %v725 = vunpack.c.l.b16 %v462
        %v726 = vunpack.c.h.b16 %v462
        %v727 = vunpack.c.l.b16 %v463
        %v728 = vunpack.c.l.b16 %v464
        %v729 = vunpack.c.h.b16 %v464
        %v730 = vunpack.c.l.b16 %v465
        %v731 = vunpack.c.h.b16 %v465
        %v732 = vunpack.c.l.b16 %v466
        %v733 = vunpack.c.h.b16 %v466
        %v734 = vunpack.c.l.b16 %v467
        %v735 = vunpack.c.l.b16 %v468
        %v736 = vunpack.c.h.b16 %v468
        %v737 = vunpack.c.l.b16 %v469
        %v738 = vunpack.c.h.b16 %v469
        %v739 = vunpack.c.l.b16 %v470
        %v740 = vunpack.c.h.b16 %v470
        %v741 = vunpack.c.l.b16 %v471
        %v742 = vunpack.c.l.b16 %v472
        %v743 = vunpack.c.h.b16 %v472
        %v744 = vunpack.c.l.b16 %v473
        %v745 = vunpack.c.h.b16 %v473
        %v746 = vunpack.c.l.b16 %v474
        %v747 = vunpack.c.h.b16 %v474
        %v748 = vunpack.c.l.b16 %v475
        %v749 = vunpack.c.l.b16 %v476
        %v750 = vunpack.c.h.b16 %v476
        %v751 = vunpack.c.l.b16 %v477
        %v752 = vunpack.c.h.b16 %v477
        %v753 = vunpack.c.l.b16 %v478
        %v754 = vunpack.c.h.b16 %v478
        %v755 = vunpack.c.l.b16 %v479
        %v756 = vunpack.c.l.b16 %v480
        %v757 = vunpack.c.h.b16 %v480
        %v758 = vunpack.c.l.b16 %v481
        %v759 = vunpack.c.h.b16 %v481
        %v760 = vunpack.c.l.b16 %v482
        %v761 = vunpack.c.h.b16 %v482
        %v762 = vunpack.c.l.b16 %v483
        %v763 = vunpack.c.l.b16 %v484
        %v764 = vunpack.c.h.b16 %v484
        %v765 = vunpack.c.l.b16 %v485
        %v766 = vunpack.c.h.b16 %v485
        %v767 = vunpack.c.l.b16 %v486
        %v768 = vunpack.c.h.b16 %v486
        %v769 = vunpack.c.l.b16 %v487
        %v770 = vunpack.c.l.b16 %v488
        %v771 = vunpack.c.h.b16 %v488
        %v772 = vunpack.c.l.b16 %v489
        %v773 = vunpack.c.h.b16 %v489
        %v774 = vunpack.c.l.b16 %v490
        %v775 = vunpack.c.h.b16 %v490
        %v776 = vunpack.c.l.b16 %v491
        %v777 = vunpack.c.l.b16 %v492
        %v778 = vunpack.c.h.b16 %v492
        %v779 = vunpack.c.l.b16 %v493
        %v780 = vunpack.c.h.b16 %v493
        %v781 = vunpack.c.l.b16 %v494
        %v782 = vunpack.c.h.b16 %v494
        %v783 = vunpack.c.l.b16 %v495
        %v784 = vpack.c.b16 %v679, %v672
        %v785 = vpack.c.b16 %v680, %v673
        %v786 = vpack.c.b16 %v681, %v674
        %v787 = vpack.c.b16 %v682, %v675
        %v788 = vpack.c.b16 %v683, %v676
        %v789 = vpack.c.b16 %v684, %v677
        %v790 = vpack.c.b16 %v685, %v678
        %v791 = vpack.c.b16 %v693, %v686
        %v792 = vpack.c.b16 %v694, %v687
        %v793 = vpack.c.b16 %v695, %v688
        %v794 = vpack.c.b16 %v696, %v689
        %v795 = vpack.c.b16 %v697, %v690
        %v796 = vpack.c.b16 %v698, %v691
        %v797 = vpack.c.b16 %v699, %v692
        %v798 = vpack.c.b16 %v707, %v700
        %v799 = vpack.c.b16 %v708, %v701
        %v800 = vpack.c.b16 %v709, %v702
        %v801 = vpack.c.b16 %v710, %v703
        %v802 = vpack.c.b16 %v711, %v704
        %v803 = vpack.c.b16 %v712, %v705
        %v804 = vpack.c.b16 %v713, %v706
        %v805 = vpack.c.b16 %v721, %v714
        %v806 = vpack.c.b16 %v722, %v715
        %v807 = vpack.c.b16 %v723, %v716
        %v808 = vpack.c.b16 %v724, %v717
        %v809 = vpack.c.b16 %v725, %v718
        %v810 = vpack.c.b16 %v726, %v719
        %v811 = vpack.c.b16 %v727, %v720
        %v812 = vpack.c.b16 %v735, %v728
        %v813 = vpack.c.b16 %v736, %v729
        %v814 = vpack.c.b16 %v737, %v730
        %v815 = vpack.c.b16 %v738, %v731
        %v816 = vpack.c.b16 %v739, %v732
        %v817 = vpack.c.b16 %v740, %v733
        %v818 = vpack.c.b16 %v741, %v734
        %v819 = vpack.c.b16 %v749, %v742
        %v820 = vpack.c.b16 %v750, %v743
        %v821 = vpack.c.b16 %v751, %v744
        %v822 = vpack.c.b16 %v752, %v745
        %v823 = vpack.c.b16 %v753, %v746
        %v824 = vpack.c.b16 %v754, %v747
        %v825 = vpack.c.b16 %v755, %v748
        %v826 = vpack.c.b16 %v763, %v756
        %v827 = vpack.c.b16 %v764, %v757
        %v828 = vpack.c.b16 %v765, %v758
        %v829 = vpack.c.b16 %v766, %v759
        %v830 = vpack.c.b16 %v767, %v760
        %v831 = vpack.c.b16 %v768, %v761
        %v832 = vpack.c.b16 %v769, %v762
        %v833 = vpack.c.b16 %v777, %v770
        %v834 = vpack.c.b16 %v778, %v771
        %v835 = vpack.c.b16 %v779, %v772
        %v836 = vpack.c.b16 %v780, %v773
        %v837 = vpack.c.b16 %v781, %v774
        %v838 = vpack.c.b16 %v782, %v775
        %v839 = vpack.c.b16 %v783, %v776
        %v1008 = vunpack.c.l.b16 %v496
        %v1009 = vunpack.c.h.b16 %v496
        %v1010 = vunpack.c.l.b16 %v497
        %v1011 = vunpack.c.h.b16 %v497
        %v1012 = vunpack.c.l.b16 %v498
        %v1013 = vunpack.c.h.b16 %v498
        %v1014 = vunpack.c.l.b16 %v499
        %v1015 = vunpack.c.h.b16 %v499
        %v1016 = vunpack.c.l.b16 %v500
        %v1017 = vunpack.c.h.b16 %v500
        %v1018 = vunpack.c.l.b16 %v501
        %v1019 = vunpack.c.h.b16 %v501
        %v1020 = vunpack.c.l.b16 %v502
        %v1021 = vunpack.c.h.b16 %v502
        %v1022 = vunpack.c.l.b16 %v503
        %v1023 = vunpack.c.h.b16 %v503
        %v1024 = vunpack.c.l.b16 %v504
        %v1025 = vunpack.c.h.b16 %v504
        %v1026 = vunpack.c.l.b16 %v505
        %v1027 = vunpack.c.h.b16 %v505
        %v1028 = vunpack.c.l.b16 %v506
        %v1029 = vunpack.c.h.b16 %v506
        %v1030 = vunpack.c.l.b16 %v507
        %v1031 = vunpack.c.h.b16 %v507
        %v1032 = vunpack.c.l.b16 %v508
        %v1033 = vunpack.c.h.b16 %v508
        %v1034 = vunpack.c.l.b16 %v509
        %v1035 = vunpack.c.h.b16 %v509
        %v1036 = vunpack.c.l.b16 %v510
        %v1037 = vunpack.c.h.b16 %v510
        %v1038 = vunpack.c.l.b16 %v511
        %v1039 = vunpack.c.h.b16 %v511
        %v1040 = vunpack.c.l.b16 %v512
        %v1041 = vunpack.c.h.b16 %v512
        %v1042 = vunpack.c.l.b16 %v513
        %v1043 = vunpack.c.h.b16 %v513
        %v1044 = vunpack.c.l.b16 %v514
        %v1045 = vunpack.c.h.b16 %v514
        %v1046 = vunpack.c.l.b16 %v515
        %v1047 = vunpack.c.h.b16 %v515
        %v1048 = vunpack.c.l.b16 %v516
        %v1049 = vunpack.c.h.b16 %v516
        %v1050 = vunpack.c.l.b16 %v517
        %v1051 = vunpack.c.h.b16 %v517
        %v1052 = vunpack.c.l.b16 %v518
        %v1053 = vunpack.c.h.b16 %v518
        %v1054 = vunpack.c.l.b16 %v519
        %v1055 = vunpack.c.h.b16 %v519
        %v1056 = vunpack.c.l.b16 %v520
        %v1057 = vunpack.c.h.b16 %v520
        %v1058 = vunpack.c.l.b16 %v521
        %v1059 = vunpack.c.h.b16 %v521
        %v1060 = vunpack.c.l.b16 %v522
        %v1061 = vunpack.c.h.b16 %v522
        %v1062 = vunpack.c.l.b16 %v523
        %v1063 = vunpack.c.h.b16 %v523
        %v1064 = vunpack.c.l.b16 %v524
        %v1065 = vunpack.c.h.b16 %v524
        %v1066 = vunpack.c.l.b16 %v525
        %v1067 = vunpack.c.h.b16 %v525
        %v1068 = vunpack.c.l.b16 %v526
        %v1069 = vunpack.c.h.b16 %v526
        %v1070 = vunpack.c.l.b16 %v527
        %v1071 = vunpack.c.h.b16 %v527
        %v1072 = vunpack.c.l.b16 %v528
        %v1073 = vunpack.c.h.b16 %v528
        %v1074 = vunpack.c.l.b16 %v529
        %v1075 = vunpack.c.h.b16 %v529
        %v1076 = vunpack.c.l.b16 %v530
        %v1077 = vunpack.c.h.b16 %v530
        %v1078 = vunpack.c.l.b16 %v531
        %v1079 = vunpack.c.h.b16 %v531
        %v1080 = vunpack.c.l.b16 %v532
        %v1081 = vunpack.c.h.b16 %v532
        %v1082 = vunpack.c.l.b16 %v533
        %v1083 = vunpack.c.h.b16 %v533
        %v1084 = vunpack.c.l.b16 %v534
        %v1085 = vunpack.c.h.b16 %v534
        %v1086 = vunpack.c.l.b16 %v535
        %v1087 = vunpack.c.h.b16 %v535
        %v1088 = vunpack.c.l.b16 %v536
        %v1089 = vunpack.c.h.b16 %v536
        %v1090 = vunpack.c.l.b16 %v537
        %v1091 = vunpack.c.h.b16 %v537
        %v1092 = vunpack.c.l.b16 %v538
        %v1093 = vunpack.c.h.b16 %v538
        %v1094 = vunpack.c.l.b16 %v539
        %v1095 = vunpack.c.h.b16 %v539
        %v1096 = vunpack.c.l.b16 %v540
        %v1097 = vunpack.c.h.b16 %v540
        %v1098 = vunpack.c.l.b16 %v541
        %v1099 = vunpack.c.h.b16 %v541
        %v1100 = vunpack.c.l.b16 %v542
        %v1101 = vunpack.c.h.b16 %v542
        %v1102 = vunpack.c.l.b16 %v543
        %v1103 = vunpack.c.h.b16 %v543
        %v1104 = vunpack.c.l.b16 %v544
        %v1105 = vunpack.c.h.b16 %v544
        %v1106 = vunpack.c.l.b16 %v545
        %v1107 = vunpack.c.h.b16 %v545
        %v1108 = vunpack.c.l.b16 %v546
        %v1109 = vunpack.c.h.b16 %v546
        %v1110 = vunpack.c.l.b16 %v547
        %v1111 = vunpack.c.h.b16 %v547
        %v1112 = vunpack.c.l.b16 %v548
        %v1113 = vunpack.c.h.b16 %v548
        %v1114 = vunpack.c.l.b16 %v549
        %v1115 = vunpack.c.h.b16 %v549
        %v1116 = vunpack.c.l.b16 %v550
        %v1117 = vunpack.c.h.b16 %v550
        %v1118 = vunpack.c.l.b16 %v551
        %v1119 = vunpack.c.h.b16 %v551
        %v1120 = vunpack.c.l.b16 %v552
        %v1121 = vunpack.c.h.b16 %v552
        %v1122 = vunpack.c.l.b16 %v553
        %v1123 = vunpack.c.h.b16 %v553
        %v1124 = vunpack.c.l.b16 %v554
        %v1125 = vunpack.c.h.b16 %v554
        %v1126 = vunpack.c.l.b16 %v555
        %v1127 = vunpack.c.h.b16 %v555
        %v1128 = vunpack.c.l.b16 %v556
        %v1129 = vunpack.c.h.b16 %v556
        %v1130 = vunpack.c.l.b16 %v557
        %v1131 = vunpack.c.h.b16 %v557
        %v1132 = vunpack.c.l.b16 %v558
        %v1133 = vunpack.c.h.b16 %v558
        %v1134 = vunpack.c.l.b16 %v559
        %v1135 = vunpack.c.h.b16 %v559
        %v1136 = vunpack.c.l.b16 %v560
        %v1137 = vunpack.c.h.b16 %v560
        %v1138 = vunpack.c.l.b16 %v561
        %v1139 = vunpack.c.h.b16 %v561
        %v1140 = vunpack.c.l.b16 %v562
        %v1141 = vunpack.c.h.b16 %v562
        %v1142 = vunpack.c.l.b16 %v563
        %v1143 = vunpack.c.h.b16 %v563
        %v1144 = vunpack.c.l.b16 %v564
        %v1145 = vunpack.c.h.b16 %v564
        %v1146 = vunpack.c.l.b16 %v565
        %v1147 = vunpack.c.h.b16 %v565
        %v1148 = vunpack.c.l.b16 %v566
        %v1149 = vunpack.c.h.b16 %v566
        %v1150 = vunpack.c.l.b16 %v567
        %v1151 = vunpack.c.h.b16 %v567
        %v1152 = vunpack.c.l.b16 %v568
        %v1153 = vunpack.c.h.b16 %v568
        %v1154 = vunpack.c.l.b16 %v569
        %v1155 = vunpack.c.h.b16 %v569
        %v1156 = vunpack.c.l.b16 %v570
        %v1157 = vunpack.c.h.b16 %v570
        %v1158 = vunpack.c.l.b16 %v571
        %v1159 = vunpack.c.h.b16 %v571
        %v1160 = vunpack.c.l.b16 %v572
        %v1161 = vunpack.c.h.b16 %v572
        %v1162 = vunpack.c.l.b16 %v573
        %v1163 = vunpack.c.h.b16 %v573
        %v1164 = vunpack.c.l.b16 %v574
        %v1165 = vunpack.c.h.b16 %v574
        %v1166 = vunpack.c.l.b16 %v575
        %v1167 = vunpack.c.h.b16 %v575
        %v1168 = vunpack.c.l.b16 %v576
        %v1169 = vunpack.c.h.b16 %v576
        %v1170 = vunpack.c.l.b16 %v577
        %v1171 = vunpack.c.h.b16 %v577
        %v1172 = vunpack.c.l.b16 %v578
        %v1173 = vunpack.c.h.b16 %v578
        %v1174 = vunpack.c.l.b16 %v579
        %v1175 = vunpack.c.h.b16 %v579
        %v1176 = vunpack.c.l.b16 %v580
        %v1177 = vunpack.c.h.b16 %v580
        %v1178 = vunpack.c.l.b16 %v581
        %v1179 = vunpack.c.h.b16 %v581
        %v1180 = vunpack.c.l.b16 %v582
        %v1181 = vunpack.c.h.b16 %v582
        %v1182 = vunpack.c.l.b16 %v583
        %v1183 = vunpack.c.h.b16 %v583
        %v1184 = vunpack.c.l.b16 %v584
        %v1185 = vunpack.c.h.b16 %v584
        %v1186 = vunpack.c.l.b16 %v585
        %v1187 = vunpack.c.h.b16 %v585
        %v1188 = vunpack.c.l.b16 %v586
        %v1189 = vunpack.c.h.b16 %v586
        %v1190 = vunpack.c.l.b16 %v587
        %v1191 = vunpack.c.h.b16 %v587
        %v1192 = vunpack.c.l.b16 %v588
        %v1193 = vunpack.c.h.b16 %v588
        %v1194 = vunpack.c.l.b16 %v589
        %v1195 = vunpack.c.h.b16 %v589
        %v1196 = vunpack.c.l.b16 %v590
        %v1197 = vunpack.c.h.b16 %v590
        %v1198 = vunpack.c.l.b16 %v591
        %v1199 = vunpack.c.h.b16 %v591
        %v1200 = vunpack.c.l.b16 %v592
        %v1201 = vunpack.c.h.b16 %v592
        %v1202 = vunpack.c.l.b16 %v593
        %v1203 = vunpack.c.h.b16 %v593
        %v1204 = vunpack.c.l.b16 %v594
        %v1205 = vunpack.c.h.b16 %v594
        %v1206 = vunpack.c.l.b16 %v595
        %v1207 = vunpack.c.h.b16 %v595
        %v1208 = vunpack.c.l.b16 %v596
        %v1209 = vunpack.c.h.b16 %v596
        %v1210 = vunpack.c.l.b16 %v597
        %v1211 = vunpack.c.h.b16 %v597
        %v1212 = vunpack.c.l.b16 %v598
        %v1213 = vunpack.c.h.b16 %v598
        %v1214 = vunpack.c.l.b16 %v599
        %v1215 = vunpack.c.h.b16 %v599
        %v1216 = vunpack.c.l.b16 %v600
        %v1217 = vunpack.c.h.b16 %v600
        %v1218 = vunpack.c.l.b16 %v601
        %v1219 = vunpack.c.h.b16 %v601
        %v1220 = vunpack.c.l.b16 %v602
        %v1221 = vunpack.c.h.b16 %v602
        %v1222 = vunpack.c.l.b16 %v603
        %v1223 = vunpack.c.h.b16 %v603
        %v1224 = vunpack.c.l.b16 %v604
        %v1225 = vunpack.c.h.b16 %v604
        %v1226 = vunpack.c.l.b16 %v605
        %v1227 = vunpack.c.h.b16 %v605
        %v1228 = vunpack.c.l.b16 %v606
        %v1229 = vunpack.c.h.b16 %v606
        %v1230 = vunpack.c.l.b16 %v607
        %v1231 = vunpack.c.h.b16 %v607
        %v1232 = vpack.c.b16 %v1010, %v1008
        %v1233 = vpack.c.b16 %v1011, %v1009
        %v1234 = vpack.c.b16 %v1014, %v1012
        %v1235 = vpack.c.b16 %v1015, %v1013
        %v1236 = vpack.c.b16 %v1018, %v1016
        %v1237 = vpack.c.b16 %v1019, %v1017
        %v1238 = vpack.c.b16 %v1022, %v1020
        %v1239 = vpack.c.b16 %v1023, %v1021
        %v1240 = vpack.c.b16 %v1026, %v1024
        %v1241 = vpack.c.b16 %v1027, %v1025
        %v1242 = vpack.c.b16 %v1030, %v1028
        %v1243 = vpack.c.b16 %v1031, %v1029
        %v1244 = vpack.c.b16 %v1034, %v1032
        %v1245 = vpack.c.b16 %v1035, %v1033
        %v1246 = vpack.c.b16 %v1038, %v1036
        %v1247 = vpack.c.b16 %v1039, %v1037
        %v1248 = vpack.c.b16 %v1042, %v1040
        %v1249 = vpack.c.b16 %v1043, %v1041
        %v1250 = vpack.c.b16 %v1046, %v1044
        %v1251 = vpack.c.b16 %v1047, %v1045
        %v1252 = vpack.c.b16 %v1050, %v1048
        %v1253 = vpack.c.b16 %v1051, %v1049
        %v1254 = vpack.c.b16 %v1054, %v1052
        %v1255 = vpack.c.b16 %v1055, %v1053
        %v1256 = vpack.c.b16 %v1058, %v1056
        %v1257 = vpack.c.b16 %v1059, %v1057
        %v1258 = vpack.c.b16 %v1062, %v1060
        %v1259 = vpack.c.b16 %v1063, %v1061
        %v1260 = vpack.c.b16 %v1066, %v1064
        %v1261 = vpack.c.b16 %v1067, %v1065
        %v1262 = vpack.c.b16 %v1070, %v1068
        %v1263 = vpack.c.b16 %v1071, %v1069
        %v1264 = vpack.c.b16 %v1074, %v1072
        %v1265 = vpack.c.b16 %v1075, %v1073
        %v1266 = vpack.c.b16 %v1078, %v1076
        %v1267 = vpack.c.b16 %v1079, %v1077
        %v1268 = vpack.c.b16 %v1082, %v1080
        %v1269 = vpack.c.b16 %v1083, %v1081
        %v1270 = vpack.c.b16 %v1086, %v1084
        %v1271 = vpack.c.b16 %v1087, %v1085
        %v1272 = vpack.c.b16 %v1090, %v1088
        %v1273 = vpack.c.b16 %v1091, %v1089
        %v1274 = vpack.c.b16 %v1094, %v1092
        %v1275 = vpack.c.b16 %v1095, %v1093
        %v1276 = vpack.c.b16 %v1098, %v1096
        %v1277 = vpack.c.b16 %v1099, %v1097
        %v1278 = vpack.c.b16 %v1102, %v1100
        %v1279 = vpack.c.b16 %v1103, %v1101
        %v1280 = vpack.c.b16 %v1106, %v1104
        %v1281 = vpack.c.b16 %v1107, %v1105
        %v1282 = vpack.c.b16 %v1110, %v1108
        %v1283 = vpack.c.b16 %v1111, %v1109
        %v1284 = vpack.c.b16 %v1114, %v1112
        %v1285 = vpack.c.b16 %v1115, %v1113
        %v1286 = vpack.c.b16 %v1118, %v1116
        %v1287 = vpack.c.b16 %v1119, %v1117
        %v1288 = vpack.c.b16 %v1122, %v1120
        %v1289 = vpack.c.b16 %v1123, %v1121
        %v1290 = vpack.c.b16 %v1126, %v1124
        %v1291 = vpack.c.b16 %v1127, %v1125
        %v1292 = vpack.c.b16 %v1130, %v1128
        %v1293 = vpack.c.b16 %v1131, %v1129
        %v1294 = vpack.c.b16 %v1134, %v1132
        %v1295 = vpack.c.b16 %v1135, %v1133
        %v1296 = vpack.c.b16 %v1138, %v1136
        %v1297 = vpack.c.b16 %v1139, %v1137
        %v1298 = vpack.c.b16 %v1142, %v1140
        %v1299 = vpack.c.b16 %v1143, %v1141
        %v1300 = vpack.c.b16 %v1146, %v1144
        %v1301 = vpack.c.b16 %v1147, %v1145
        %v1302 = vpack.c.b16 %v1150, %v1148
        %v1303 = vpack.c.b16 %v1151, %v1149
        %v1304 = vpack.c.b16 %v1154, %v1152
        %v1305 = vpack.c.b16 %v1155, %v1153
        %v1306 = vpack.c.b16 %v1158, %v1156
        %v1307 = vpack.c.b16 %v1159, %v1157
        %v1308 = vpack.c.b16 %v1162, %v1160
        %v1309 = vpack.c.b16 %v1163, %v1161
        %v1310 = vpack.c.b16 %v1166, %v1164
        %v1311 = vpack.c.b16 %v1167, %v1165
        %v1312 = vpack.c.b16 %v1170, %v1168
        %v1313 = vpack.c.b16 %v1171, %v1169
        %v1314 = vpack.c.b16 %v1174, %v1172
        %v1315 = vpack.c.b16 %v1175, %v1173
        %v1316 = vpack.c.b16 %v1178, %v1176
        %v1317 = vpack.c.b16 %v1179, %v1177
        %v1318 = vpack.c.b16 %v1182, %v1180
        %v1319 = vpack.c.b16 %v1183, %v1181
        %v1320 = vpack.c.b16 %v1186, %v1184
        %v1321 = vpack.c.b16 %v1187, %v1185
        %v1322 = vpack.c.b16 %v1190, %v1188
        %v1323 = vpack.c.b16 %v1191, %v1189
        %v1324 = vpack.c.b16 %v1194, %v1192
        %v1325 = vpack.c.b16 %v1195, %v1193
        %v1326 = vpack.c.b16 %v1198, %v1196
        %v1327 = vpack.c.b16 %v1199, %v1197
        %v1328 = vpack.c.b16 %v1202, %v1200
        %v1329 = vpack.c.b16 %v1203, %v1201
        %v1330 = vpack.c.b16 %v1206, %v1204
        %v1331 = vpack.c.b16 %v1207, %v1205
        %v1332 = vpack.c.b16 %v1210, %v1208
        %v1333 = vpack.c.b16 %v1211, %v1209
        %v1334 = vpack.c.b16 %v1214, %v1212
        %v1335 = vpack.c.b16 %v1215, %v1213
        %v1336 = vpack.c.b16 %v1218, %v1216
        %v1337 = vpack.c.b16 %v1219, %v1217
        %v1338 = vpack.c.b16 %v1222, %v1220
        %v1339 = vpack.c.b16 %v1223, %v1221
        %v1340 = vpack.c.b16 %v1226, %v1224
        %v1341 = vpack.c.b16 %v1227, %v1225
        %v1342 = vpack.c.b16 %v1230, %v1228
        %v1343 = vpack.c.b16 %v1231, %v1229
        %1456 = vmatpush.bf16.msra.mxu0 %v1246
        %1457 = vmatpush.bf16.msra.mxu0 %v1244
        %1458 = vmatpush.bf16.msra.mxu0 %v1242
        %1459 = vmatpush.bf16.msra.mxu0 %v1240
        %1460 = vmatpush.bf16.msra.mxu0 %v1238
        %1461 = vmatpush.bf16.msra.mxu0 %v1236
        %1462 = vmatpush.bf16.msra.mxu0 %v1234
        %1463 = vmatpush.bf16.msra.mxu0 %v1232
        %1464 = vmatmul.bf16.gmra.mxu0 %v784
        %v1465 = vpop.f32.mrf.mxu0
        %v1466 = vadd.f32 0.0, %v1465
        %v1467 = vpop.f32.mrf.mxu0
        %v1468 = vadd.f32 0.0, %v1467
        %1469 = vmatmul.bf16.gmra.mxu0 %v791
        %v1470 = vpop.f32.mrf.mxu0
        %v1471 = vadd.f32 0.0, %v1470
        %v1472 = vpop.f32.mrf.mxu0
        %v1473 = vadd.f32 0.0, %v1472
        %1474 = vmatmul.bf16.gmra.mxu0 %v798
        %v1475 = vpop.f32.mrf.mxu0
        %v1476 = vadd.f32 0.0, %v1475
        %v1477 = vpop.f32.mrf.mxu0
        %v1478 = vadd.f32 0.0, %v1477
        %1479 = vmatmul.bf16.gmra.mxu0 %v805
        %v1480 = vpop.f32.mrf.mxu0
        %v1481 = vadd.f32 0.0, %v1480
        %v1482 = vpop.f32.mrf.mxu0
        %v1483 = vadd.f32 0.0, %v1482
        %1484 = vmatmul.bf16.gmra.mxu0 %v812
        %v1485 = vpop.f32.mrf.mxu0
        %v1486 = vadd.f32 0.0, %v1485
        %v1487 = vpop.f32.mrf.mxu0
        %v1488 = vadd.f32 0.0, %v1487
        %1489 = vmatmul.bf16.gmra.mxu0 %v819
        %v1490 = vpop.f32.mrf.mxu0
        %v1491 = vadd.f32 0.0, %v1490
        %v1492 = vpop.f32.mrf.mxu0
        %v1493 = vadd.f32 0.0, %v1492
        %1494 = vmatmul.bf16.gmra.mxu0 %v826
        %v1495 = vpop.f32.mrf.mxu0
        %v1496 = vadd.f32 0.0, %v1495
        %v1497 = vpop.f32.mrf.mxu0
        %v1498 = vadd.f32 0.0, %v1497
        %1499 = vmatmul.bf16.gmra.mxu0 %v833
        %v1500 = vpop.f32.mrf.mxu0
        %v1501 = vadd.f32 0.0, %v1500
        %v1502 = vpop.f32.mrf.mxu0
        %v1503 = vadd.f32 0.0, %v1502
        %1504 = vdwg.mxu0
        %1505 = vmatpush.bf16.msra.mxu0 %v1262
        %1506 = vmatpush.bf16.msra.mxu0 %v1260
        %1507 = vmatpush.bf16.msra.mxu0 %v1258
        %1508 = vmatpush.bf16.msra.mxu0 %v1256
        %1509 = vmatpush.bf16.msra.mxu0 %v1254
        %1510 = vmatpush.bf16.msra.mxu0 %v1252
        %1511 = vmatpush.bf16.msra.mxu0 %v1250
        %1512 = vmatpush.bf16.msra.mxu0 %v1248
        %1513 = vmatmul.bf16.gmra.mxu0 %v785
        %v1514 = vpop.f32.mrf.mxu0
        %v1515 = vadd.f32 %v1466, %v1514
        %v1516 = vpop.f32.mrf.mxu0
        %v1517 = vadd.f32 %v1468, %v1516
        %1518 = vmatmul.bf16.gmra.mxu0 %v792
        %v1519 = vpop.f32.mrf.mxu0
        %v1520 = vadd.f32 %v1471, %v1519
        %v1521 = vpop.f32.mrf.mxu0
        %v1522 = vadd.f32 %v1473, %v1521
        %1523 = vmatmul.bf16.gmra.mxu0 %v799
        %v1524 = vpop.f32.mrf.mxu0
        %v1525 = vadd.f32 %v1476, %v1524
        %v1526 = vpop.f32.mrf.mxu0
        %v1527 = vadd.f32 %v1478, %v1526
        %1528 = vmatmul.bf16.gmra.mxu0 %v806
        %v1529 = vpop.f32.mrf.mxu0
        %v1530 = vadd.f32 %v1481, %v1529
        %v1531 = vpop.f32.mrf.mxu0
        %v1532 = vadd.f32 %v1483, %v1531
        %1533 = vmatmul.bf16.gmra.mxu0 %v813
        %v1534 = vpop.f32.mrf.mxu0
        %v1535 = vadd.f32 %v1486, %v1534
        %v1536 = vpop.f32.mrf.mxu0
        %v1537 = vadd.f32 %v1488, %v1536
        %1538 = vmatmul.bf16.gmra.mxu0 %v820
        %v1539 = vpop.f32.mrf.mxu0
        %v1540 = vadd.f32 %v1491, %v1539
        %v1541 = vpop.f32.mrf.mxu0
        %v1542 = vadd.f32 %v1493, %v1541
        %1543 = vmatmul.bf16.gmra.mxu0 %v827
        %v1544 = vpop.f32.mrf.mxu0
        %v1545 = vadd.f32 %v1496, %v1544
        %v1546 = vpop.f32.mrf.mxu0
        %v1547 = vadd.f32 %v1498, %v1546
        %1548 = vmatmul.bf16.gmra.mxu0 %v834
        %v1549 = vpop.f32.mrf.mxu0
        %v1550 = vadd.f32 %v1501, %v1549
        %v1551 = vpop.f32.mrf.mxu0
        %v1552 = vadd.f32 %v1503, %v1551
        %1553 = vdwg.mxu0
        %1554 = vmatpush.bf16.msra.mxu0 %v1278
        %1555 = vmatpush.bf16.msra.mxu0 %v1276
        %1556 = vmatpush.bf16.msra.mxu0 %v1274
        %1557 = vmatpush.bf16.msra.mxu0 %v1272
        %1558 = vmatpush.bf16.msra.mxu0 %v1270
        %1559 = vmatpush.bf16.msra.mxu0 %v1268
        %1560 = vmatpush.bf16.msra.mxu0 %v1266
        %1561 = vmatpush.bf16.msra.mxu0 %v1264
        %1562 = vmatmul.bf16.gmra.mxu0 %v786
        %v1563 = vpop.f32.mrf.mxu0
        %v1564 = vadd.f32 %v1515, %v1563
        %v1565 = vpop.f32.mrf.mxu0
        %v1566 = vadd.f32 %v1517, %v1565
        %1567 = vmatmul.bf16.gmra.mxu0 %v793
        %v1568 = vpop.f32.mrf.mxu0
        %v1569 = vadd.f32 %v1520, %v1568
        %v1570 = vpop.f32.mrf.mxu0
        %v1571 = vadd.f32 %v1522, %v1570
        %1572 = vmatmul.bf16.gmra.mxu0 %v800
        %v1573 = vpop.f32.mrf.mxu0
        %v1574 = vadd.f32 %v1525, %v1573
        %v1575 = vpop.f32.mrf.mxu0
        %v1576 = vadd.f32 %v1527, %v1575
        %1577 = vmatmul.bf16.gmra.mxu0 %v807
        %v1578 = vpop.f32.mrf.mxu0
        %v1579 = vadd.f32 %v1530, %v1578
        %v1580 = vpop.f32.mrf.mxu0
        %v1581 = vadd.f32 %v1532, %v1580
        %1582 = vmatmul.bf16.gmra.mxu0 %v814
        %v1583 = vpop.f32.mrf.mxu0
        %v1584 = vadd.f32 %v1535, %v1583
        %v1585 = vpop.f32.mrf.mxu0
        %v1586 = vadd.f32 %v1537, %v1585
        %1587 = vmatmul.bf16.gmra.mxu0 %v821
        %v1588 = vpop.f32.mrf.mxu0
        %v1589 = vadd.f32 %v1540, %v1588
        %v1590 = vpop.f32.mrf.mxu0
        %v1591 = vadd.f32 %v1542, %v1590
        %1592 = vmatmul.bf16.gmra.mxu0 %v828
        %v1593 = vpop.f32.mrf.mxu0
        %v1594 = vadd.f32 %v1545, %v1593
        %v1595 = vpop.f32.mrf.mxu0
        %v1596 = vadd.f32 %v1547, %v1595
        %1597 = vmatmul.bf16.gmra.mxu0 %v835
        %v1598 = vpop.f32.mrf.mxu0
        %v1599 = vadd.f32 %v1550, %v1598
        %v1600 = vpop.f32.mrf.mxu0
        %v1601 = vadd.f32 %v1552, %v1600
        %1602 = vdwg.mxu0
        %1603 = vmatpush.bf16.msra.mxu0 %v1294
        %1604 = vmatpush.bf16.msra.mxu0 %v1292
        %1605 = vmatpush.bf16.msra.mxu0 %v1290
        %1606 = vmatpush.bf16.msra.mxu0 %v1288
        %1607 = vmatpush.bf16.msra.mxu0 %v1286
        %1608 = vmatpush.bf16.msra.mxu0 %v1284
        %1609 = vmatpush.bf16.msra.mxu0 %v1282
        %1610 = vmatpush.bf16.msra.mxu0 %v1280
        %1611 = vmatmul.bf16.gmra.mxu0 %v787
        %v1612 = vpop.f32.mrf.mxu0
        %v1613 = vadd.f32 %v1564, %v1612
        %v1614 = vpop.f32.mrf.mxu0
        %v1615 = vadd.f32 %v1566, %v1614
        %1616 = vmatmul.bf16.gmra.mxu0 %v794
        %v1617 = vpop.f32.mrf.mxu0
        %v1618 = vadd.f32 %v1569, %v1617
        %v1619 = vpop.f32.mrf.mxu0
        %v1620 = vadd.f32 %v1571, %v1619
        %1621 = vmatmul.bf16.gmra.mxu0 %v801
        %v1622 = vpop.f32.mrf.mxu0
        %v1623 = vadd.f32 %v1574, %v1622
        %v1624 = vpop.f32.mrf.mxu0
        %v1625 = vadd.f32 %v1576, %v1624
        %1626 = vmatmul.bf16.gmra.mxu0 %v808
        %v1627 = vpop.f32.mrf.mxu0
        %v1628 = vadd.f32 %v1579, %v1627
        %v1629 = vpop.f32.mrf.mxu0
        %v1630 = vadd.f32 %v1581, %v1629
        %1631 = vmatmul.bf16.gmra.mxu0 %v815
        %v1632 = vpop.f32.mrf.mxu0
        %v1633 = vadd.f32 %v1584, %v1632
        %v1634 = vpop.f32.mrf.mxu0
        %v1635 = vadd.f32 %v1586, %v1634
        %1636 = vmatmul.bf16.gmra.mxu0 %v822
        %v1637 = vpop.f32.mrf.mxu0
        %v1638 = vadd.f32 %v1589, %v1637
        %v1639 = vpop.f32.mrf.mxu0
        %v1640 = vadd.f32 %v1591, %v1639
        %1641 = vmatmul.bf16.gmra.mxu0 %v829
        %v1642 = vpop.f32.mrf.mxu0
        %v1643 = vadd.f32 %v1594, %v1642
        %v1644 = vpop.f32.mrf.mxu0
        %v1645 = vadd.f32 %v1596, %v1644
        %1646 = vmatmul.bf16.gmra.mxu0 %v836
        %v1647 = vpop.f32.mrf.mxu0
        %v1648 = vadd.f32 %v1599, %v1647
        %v1649 = vpop.f32.mrf.mxu0
        %v1650 = vadd.f32 %v1601, %v1649
        %1651 = vdwg.mxu0
        %1652 = vmatpush.bf16.msra.mxu0 %v1310
        %1653 = vmatpush.bf16.msra.mxu0 %v1308
        %1654 = vmatpush.bf16.msra.mxu0 %v1306
        %1655 = vmatpush.bf16.msra.mxu0 %v1304
        %1656 = vmatpush.bf16.msra.mxu0 %v1302
        %1657 = vmatpush.bf16.msra.mxu0 %v1300
        %1658 = vmatpush.bf16.msra.mxu0 %v1298
        %1659 = vmatpush.bf16.msra.mxu0 %v1296
        %1660 = vmatmul.bf16.gmra.mxu0 %v788
        %v1661 = vpop.f32.mrf.mxu0
        %v1662 = vadd.f32 %v1613, %v1661
        %v1663 = vpop.f32.mrf.mxu0
        %v1664 = vadd.f32 %v1615, %v1663
        %1665 = vmatmul.bf16.gmra.mxu0 %v795
        %v1666 = vpop.f32.mrf.mxu0
        %v1667 = vadd.f32 %v1618, %v1666
        %v1668 = vpop.f32.mrf.mxu0
        %v1669 = vadd.f32 %v1620, %v1668
        %1670 = vmatmul.bf16.gmra.mxu0 %v802
        %v1671 = vpop.f32.mrf.mxu0
        %v1672 = vadd.f32 %v1623, %v1671
        %v1673 = vpop.f32.mrf.mxu0
        %v1674 = vadd.f32 %v1625, %v1673
        %1675 = vmatmul.bf16.gmra.mxu0 %v809
        %v1676 = vpop.f32.mrf.mxu0
        %v1677 = vadd.f32 %v1628, %v1676
        %v1678 = vpop.f32.mrf.mxu0
        %v1679 = vadd.f32 %v1630, %v1678
        %1680 = vmatmul.bf16.gmra.mxu0 %v816
        %v1681 = vpop.f32.mrf.mxu0
        %v1682 = vadd.f32 %v1633, %v1681
        %v1683 = vpop.f32.mrf.mxu0
        %v1684 = vadd.f32 %v1635, %v1683
        %1685 = vmatmul.bf16.gmra.mxu0 %v823
        %v1686 = vpop.f32.mrf.mxu0
        %v1687 = vadd.f32 %v1638, %v1686
        %v1688 = vpop.f32.mrf.mxu0
        %v1689 = vadd.f32 %v1640, %v1688
        %1690 = vmatmul.bf16.gmra.mxu0 %v830
        %v1691 = vpop.f32.mrf.mxu0
        %v1692 = vadd.f32 %v1643, %v1691
        %v1693 = vpop.f32.mrf.mxu0
        %v1694 = vadd.f32 %v1645, %v1693
        %1695 = vmatmul.bf16.gmra.mxu0 %v837
        %v1696 = vpop.f32.mrf.mxu0
        %v1697 = vadd.f32 %v1648, %v1696
        %v1698 = vpop.f32.mrf.mxu0
        %v1699 = vadd.f32 %v1650, %v1698
        %1700 = vdwg.mxu0
        %1701 = vmatpush.bf16.msra.mxu0 %v1326
        %1702 = vmatpush.bf16.msra.mxu0 %v1324
        %1703 = vmatpush.bf16.msra.mxu0 %v1322
        %1704 = vmatpush.bf16.msra.mxu0 %v1320
        %1705 = vmatpush.bf16.msra.mxu0 %v1318
        %1706 = vmatpush.bf16.msra.mxu0 %v1316
        %1707 = vmatpush.bf16.msra.mxu0 %v1314
        %1708 = vmatpush.bf16.msra.mxu0 %v1312
        %1709 = vmatmul.bf16.gmra.mxu0 %v789
        %v1710 = vpop.f32.mrf.mxu0
        %v1711 = vadd.f32 %v1662, %v1710
        %v1712 = vpop.f32.mrf.mxu0
        %v1713 = vadd.f32 %v1664, %v1712
        %1714 = vmatmul.bf16.gmra.mxu0 %v796
        %v1715 = vpop.f32.mrf.mxu0
        %v1716 = vadd.f32 %v1667, %v1715
        %v1717 = vpop.f32.mrf.mxu0
        %v1718 = vadd.f32 %v1669, %v1717
        %1719 = vmatmul.bf16.gmra.mxu0 %v803
        %v1720 = vpop.f32.mrf.mxu0
        %v1721 = vadd.f32 %v1672, %v1720
        %v1722 = vpop.f32.mrf.mxu0
        %v1723 = vadd.f32 %v1674, %v1722
        %1724 = vmatmul.bf16.gmra.mxu0 %v810
        %v1725 = vpop.f32.mrf.mxu0
        %v1726 = vadd.f32 %v1677, %v1725
        %v1727 = vpop.f32.mrf.mxu0
        %v1728 = vadd.f32 %v1679, %v1727
        %1729 = vmatmul.bf16.gmra.mxu0 %v817
        %v1730 = vpop.f32.mrf.mxu0
        %v1731 = vadd.f32 %v1682, %v1730
        %v1732 = vpop.f32.mrf.mxu0
        %v1733 = vadd.f32 %v1684, %v1732
        %1734 = vmatmul.bf16.gmra.mxu0 %v824
        %v1735 = vpop.f32.mrf.mxu0
        %v1736 = vadd.f32 %v1687, %v1735
        %v1737 = vpop.f32.mrf.mxu0
        %v1738 = vadd.f32 %v1689, %v1737
        %1739 = vmatmul.bf16.gmra.mxu0 %v831
        %v1740 = vpop.f32.mrf.mxu0
        %v1741 = vadd.f32 %v1692, %v1740
        %v1742 = vpop.f32.mrf.mxu0
        %v1743 = vadd.f32 %v1694, %v1742
        %1744 = vmatmul.bf16.gmra.mxu0 %v838
        %v1745 = vpop.f32.mrf.mxu0
        %v1746 = vadd.f32 %v1697, %v1745
        %v1747 = vpop.f32.mrf.mxu0
        %v1748 = vadd.f32 %v1699, %v1747
        %1749 = vdwg.mxu0
        %1750 = vmatpush.bf16.msra.mxu0 %v1342
        %1751 = vmatpush.bf16.msra.mxu0 %v1340
        %1752 = vmatpush.bf16.msra.mxu0 %v1338
        %1753 = vmatpush.bf16.msra.mxu0 %v1336
        %1754 = vmatpush.bf16.msra.mxu0 %v1334
        %1755 = vmatpush.bf16.msra.mxu0 %v1332
        %1756 = vmatpush.bf16.msra.mxu0 %v1330
        %1757 = vmatpush.bf16.msra.mxu0 %v1328
        %1758 = vmatmul.bf16.gmra.mxu0 %v790
        %v1759 = vpop.f32.mrf.mxu0
        %v1760 = vadd.f32 %v1711, %v1759
        %v1761 = vpop.f32.mrf.mxu0
        %v1762 = vadd.f32 %v1713, %v1761
        %1763 = vmatmul.bf16.gmra.mxu0 %v797
        %v1764 = vpop.f32.mrf.mxu0
        %v1765 = vadd.f32 %v1716, %v1764
        %v1766 = vpop.f32.mrf.mxu0
        %v1767 = vadd.f32 %v1718, %v1766
        %1768 = vmatmul.bf16.gmra.mxu0 %v804
        %v1769 = vpop.f32.mrf.mxu0
        %v1770 = vadd.f32 %v1721, %v1769
        %v1771 = vpop.f32.mrf.mxu0
        %v1772 = vadd.f32 %v1723, %v1771
        %1773 = vmatmul.bf16.gmra.mxu0 %v811
        %v1774 = vpop.f32.mrf.mxu0
        %v1775 = vadd.f32 %v1726, %v1774
        %v1776 = vpop.f32.mrf.mxu0
        %v1777 = vadd.f32 %v1728, %v1776
        %1778 = vmatmul.bf16.gmra.mxu0 %v818
        %v1779 = vpop.f32.mrf.mxu0
        %v1780 = vadd.f32 %v1731, %v1779
        %v1781 = vpop.f32.mrf.mxu0
        %v1782 = vadd.f32 %v1733, %v1781
        %1783 = vmatmul.bf16.gmra.mxu0 %v825
        %v1784 = vpop.f32.mrf.mxu0
        %v1785 = vadd.f32 %v1736, %v1784
        %v1786 = vpop.f32.mrf.mxu0
        %v1787 = vadd.f32 %v1738, %v1786
        %1788 = vmatmul.bf16.gmra.mxu0 %v832
        %v1789 = vpop.f32.mrf.mxu0
        %v1790 = vadd.f32 %v1741, %v1789
        %v1791 = vpop.f32.mrf.mxu0
        %v1792 = vadd.f32 %v1743, %v1791
        %1793 = vmatmul.bf16.gmra.mxu0 %v839
        %v1794 = vpop.f32.mrf.mxu0
        %v1795 = vadd.f32 %v1746, %v1794
        %v1796 = vpop.f32.mrf.mxu0
        %v1797 = vadd.f32 %v1748, %v1796
        %1798 = vdwg.mxu0
        %1799 = vmatpush.bf16.msra.mxu0 %v1247
        %1800 = vmatpush.bf16.msra.mxu0 %v1245
        %1801 = vmatpush.bf16.msra.mxu0 %v1243
        %1802 = vmatpush.bf16.msra.mxu0 %v1241
        %1803 = vmatpush.bf16.msra.mxu0 %v1239
        %1804 = vmatpush.bf16.msra.mxu0 %v1237
        %1805 = vmatpush.bf16.msra.mxu0 %v1235
        %1806 = vmatpush.bf16.msra.mxu0 %v1233
        %1807 = vmatmul.bf16.gmra.mxu0 %v784
        %v1808 = vpop.f32.mrf.mxu0
        %v1809 = vadd.f32 0.0, %v1808
        %v1810 = vpop.f32.mrf.mxu0
        %v1811 = vadd.f32 0.0, %v1810
        %1812 = vmatmul.bf16.gmra.mxu0 %v791
        %v1813 = vpop.f32.mrf.mxu0
        %v1814 = vadd.f32 0.0, %v1813
        %v1815 = vpop.f32.mrf.mxu0
        %v1816 = vadd.f32 0.0, %v1815
        %1817 = vmatmul.bf16.gmra.mxu0 %v798
        %v1818 = vpop.f32.mrf.mxu0
        %v1819 = vadd.f32 0.0, %v1818
        %v1820 = vpop.f32.mrf.mxu0
        %v1821 = vadd.f32 0.0, %v1820
        %1822 = vmatmul.bf16.gmra.mxu0 %v805
        %v1823 = vpop.f32.mrf.mxu0
        %v1824 = vadd.f32 0.0, %v1823
        %v1825 = vpop.f32.mrf.mxu0
        %v1826 = vadd.f32 0.0, %v1825
        %1827 = vmatmul.bf16.gmra.mxu0 %v812
        %v1828 = vpop.f32.mrf.mxu0
        %v1829 = vadd.f32 0.0, %v1828
        %v1830 = vpop.f32.mrf.mxu0
        %v1831 = vadd.f32 0.0, %v1830
        %1832 = vmatmul.bf16.gmra.mxu0 %v819
        %v1833 = vpop.f32.mrf.mxu0
        %v1834 = vadd.f32 0.0, %v1833
        %v1835 = vpop.f32.mrf.mxu0
        %v1836 = vadd.f32 0.0, %v1835
        %1837 = vmatmul.bf16.gmra.mxu0 %v826
        %v1838 = vpop.f32.mrf.mxu0
        %v1839 = vadd.f32 0.0, %v1838
        %v1840 = vpop.f32.mrf.mxu0
        %v1841 = vadd.f32 0.0, %v1840
        %1842 = vmatmul.bf16.gmra.mxu0 %v833
        %v1843 = vpop.f32.mrf.mxu0
        %v1844 = vadd.f32 0.0, %v1843
        %v1845 = vpop.f32.mrf.mxu0
        %v1846 = vadd.f32 0.0, %v1845
        %1847 = vdwg.mxu0
        %1848 = vmatpush.bf16.msra.mxu0 %v1263
        %1849 = vmatpush.bf16.msra.mxu0 %v1261
        %1850 = vmatpush.bf16.msra.mxu0 %v1259
        %1851 = vmatpush.bf16.msra.mxu0 %v1257
        %1852 = vmatpush.bf16.msra.mxu0 %v1255
        %1853 = vmatpush.bf16.msra.mxu0 %v1253
        %1854 = vmatpush.bf16.msra.mxu0 %v1251
        %1855 = vmatpush.bf16.msra.mxu0 %v1249
        %1856 = vmatmul.bf16.gmra.mxu0 %v785
        %v1857 = vpop.f32.mrf.mxu0
        %v1858 = vadd.f32 %v1809, %v1857
        %v1859 = vpop.f32.mrf.mxu0
        %v1860 = vadd.f32 %v1811, %v1859
        %1861 = vmatmul.bf16.gmra.mxu0 %v792
        %v1862 = vpop.f32.mrf.mxu0
        %v1863 = vadd.f32 %v1814, %v1862
        %v1864 = vpop.f32.mrf.mxu0
        %v1865 = vadd.f32 %v1816, %v1864
        %1866 = vmatmul.bf16.gmra.mxu0 %v799
        %v1867 = vpop.f32.mrf.mxu0
        %v1868 = vadd.f32 %v1819, %v1867
        %v1869 = vpop.f32.mrf.mxu0
        %v1870 = vadd.f32 %v1821, %v1869
        %1871 = vmatmul.bf16.gmra.mxu0 %v806
        %v1872 = vpop.f32.mrf.mxu0
        %v1873 = vadd.f32 %v1824, %v1872
        %v1874 = vpop.f32.mrf.mxu0
        %v1875 = vadd.f32 %v1826, %v1874
        %1876 = vmatmul.bf16.gmra.mxu0 %v813
        %v1877 = vpop.f32.mrf.mxu0
        %v1878 = vadd.f32 %v1829, %v1877
        %v1879 = vpop.f32.mrf.mxu0
        %v1880 = vadd.f32 %v1831, %v1879
        %1881 = vmatmul.bf16.gmra.mxu0 %v820
        %v1882 = vpop.f32.mrf.mxu0
        %v1883 = vadd.f32 %v1834, %v1882
        %v1884 = vpop.f32.mrf.mxu0
        %v1885 = vadd.f32 %v1836, %v1884
        %1886 = vmatmul.bf16.gmra.mxu0 %v827
        %v1887 = vpop.f32.mrf.mxu0
        %v1888 = vadd.f32 %v1839, %v1887
        %v1889 = vpop.f32.mrf.mxu0
        %v1890 = vadd.f32 %v1841, %v1889
        %1891 = vmatmul.bf16.gmra.mxu0 %v834
        %v1892 = vpop.f32.mrf.mxu0
        %v1893 = vadd.f32 %v1844, %v1892
        %v1894 = vpop.f32.mrf.mxu0
        %v1895 = vadd.f32 %v1846, %v1894
        %1896 = vdwg.mxu0
        %1897 = vmatpush.bf16.msra.mxu0 %v1279
        %1898 = vmatpush.bf16.msra.mxu0 %v1277
        %1899 = vmatpush.bf16.msra.mxu0 %v1275
        %1900 = vmatpush.bf16.msra.mxu0 %v1273
        %1901 = vmatpush.bf16.msra.mxu0 %v1271
        %1902 = vmatpush.bf16.msra.mxu0 %v1269
        %1903 = vmatpush.bf16.msra.mxu0 %v1267
        %1904 = vmatpush.bf16.msra.mxu0 %v1265
        %1905 = vmatmul.bf16.gmra.mxu0 %v786
        %v1906 = vpop.f32.mrf.mxu0
        %v1907 = vadd.f32 %v1858, %v1906
        %v1908 = vpop.f32.mrf.mxu0
        %v1909 = vadd.f32 %v1860, %v1908
        %1910 = vmatmul.bf16.gmra.mxu0 %v793
        %v1911 = vpop.f32.mrf.mxu0
        %v1912 = vadd.f32 %v1863, %v1911
        %v1913 = vpop.f32.mrf.mxu0
        %v1914 = vadd.f32 %v1865, %v1913
        %1915 = vmatmul.bf16.gmra.mxu0 %v800
        %v1916 = vpop.f32.mrf.mxu0
        %v1917 = vadd.f32 %v1868, %v1916
        %v1918 = vpop.f32.mrf.mxu0
        %v1919 = vadd.f32 %v1870, %v1918
        %1920 = vmatmul.bf16.gmra.mxu0 %v807
        %v1921 = vpop.f32.mrf.mxu0
        %v1922 = vadd.f32 %v1873, %v1921
        %v1923 = vpop.f32.mrf.mxu0
        %v1924 = vadd.f32 %v1875, %v1923
        %1925 = vmatmul.bf16.gmra.mxu0 %v814
        %v1926 = vpop.f32.mrf.mxu0
        %v1927 = vadd.f32 %v1878, %v1926
        %v1928 = vpop.f32.mrf.mxu0
        %v1929 = vadd.f32 %v1880, %v1928
        %1930 = vmatmul.bf16.gmra.mxu0 %v821
        %v1931 = vpop.f32.mrf.mxu0
        %v1932 = vadd.f32 %v1883, %v1931
        %v1933 = vpop.f32.mrf.mxu0
        %v1934 = vadd.f32 %v1885, %v1933
        %1935 = vmatmul.bf16.gmra.mxu0 %v828
        %v1936 = vpop.f32.mrf.mxu0
        %v1937 = vadd.f32 %v1888, %v1936
        %v1938 = vpop.f32.mrf.mxu0
        %v1939 = vadd.f32 %v1890, %v1938
        %1940 = vmatmul.bf16.gmra.mxu0 %v835
        %v1941 = vpop.f32.mrf.mxu0
        %v1942 = vadd.f32 %v1893, %v1941
        %v1943 = vpop.f32.mrf.mxu0
        %v1944 = vadd.f32 %v1895, %v1943
        %1945 = vdwg.mxu0
        %1946 = vmatpush.bf16.msra.mxu0 %v1295
        %1947 = vmatpush.bf16.msra.mxu0 %v1293
        %1948 = vmatpush.bf16.msra.mxu0 %v1291
        %1949 = vmatpush.bf16.msra.mxu0 %v1289
        %1950 = vmatpush.bf16.msra.mxu0 %v1287
        %1951 = vmatpush.bf16.msra.mxu0 %v1285
        %1952 = vmatpush.bf16.msra.mxu0 %v1283
        %1953 = vmatpush.bf16.msra.mxu0 %v1281
        %1954 = vmatmul.bf16.gmra.mxu0 %v787
        %v1955 = vpop.f32.mrf.mxu0
        %v1956 = vadd.f32 %v1907, %v1955
        %v1957 = vpop.f32.mrf.mxu0
        %v1958 = vadd.f32 %v1909, %v1957
        %1959 = vmatmul.bf16.gmra.mxu0 %v794
        %v1960 = vpop.f32.mrf.mxu0
        %v1961 = vadd.f32 %v1912, %v1960
        %v1962 = vpop.f32.mrf.mxu0
        %v1963 = vadd.f32 %v1914, %v1962
        %1964 = vmatmul.bf16.gmra.mxu0 %v801
        %v1965 = vpop.f32.mrf.mxu0
        %v1966 = vadd.f32 %v1917, %v1965
        %v1967 = vpop.f32.mrf.mxu0
        %v1968 = vadd.f32 %v1919, %v1967
        %1969 = vmatmul.bf16.gmra.mxu0 %v808
        %v1970 = vpop.f32.mrf.mxu0
        %v1971 = vadd.f32 %v1922, %v1970
        %v1972 = vpop.f32.mrf.mxu0
        %v1973 = vadd.f32 %v1924, %v1972
        %1974 = vmatmul.bf16.gmra.mxu0 %v815
        %v1975 = vpop.f32.mrf.mxu0
        %v1976 = vadd.f32 %v1927, %v1975
        %v1977 = vpop.f32.mrf.mxu0
        %v1978 = vadd.f32 %v1929, %v1977
        %1979 = vmatmul.bf16.gmra.mxu0 %v822
        %v1980 = vpop.f32.mrf.mxu0
        %v1981 = vadd.f32 %v1932, %v1980
        %v1982 = vpop.f32.mrf.mxu0
        %v1983 = vadd.f32 %v1934, %v1982
        %1984 = vmatmul.bf16.gmra.mxu0 %v829
        %v1985 = vpop.f32.mrf.mxu0
        %v1986 = vadd.f32 %v1937, %v1985
        %v1987 = vpop.f32.mrf.mxu0
        %v1988 = vadd.f32 %v1939, %v1987
        %1989 = vmatmul.bf16.gmra.mxu0 %v836
        %v1990 = vpop.f32.mrf.mxu0
        %v1991 = vadd.f32 %v1942, %v1990
        %v1992 = vpop.f32.mrf.mxu0
        %v1993 = vadd.f32 %v1944, %v1992
        %1994 = vdwg.mxu0
        %1995 = vmatpush.bf16.msra.mxu0 %v1311
        %1996 = vmatpush.bf16.msra.mxu0 %v1309
        %1997 = vmatpush.bf16.msra.mxu0 %v1307
        %1998 = vmatpush.bf16.msra.mxu0 %v1305
        %1999 = vmatpush.bf16.msra.mxu0 %v1303
        %2000 = vmatpush.bf16.msra.mxu0 %v1301
        %2001 = vmatpush.bf16.msra.mxu0 %v1299
        %2002 = vmatpush.bf16.msra.mxu0 %v1297
        %2003 = vmatmul.bf16.gmra.mxu0 %v788
        %v2004 = vpop.f32.mrf.mxu0
        %v2005 = vadd.f32 %v1956, %v2004
        %v2006 = vpop.f32.mrf.mxu0
        %v2007 = vadd.f32 %v1958, %v2006
        %2008 = vmatmul.bf16.gmra.mxu0 %v795
        %v2009 = vpop.f32.mrf.mxu0
        %v2010 = vadd.f32 %v1961, %v2009
        %v2011 = vpop.f32.mrf.mxu0
        %v2012 = vadd.f32 %v1963, %v2011
        %2013 = vmatmul.bf16.gmra.mxu0 %v802
        %v2014 = vpop.f32.mrf.mxu0
        %v2015 = vadd.f32 %v1966, %v2014
        %v2016 = vpop.f32.mrf.mxu0
        %v2017 = vadd.f32 %v1968, %v2016
        %2018 = vmatmul.bf16.gmra.mxu0 %v809
        %v2019 = vpop.f32.mrf.mxu0
        %v2020 = vadd.f32 %v1971, %v2019
        %v2021 = vpop.f32.mrf.mxu0
        %v2022 = vadd.f32 %v1973, %v2021
        %2023 = vmatmul.bf16.gmra.mxu0 %v816
        %v2024 = vpop.f32.mrf.mxu0
        %v2025 = vadd.f32 %v1976, %v2024
        %v2026 = vpop.f32.mrf.mxu0
        %v2027 = vadd.f32 %v1978, %v2026
        %2028 = vmatmul.bf16.gmra.mxu0 %v823
        %v2029 = vpop.f32.mrf.mxu0
        %v2030 = vadd.f32 %v1981, %v2029
        %v2031 = vpop.f32.mrf.mxu0
        %v2032 = vadd.f32 %v1983, %v2031
        %2033 = vmatmul.bf16.gmra.mxu0 %v830
        %v2034 = vpop.f32.mrf.mxu0
        %v2035 = vadd.f32 %v1986, %v2034
        %v2036 = vpop.f32.mrf.mxu0
        %v2037 = vadd.f32 %v1988, %v2036
        %2038 = vmatmul.bf16.gmra.mxu0 %v837
        %v2039 = vpop.f32.mrf.mxu0
        %v2040 = vadd.f32 %v1991, %v2039
        %v2041 = vpop.f32.mrf.mxu0
        %v2042 = vadd.f32 %v1993, %v2041
        %2043 = vdwg.mxu0
        %2044 = vmatpush.bf16.msra.mxu0 %v1327
        %2045 = vmatpush.bf16.msra.mxu0 %v1325
        %2046 = vmatpush.bf16.msra.mxu0 %v1323
        %2047 = vmatpush.bf16.msra.mxu0 %v1321
        %2048 = vmatpush.bf16.msra.mxu0 %v1319
        %2049 = vmatpush.bf16.msra.mxu0 %v1317
        %2050 = vmatpush.bf16.msra.mxu0 %v1315
        %2051 = vmatpush.bf16.msra.mxu0 %v1313
        %2052 = vmatmul.bf16.gmra.mxu0 %v789
        %v2053 = vpop.f32.mrf.mxu0
        %v2054 = vadd.f32 %v2005, %v2053
        %v2055 = vpop.f32.mrf.mxu0
        %v2056 = vadd.f32 %v2007, %v2055
        %2057 = vmatmul.bf16.gmra.mxu0 %v796
        %v2058 = vpop.f32.mrf.mxu0
        %v2059 = vadd.f32 %v2010, %v2058
        %v2060 = vpop.f32.mrf.mxu0
        %v2061 = vadd.f32 %v2012, %v2060
        %2062 = vmatmul.bf16.gmra.mxu0 %v803
        %v2063 = vpop.f32.mrf.mxu0
        %v2064 = vadd.f32 %v2015, %v2063
        %v2065 = vpop.f32.mrf.mxu0
        %v2066 = vadd.f32 %v2017, %v2065
        %2067 = vmatmul.bf16.gmra.mxu0 %v810
        %v2068 = vpop.f32.mrf.mxu0
        %v2069 = vadd.f32 %v2020, %v2068
        %v2070 = vpop.f32.mrf.mxu0
        %v2071 = vadd.f32 %v2022, %v2070
        %2072 = vmatmul.bf16.gmra.mxu0 %v817
        %v2073 = vpop.f32.mrf.mxu0
        %v2074 = vadd.f32 %v2025, %v2073
        %v2075 = vpop.f32.mrf.mxu0
        %v2076 = vadd.f32 %v2027, %v2075
        %2077 = vmatmul.bf16.gmra.mxu0 %v824
        %v2078 = vpop.f32.mrf.mxu0
        %v2079 = vadd.f32 %v2030, %v2078
        %v2080 = vpop.f32.mrf.mxu0
        %v2081 = vadd.f32 %v2032, %v2080
        %2082 = vmatmul.bf16.gmra.mxu0 %v831
        %v2083 = vpop.f32.mrf.mxu0
        %v2084 = vadd.f32 %v2035, %v2083
        %v2085 = vpop.f32.mrf.mxu0
        %v2086 = vadd.f32 %v2037, %v2085
        %2087 = vmatmul.bf16.gmra.mxu0 %v838
        %v2088 = vpop.f32.mrf.mxu0
        %v2089 = vadd.f32 %v2040, %v2088
        %v2090 = vpop.f32.mrf.mxu0
        %v2091 = vadd.f32 %v2042, %v2090
        %2092 = vdwg.mxu0
        %2093 = vmatpush.bf16.msra.mxu0 %v1343
        %2094 = vmatpush.bf16.msra.mxu0 %v1341
        %2095 = vmatpush.bf16.msra.mxu0 %v1339
        %2096 = vmatpush.bf16.msra.mxu0 %v1337
        %2097 = vmatpush.bf16.msra.mxu0 %v1335
        %2098 = vmatpush.bf16.msra.mxu0 %v1333
        %2099 = vmatpush.bf16.msra.mxu0 %v1331
        %2100 = vmatpush.bf16.msra.mxu0 %v1329
        %2101 = vmatmul.bf16.gmra.mxu0 %v790
        %v2102 = vpop.f32.mrf.mxu0
        %v2103 = vadd.f32 %v2054, %v2102
        %v2104 = vpop.f32.mrf.mxu0
        %v2105 = vadd.f32 %v2056, %v2104
        %2106 = vmatmul.bf16.gmra.mxu0 %v797
        %v2107 = vpop.f32.mrf.mxu0
        %v2108 = vadd.f32 %v2059, %v2107
        %v2109 = vpop.f32.mrf.mxu0
        %v2110 = vadd.f32 %v2061, %v2109
        %2111 = vmatmul.bf16.gmra.mxu0 %v804
        %v2112 = vpop.f32.mrf.mxu0
        %v2113 = vadd.f32 %v2064, %v2112
        %v2114 = vpop.f32.mrf.mxu0
        %v2115 = vadd.f32 %v2066, %v2114
        %2116 = vmatmul.bf16.gmra.mxu0 %v811
        %v2117 = vpop.f32.mrf.mxu0
        %v2118 = vadd.f32 %v2069, %v2117
        %v2119 = vpop.f32.mrf.mxu0
        %v2120 = vadd.f32 %v2071, %v2119
        %2121 = vmatmul.bf16.gmra.mxu0 %v818
        %v2122 = vpop.f32.mrf.mxu0
        %v2123 = vadd.f32 %v2074, %v2122
        %v2124 = vpop.f32.mrf.mxu0
        %v2125 = vadd.f32 %v2076, %v2124
        %2126 = vmatmul.bf16.gmra.mxu0 %v825
        %v2127 = vpop.f32.mrf.mxu0
        %v2128 = vadd.f32 %v2079, %v2127
        %v2129 = vpop.f32.mrf.mxu0
        %v2130 = vadd.f32 %v2081, %v2129
        %2131 = vmatmul.bf16.gmra.mxu0 %v832
        %v2132 = vpop.f32.mrf.mxu0
        %v2133 = vadd.f32 %v2084, %v2132
        %v2134 = vpop.f32.mrf.mxu0
        %v2135 = vadd.f32 %v2086, %v2134
        %2136 = vmatmul.bf16.gmra.mxu0 %v839
        %v2137 = vpop.f32.mrf.mxu0
        %v2138 = vadd.f32 %v2089, %v2137
        %v2139 = vpop.f32.mrf.mxu0
        %v2140 = vadd.f32 %v2091, %v2139
        %2141 = vdwg.mxu0
        %v2142 = vpack.c.bf16 %v2103, %v1760
        %v2143 = vpack.c.bf16 %v2105, %v1762
        %v2144 = vpack.c.bf16 %v2108, %v1765
        %v2145 = vpack.c.bf16 %v2110, %v1767
        %v2146 = vpack.c.bf16 %v2113, %v1770
        %v2147 = vpack.c.bf16 %v2115, %v1772
        %v2148 = vpack.c.bf16 %v2118, %v1775
        %v2149 = vpack.c.bf16 %v2120, %v1777
        %v2150 = vpack.c.bf16 %v2123, %v1780
        %v2151 = vpack.c.bf16 %v2125, %v1782
        %v2152 = vpack.c.bf16 %v2128, %v1785
        %v2153 = vpack.c.bf16 %v2130, %v1787
        %v2154 = vpack.c.bf16 %v2133, %v1790
        %v2155 = vpack.c.bf16 %v2135, %v1792
        %v2156 = vpack.c.bf16 %v2138, %v1795
        %v2157 = vpack.c.bf16 %v2140, %v1797
        %v2158 = vld [vmem:[%s3] sm:$0x3]
        %v2160 = vperm.slane %v2158, 0
        %v2161 = vperm.slane %v2158, 1
        %v2164 = vpack.c.bf16 %v2161, %v2160
        %v2166 = vunpack.c.l.b16 %v2164
        %v2167 = vunpack.c.h.b16 %v2164
        %v2168 = vpack.c.b16 %v2166, %v2166
        %v2169 = vpack.c.b16 %v2167, %v2167
        %v2171 = vpack.i.b16 %v2168, %v2168
        %v2173 = vperm.slane %v2171, 0
        %v2175 = vpack.i.b16 %v2169, %v2169
        %v2177 = vperm.slane %v2175, 0
        %v2178 = vunpack.c.l.bf16 %v2142
        %v2179 = vunpack.c.h.bf16 %v2142
        %v2180 = vunpack.c.l.bf16 %v2143
        %v2181 = vunpack.c.h.bf16 %v2143
        %v2182 = vunpack.c.l.bf16 %v2144
        %v2183 = vunpack.c.h.bf16 %v2144
        %v2184 = vunpack.c.l.bf16 %v2145
        %v2185 = vunpack.c.h.bf16 %v2145
        %v2186 = vunpack.c.l.bf16 %v2146
        %v2187 = vunpack.c.h.bf16 %v2146
        %v2188 = vunpack.c.l.bf16 %v2147
        %v2189 = vunpack.c.h.bf16 %v2147
        %v2190 = vunpack.c.l.bf16 %v2148
        %v2191 = vunpack.c.h.bf16 %v2148
        %v2192 = vunpack.c.l.bf16 %v2149
        %v2193 = vunpack.c.h.bf16 %v2149
        %v2194 = vunpack.c.l.bf16 %v2150
        %v2195 = vunpack.c.h.bf16 %v2150
        %v2196 = vunpack.c.l.bf16 %v2151
        %v2197 = vunpack.c.h.bf16 %v2151
        %v2198 = vunpack.c.l.bf16 %v2152
        %v2199 = vunpack.c.h.bf16 %v2152
        %v2200 = vunpack.c.l.bf16 %v2153
        %v2201 = vunpack.c.h.bf16 %v2153
        %v2202 = vunpack.c.l.bf16 %v2154
        %v2203 = vunpack.c.h.bf16 %v2154
        %v2204 = vunpack.c.l.bf16 %v2155
        %v2205 = vunpack.c.h.bf16 %v2155
        %v2206 = vunpack.c.l.bf16 %v2156
        %v2207 = vunpack.c.h.bf16 %v2156
        %v2208 = vunpack.c.l.bf16 %v2157
        %v2209 = vunpack.c.h.bf16 %v2157
        %v2210 = vunpack.c.l.bf16 %v2173
        %v2211 = vunpack.c.l.bf16 %v2177
        %v2212 = vadd.f32 %v2178, %v2210
        %v2213 = vadd.f32 %v2179, %v2211
        %v2214 = vadd.f32 %v2180, %v2210
        %v2215 = vadd.f32 %v2181, %v2211
        %v2216 = vadd.f32 %v2182, %v2210
        %v2217 = vadd.f32 %v2183, %v2211
        %v2218 = vadd.f32 %v2184, %v2210
        %v2219 = vadd.f32 %v2185, %v2211
        %v2220 = vadd.f32 %v2186, %v2210
        %v2221 = vadd.f32 %v2187, %v2211
        %v2222 = vadd.f32 %v2188, %v2210
        %v2223 = vadd.f32 %v2189, %v2211
        %v2224 = vadd.f32 %v2190, %v2210
        %v2225 = vadd.f32 %v2191, %v2211
        %v2226 = vadd.f32 %v2192, %v2210
        %v2227 = vadd.f32 %v2193, %v2211
        %v2228 = vadd.f32 %v2194, %v2210
        %v2229 = vadd.f32 %v2195, %v2211
        %v2230 = vadd.f32 %v2196, %v2210
        %v2231 = vadd.f32 %v2197, %v2211
        %v2232 = vadd.f32 %v2198, %v2210
        %v2233 = vadd.f32 %v2199, %v2211
        %v2234 = vadd.f32 %v2200, %v2210
        %v2235 = vadd.f32 %v2201, %v2211
        %v2236 = vadd.f32 %v2202, %v2210
        %v2237 = vadd.f32 %v2203, %v2211
        %v2238 = vadd.f32 %v2204, %v2210
        %v2239 = vadd.f32 %v2205, %v2211
        %v2240 = vadd.f32 %v2206, %v2210
        %v2241 = vadd.f32 %v2207, %v2211
        %v2242 = vadd.f32 %v2208, %v2210
        %v2243 = vadd.f32 %v2209, %v2211
        %v2244 = vpack.c.bf16 %v2213, %v2212
        %v2245 = vpack.c.bf16 %v2215, %v2214
        %v2246 = vpack.c.bf16 %v2217, %v2216
        %v2247 = vpack.c.bf16 %v2219, %v2218
        %v2248 = vpack.c.bf16 %v2221, %v2220
        %v2249 = vpack.c.bf16 %v2223, %v2222
        %v2250 = vpack.c.bf16 %v2225, %v2224
        %v2251 = vpack.c.bf16 %v2227, %v2226
        %v2252 = vpack.c.bf16 %v2229, %v2228
        %v2253 = vpack.c.bf16 %v2231, %v2230
        %v2254 = vpack.c.bf16 %v2233, %v2232
        %v2255 = vpack.c.bf16 %v2235, %v2234
        %v2256 = vpack.c.bf16 %v2237, %v2236
        %v2257 = vpack.c.bf16 %v2239, %v2238
        %v2258 = vpack.c.bf16 %v2241, %v2240
        %v2259 = vpack.c.bf16 %v2243, %v2242
        %v2260 = vunpack.c.l.bf16 %v2244
        %v2261 = vunpack.c.h.bf16 %v2244
        %v2262 = vunpack.c.l.bf16 %v2245
        %v2263 = vunpack.c.h.bf16 %v2245
        %v2264 = vunpack.c.l.bf16 %v2246
        %v2265 = vunpack.c.h.bf16 %v2246
        %v2266 = vunpack.c.l.bf16 %v2247
        %v2267 = vunpack.c.h.bf16 %v2247
        %v2268 = vunpack.c.l.bf16 %v2248
        %v2269 = vunpack.c.h.bf16 %v2248
        %v2270 = vunpack.c.l.bf16 %v2249
        %v2271 = vunpack.c.h.bf16 %v2249
        %v2272 = vunpack.c.l.bf16 %v2250
        %v2273 = vunpack.c.h.bf16 %v2250
        %v2274 = vunpack.c.l.bf16 %v2251
        %v2275 = vunpack.c.h.bf16 %v2251
        %v2276 = vunpack.c.l.bf16 %v2252
        %v2277 = vunpack.c.h.bf16 %v2252
        %v2278 = vunpack.c.l.bf16 %v2253
        %v2279 = vunpack.c.h.bf16 %v2253
        %v2280 = vunpack.c.l.bf16 %v2254
        %v2281 = vunpack.c.h.bf16 %v2254
        %v2282 = vunpack.c.l.bf16 %v2255
        %v2283 = vunpack.c.h.bf16 %v2255
        %v2284 = vunpack.c.l.bf16 %v2256
        %v2285 = vunpack.c.h.bf16 %v2256
        %v2286 = vunpack.c.l.bf16 %v2257
        %v2287 = vunpack.c.h.bf16 %v2257
        %v2288 = vunpack.c.l.bf16 %v2258
        %v2289 = vunpack.c.h.bf16 %v2258
        %v2290 = vunpack.c.l.bf16 %v2259
        %v2291 = vunpack.c.h.bf16 %v2259
        %vm2292 = vcmp.ge.f32.partialorder %v2260, 0.0
        %vm2293 = vcmp.ge.f32.partialorder %v2261, 0.0
        %vm2294 = vcmp.ge.f32.partialorder %v2262, 0.0
        %vm2295 = vcmp.ge.f32.partialorder %v2263, 0.0
        %vm2296 = vcmp.ge.f32.partialorder %v2264, 0.0
        %vm2297 = vcmp.ge.f32.partialorder %v2265, 0.0
        %vm2298 = vcmp.ge.f32.partialorder %v2266, 0.0
        %vm2299 = vcmp.ge.f32.partialorder %v2267, 0.0
        %vm2300 = vcmp.ge.f32.partialorder %v2268, 0.0
        %vm2301 = vcmp.ge.f32.partialorder %v2269, 0.0
        %vm2302 = vcmp.ge.f32.partialorder %v2270, 0.0
        %vm2303 = vcmp.ge.f32.partialorder %v2271, 0.0
        %vm2304 = vcmp.ge.f32.partialorder %v2272, 0.0
        %vm2305 = vcmp.ge.f32.partialorder %v2273, 0.0
        %vm2306 = vcmp.ge.f32.partialorder %v2274, 0.0
        %vm2307 = vcmp.ge.f32.partialorder %v2275, 0.0
        %vm2308 = vcmp.ge.f32.partialorder %v2276, 0.0
        %vm2309 = vcmp.ge.f32.partialorder %v2277, 0.0
        %vm2310 = vcmp.ge.f32.partialorder %v2278, 0.0
        %vm2311 = vcmp.ge.f32.partialorder %v2279, 0.0
        %vm2312 = vcmp.ge.f32.partialorder %v2280, 0.0
        %vm2313 = vcmp.ge.f32.partialorder %v2281, 0.0
        %vm2314 = vcmp.ge.f32.partialorder %v2282, 0.0
        %vm2315 = vcmp.ge.f32.partialorder %v2283, 0.0
        %vm2316 = vcmp.ge.f32.partialorder %v2284, 0.0
        %vm2317 = vcmp.ge.f32.partialorder %v2285, 0.0
        %vm2318 = vcmp.ge.f32.partialorder %v2286, 0.0
        %vm2319 = vcmp.ge.f32.partialorder %v2287, 0.0
        %vm2320 = vcmp.ge.f32.partialorder %v2288, 0.0
        %vm2321 = vcmp.ge.f32.partialorder %v2289, 0.0
        %vm2322 = vcmp.ge.f32.partialorder %v2290, 0.0
        %vm2323 = vcmp.ge.f32.partialorder %v2291, 0.0
        %s2324 = sshll.u32 %s420, 16
        %s2325 = sor.u32 %s420, %s2324
        %v2326 = vstv %s2325
        %v2328 = vunpack.c.l.bf16 %v2326
        %v2329 = vmul.f32 %v2328, %v2260
        %v2330 = vmul.f32 %v2328, %v2261
        %v2331 = vmul.f32 %v2328, %v2262
        %v2332 = vmul.f32 %v2328, %v2263
        %v2333 = vmul.f32 %v2328, %v2264
        %v2334 = vmul.f32 %v2328, %v2265
        %v2335 = vmul.f32 %v2328, %v2266
        %v2336 = vmul.f32 %v2328, %v2267
        %v2337 = vmul.f32 %v2328, %v2268
        %v2338 = vmul.f32 %v2328, %v2269
        %v2339 = vmul.f32 %v2328, %v2270
        %v2340 = vmul.f32 %v2328, %v2271
        %v2341 = vmul.f32 %v2328, %v2272
        %v2342 = vmul.f32 %v2328, %v2273
        %v2343 = vmul.f32 %v2328, %v2274
        %v2344 = vmul.f32 %v2328, %v2275
        %v2345 = vmul.f32 %v2328, %v2276
        %v2346 = vmul.f32 %v2328, %v2277
        %v2347 = vmul.f32 %v2328, %v2278
        %v2348 = vmul.f32 %v2328, %v2279
        %v2349 = vmul.f32 %v2328, %v2280
        %v2350 = vmul.f32 %v2328, %v2281
        %v2351 = vmul.f32 %v2328, %v2282
        %v2352 = vmul.f32 %v2328, %v2283
        %v2353 = vmul.f32 %v2328, %v2284
        %v2354 = vmul.f32 %v2328, %v2285
        %v2355 = vmul.f32 %v2328, %v2286
        %v2356 = vmul.f32 %v2328, %v2287
        %v2357 = vmul.f32 %v2328, %v2288
        %v2358 = vmul.f32 %v2328, %v2289
        %v2359 = vmul.f32 %v2328, %v2290
        %v2360 = vmul.f32 %v2328, %v2291
        %v2361 = vpack.c.bf16 %v2330, %v2329
        %v2362 = vpack.c.bf16 %v2332, %v2331
        %v2363 = vpack.c.bf16 %v2334, %v2333
        %v2364 = vpack.c.bf16 %v2336, %v2335
        %v2365 = vpack.c.bf16 %v2338, %v2337
        %v2366 = vpack.c.bf16 %v2340, %v2339
        %v2367 = vpack.c.bf16 %v2342, %v2341
        %v2368 = vpack.c.bf16 %v2344, %v2343
        %v2369 = vpack.c.bf16 %v2346, %v2345
        %v2370 = vpack.c.bf16 %v2348, %v2347
        %v2371 = vpack.c.bf16 %v2350, %v2349
        %v2372 = vpack.c.bf16 %v2352, %v2351
        %v2373 = vpack.c.bf16 %v2354, %v2353
        %v2374 = vpack.c.bf16 %v2356, %v2355
        %v2375 = vpack.c.bf16 %v2358, %v2357
        %v2376 = vpack.c.bf16 %v2360, %v2359
        %vm2377 = vmpackc.low %vm2293, %vm2292
        %vm2378 = vmpackc.low %vm2295, %vm2294
        %vm2379 = vmpackc.low %vm2297, %vm2296
        %vm2380 = vmpackc.low %vm2299, %vm2298
        %vm2381 = vmpackc.low %vm2301, %vm2300
        %vm2382 = vmpackc.low %vm2303, %vm2302
        %vm2383 = vmpackc.low %vm2305, %vm2304
        %vm2384 = vmpackc.low %vm2307, %vm2306
        %vm2385 = vmpackc.low %vm2309, %vm2308
        %vm2386 = vmpackc.low %vm2311, %vm2310
        %vm2387 = vmpackc.low %vm2313, %vm2312
        %vm2388 = vmpackc.low %vm2315, %vm2314
        %vm2389 = vmpackc.low %vm2317, %vm2316
        %vm2390 = vmpackc.low %vm2319, %vm2318
        %vm2391 = vmpackc.low %vm2321, %vm2320
        %vm2392 = vmpackc.low %vm2323, %vm2322
        %v2393 = vsel %vm2377, %v2244, %v2361
        %v2394 = vsel %vm2378, %v2245, %v2362
        %v2395 = vsel %vm2379, %v2246, %v2363
        %v2396 = vsel %vm2380, %v2247, %v2364
        %v2397 = vsel %vm2381, %v2248, %v2365
        %v2398 = vsel %vm2382, %v2249, %v2366
        %v2399 = vsel %vm2383, %v2250, %v2367
        %v2400 = vsel %vm2384, %v2251, %v2368
        %v2401 = vsel %vm2385, %v2252, %v2369
        %v2402 = vsel %vm2386, %v2253, %v2370
        %v2403 = vsel %vm2387, %v2254, %v2371
        %v2404 = vsel %vm2388, %v2255, %v2372
        %v2405 = vsel %vm2389, %v2256, %v2373
        %v2406 = vsel %vm2390, %v2257, %v2374
        %v2407 = vsel %vm2391, %v2258, %v2375
        %v2408 = vsel %vm2392, %v2259, %v2376
        %v2409 = vld [vmem:[#allocation9] sm:$0xff]
        %v2410 = vld [vmem:[#allocation9 + $0x8] sm:$0xff]
        %v2411 = vld [vmem:[#allocation9 + $0x10] sm:$0xff]
        %v2412 = vld [vmem:[#allocation9 + $0x18] sm:$0xff]
        %v2413 = vld [vmem:[#allocation9 + $0x20] sm:$0xff]
        %v2414 = vld [vmem:[#allocation9 + $0x28] sm:$0xff]
        %v2415 = vld [vmem:[#allocation9 + $0x30] sm:$0xff]
        %v2416 = vld [vmem:[#allocation9 + $0x38] sm:$0xff]
        %v2417 = vld [vmem:[#allocation9 + $0x40] sm:$0xff]
        %v2418 = vld [vmem:[#allocation9 + $0x48] sm:$0xff]
        %v2419 = vld [vmem:[#allocation9 + $0x50] sm:$0xff]
        %v2420 = vld [vmem:[#allocation9 + $0x58] sm:$0xff]
        %v2421 = vld [vmem:[#allocation9 + $0x60] sm:$0xff]
        %v2422 = vld [vmem:[#allocation9 + $0x68] sm:$0xff]
        %v2423 = vld [vmem:[#allocation9 + $0x70] sm:$0xff]
        %v2424 = vld [vmem:[#allocation9 + $0x78] sm:$0xff]
        %v2425 = vld [vmem:[#allocation9 + $0x80] sm:$0xff]
        %v2426 = vld [vmem:[#allocation9 + $0x88] sm:$0xff]
        %v2427 = vld [vmem:[#allocation9 + $0x90] sm:$0xff]
        %v2428 = vld [vmem:[#allocation9 + $0x98] sm:$0xff]
        %v2429 = vld [vmem:[#allocation9 + $0xa0] sm:$0xff]
        %v2430 = vld [vmem:[#allocation9 + $0xa8] sm:$0xff]
        %v2431 = vld [vmem:[#allocation9 + $0xb0] sm:$0xff]
        %v2432 = vld [vmem:[#allocation9 + $0xb8] sm:$0xff]
        %v2433 = vld [vmem:[#allocation9 + $0xc0] sm:$0xff]
        %v2434 = vld [vmem:[#allocation9 + $0xc8] sm:$0xff]
        %v2435 = vld [vmem:[#allocation9 + $0xd0] sm:$0xff]
        %v2436 = vld [vmem:[#allocation9 + $0xd8] sm:$0xff]
        %v2437 = vld [vmem:[#allocation9 + $0xe0] sm:$0xff]
        %v2438 = vld [vmem:[#allocation9 + $0xe8] sm:$0xff]
        %v2439 = vld [vmem:[#allocation9 + $0xf0] sm:$0xff]
        %v2440 = vld [vmem:[#allocation9 + $0xf8] sm:$0xff]
        %v2457 = vunpack.c.l.b16 %v2393
        %v2458 = vunpack.c.h.b16 %v2393
        %v2459 = vunpack.c.l.b16 %v2394
        %v2460 = vunpack.c.h.b16 %v2394
        %v2461 = vunpack.c.l.b16 %v2395
        %v2462 = vunpack.c.h.b16 %v2395
        %v2463 = vunpack.c.l.b16 %v2396
        %v2464 = vunpack.c.h.b16 %v2396
        %v2465 = vunpack.c.l.b16 %v2397
        %v2466 = vunpack.c.h.b16 %v2397
        %v2467 = vunpack.c.l.b16 %v2398
        %v2468 = vunpack.c.h.b16 %v2398
        %v2469 = vunpack.c.l.b16 %v2399
        %v2470 = vunpack.c.h.b16 %v2399
        %v2471 = vunpack.c.l.b16 %v2400
        %v2472 = vunpack.c.h.b16 %v2400
        %v2473 = vunpack.c.l.b16 %v2401
        %v2474 = vunpack.c.h.b16 %v2401
        %v2475 = vunpack.c.l.b16 %v2402
        %v2476 = vunpack.c.h.b16 %v2402
        %v2477 = vunpack.c.l.b16 %v2403
        %v2478 = vunpack.c.h.b16 %v2403
        %v2479 = vunpack.c.l.b16 %v2404
        %v2480 = vunpack.c.h.b16 %v2404
        %v2481 = vunpack.c.l.b16 %v2405
        %v2482 = vunpack.c.h.b16 %v2405
        %v2483 = vunpack.c.l.b16 %v2406
        %v2484 = vunpack.c.h.b16 %v2406
        %v2485 = vunpack.c.l.b16 %v2407
        %v2486 = vunpack.c.h.b16 %v2407
        %v2487 = vunpack.c.l.b16 %v2408
        %v2488 = vunpack.c.h.b16 %v2408
        %v2489 = vpack.c.b16 %v2459, %v2457
        %v2490 = vpack.c.b16 %v2460, %v2458
        %v2491 = vpack.c.b16 %v2463, %v2461
        %v2492 = vpack.c.b16 %v2464, %v2462
        %v2493 = vpack.c.b16 %v2467, %v2465
        %v2494 = vpack.c.b16 %v2468, %v2466
        %v2495 = vpack.c.b16 %v2471, %v2469
        %v2496 = vpack.c.b16 %v2472, %v2470
        %v2497 = vpack.c.b16 %v2475, %v2473
        %v2498 = vpack.c.b16 %v2476, %v2474
        %v2499 = vpack.c.b16 %v2479, %v2477
        %v2500 = vpack.c.b16 %v2480, %v2478
        %v2501 = vpack.c.b16 %v2483, %v2481
        %v2502 = vpack.c.b16 %v2484, %v2482
        %v2503 = vpack.c.b16 %v2487, %v2485
        %v2504 = vpack.c.b16 %v2488, %v2486
        %v2553 = vunpack.c.l.b16 %v2409
        %v2554 = vunpack.c.h.b16 %v2409
        %v2555 = vunpack.c.l.b16 %v2410
        %v2556 = vunpack.c.h.b16 %v2410
        %v2557 = vunpack.c.l.b16 %v2411
        %v2558 = vunpack.c.h.b16 %v2411
        %v2559 = vunpack.c.l.b16 %v2412
        %v2560 = vunpack.c.h.b16 %v2412
        %v2561 = vunpack.c.l.b16 %v2413
        %v2562 = vunpack.c.h.b16 %v2413
        %v2563 = vunpack.c.l.b16 %v2414
        %v2564 = vunpack.c.h.b16 %v2414
        %v2565 = vunpack.c.l.b16 %v2415
        %v2566 = vunpack.c.h.b16 %v2415
        %v2567 = vunpack.c.l.b16 %v2416
        %v2568 = vunpack.c.h.b16 %v2416
        %v2569 = vunpack.c.l.b16 %v2417
        %v2570 = vunpack.c.h.b16 %v2417
        %v2571 = vunpack.c.l.b16 %v2418
        %v2572 = vunpack.c.h.b16 %v2418
        %v2573 = vunpack.c.l.b16 %v2419
        %v2574 = vunpack.c.h.b16 %v2419
        %v2575 = vunpack.c.l.b16 %v2420
        %v2576 = vunpack.c.h.b16 %v2420
        %v2577 = vunpack.c.l.b16 %v2421
        %v2578 = vunpack.c.h.b16 %v2421
        %v2579 = vunpack.c.l.b16 %v2422
        %v2580 = vunpack.c.h.b16 %v2422
        %v2581 = vunpack.c.l.b16 %v2423
        %v2582 = vunpack.c.h.b16 %v2423
        %v2583 = vunpack.c.l.b16 %v2424
        %v2584 = vunpack.c.h.b16 %v2424
        %v2585 = vunpack.c.l.b16 %v2425
        %v2586 = vunpack.c.h.b16 %v2425
        %v2587 = vunpack.c.l.b16 %v2426
        %v2588 = vunpack.c.h.b16 %v2426
        %v2589 = vunpack.c.l.b16 %v2427
        %v2590 = vunpack.c.h.b16 %v2427
        %v2591 = vunpack.c.l.b16 %v2428
        %v2592 = vunpack.c.h.b16 %v2428
        %v2593 = vunpack.c.l.b16 %v2429
        %v2594 = vunpack.c.h.b16 %v2429
        %v2595 = vunpack.c.l.b16 %v2430
        %v2596 = vunpack.c.h.b16 %v2430
        %v2597 = vunpack.c.l.b16 %v2431
        %v2598 = vunpack.c.h.b16 %v2431
        %v2599 = vunpack.c.l.b16 %v2432
        %v2600 = vunpack.c.h.b16 %v2432
        %v2601 = vunpack.c.l.b16 %v2433
        %v2602 = vunpack.c.h.b16 %v2433
        %v2603 = vunpack.c.l.b16 %v2434
        %v2604 = vunpack.c.h.b16 %v2434
        %v2605 = vunpack.c.l.b16 %v2435
        %v2606 = vunpack.c.h.b16 %v2435
        %v2607 = vunpack.c.l.b16 %v2436
        %v2608 = vunpack.c.h.b16 %v2436
        %v2609 = vunpack.c.l.b16 %v2437
        %v2610 = vunpack.c.h.b16 %v2437
        %v2611 = vunpack.c.l.b16 %v2438
        %v2612 = vunpack.c.h.b16 %v2438
        %v2613 = vunpack.c.l.b16 %v2439
        %v2614 = vunpack.c.h.b16 %v2439
        %v2615 = vunpack.c.l.b16 %v2440
        %v2616 = vunpack.c.h.b16 %v2440
        %v2617 = vpack.c.b16 %v2555, %v2553
        %v2618 = vpack.c.b16 %v2556, %v2554
        %v2619 = vpack.c.b16 %v2559, %v2557
        %v2620 = vpack.c.b16 %v2560, %v2558
        %v2621 = vpack.c.b16 %v2563, %v2561
        %v2622 = vpack.c.b16 %v2564, %v2562
        %v2623 = vpack.c.b16 %v2567, %v2565
        %v2624 = vpack.c.b16 %v2568, %v2566
        %v2625 = vpack.c.b16 %v2571, %v2569
        %v2626 = vpack.c.b16 %v2572, %v2570
        %v2627 = vpack.c.b16 %v2575, %v2573
        %v2628 = vpack.c.b16 %v2576, %v2574
        %v2629 = vpack.c.b16 %v2579, %v2577
        %v2630 = vpack.c.b16 %v2580, %v2578
        %v2631 = vpack.c.b16 %v2583, %v2581
        %v2632 = vpack.c.b16 %v2584, %v2582
        %v2633 = vpack.c.b16 %v2587, %v2585
        %v2634 = vpack.c.b16 %v2588, %v2586
        %v2635 = vpack.c.b16 %v2591, %v2589
        %v2636 = vpack.c.b16 %v2592, %v2590
        %v2637 = vpack.c.b16 %v2595, %v2593
        %v2638 = vpack.c.b16 %v2596, %v2594
        %v2639 = vpack.c.b16 %v2599, %v2597
        %v2640 = vpack.c.b16 %v2600, %v2598
        %v2641 = vpack.c.b16 %v2603, %v2601
        %v2642 = vpack.c.b16 %v2604, %v2602
        %v2643 = vpack.c.b16 %v2607, %v2605
        %v2644 = vpack.c.b16 %v2608, %v2606
        %v2645 = vpack.c.b16 %v2611, %v2609
        %v2646 = vpack.c.b16 %v2612, %v2610
        %v2647 = vpack.c.b16 %v2615, %v2613
        %v2648 = vpack.c.b16 %v2616, %v2614
        %2681 = vmatpush.bf16.msra.mxu0 %v2631
        %2682 = vmatpush.bf16.msra.mxu0 %v2629
        %2683 = vmatpush.bf16.msra.mxu0 %v2627
        %2684 = vmatpush.bf16.msra.mxu0 %v2625
        %2685 = vmatpush.bf16.msra.mxu0 %v2623
        %2686 = vmatpush.bf16.msra.mxu0 %v2621
        %2687 = vmatpush.bf16.msra.mxu0 %v2619
        %2688 = vmatpush.bf16.msra.mxu0 %v2617
        %2689 = vmatmul.bf16.gmra.mxu0 %v2489
        %v2690 = vpop.f32.mrf.mxu0
        %v2691 = vadd.f32 0.0, %v2690
        %v2692 = vpop.f32.mrf.mxu0
        %v2693 = vadd.f32 0.0, %v2692
        %2694 = vmatmul.bf16.gmra.mxu0 %v2491
        %v2695 = vpop.f32.mrf.mxu0
        %v2696 = vadd.f32 0.0, %v2695
        %v2697 = vpop.f32.mrf.mxu0
        %v2698 = vadd.f32 0.0, %v2697
        %2699 = vmatmul.bf16.gmra.mxu0 %v2493
        %v2700 = vpop.f32.mrf.mxu0
        %v2701 = vadd.f32 0.0, %v2700
        %v2702 = vpop.f32.mrf.mxu0
        %v2703 = vadd.f32 0.0, %v2702
        %2704 = vmatmul.bf16.gmra.mxu0 %v2495
        %v2705 = vpop.f32.mrf.mxu0
        %v2706 = vadd.f32 0.0, %v2705
        %v2707 = vpop.f32.mrf.mxu0
        %v2708 = vadd.f32 0.0, %v2707
        %2709 = vmatmul.bf16.gmra.mxu0 %v2497
        %v2710 = vpop.f32.mrf.mxu0
        %v2711 = vadd.f32 0.0, %v2710
        %v2712 = vpop.f32.mrf.mxu0
        %v2713 = vadd.f32 0.0, %v2712
        %2714 = vmatmul.bf16.gmra.mxu0 %v2499
        %v2715 = vpop.f32.mrf.mxu0
        %v2716 = vadd.f32 0.0, %v2715
        %v2717 = vpop.f32.mrf.mxu0
        %v2718 = vadd.f32 0.0, %v2717
        %2719 = vmatmul.bf16.gmra.mxu0 %v2501
        %v2720 = vpop.f32.mrf.mxu0
        %v2721 = vadd.f32 0.0, %v2720
        %v2722 = vpop.f32.mrf.mxu0
        %v2723 = vadd.f32 0.0, %v2722
        %2724 = vmatmul.bf16.gmra.mxu0 %v2503
        %v2725 = vpop.f32.mrf.mxu0
        %v2726 = vadd.f32 0.0, %v2725
        %v2727 = vpop.f32.mrf.mxu0
        %v2728 = vadd.f32 0.0, %v2727
        %2729 = vdwg.mxu0
        %2730 = vmatpush.bf16.msra.mxu0 %v2647
        %2731 = vmatpush.bf16.msra.mxu0 %v2645
        %2732 = vmatpush.bf16.msra.mxu0 %v2643
        %2733 = vmatpush.bf16.msra.mxu0 %v2641
        %2734 = vmatpush.bf16.msra.mxu0 %v2639
        %2735 = vmatpush.bf16.msra.mxu0 %v2637
        %2736 = vmatpush.bf16.msra.mxu0 %v2635
        %2737 = vmatpush.bf16.msra.mxu0 %v2633
        %2738 = vmatmul.bf16.gmra.mxu0 %v2490
        %v2739 = vpop.f32.mrf.mxu0
        %v2740 = vadd.f32 %v2691, %v2739
        %v2741 = vpop.f32.mrf.mxu0
        %v2742 = vadd.f32 %v2693, %v2741
        %2743 = vmatmul.bf16.gmra.mxu0 %v2492
        %v2744 = vpop.f32.mrf.mxu0
        %v2745 = vadd.f32 %v2696, %v2744
        %v2746 = vpop.f32.mrf.mxu0
        %v2747 = vadd.f32 %v2698, %v2746
        %2748 = vmatmul.bf16.gmra.mxu0 %v2494
        %v2749 = vpop.f32.mrf.mxu0
        %v2750 = vadd.f32 %v2701, %v2749
        %v2751 = vpop.f32.mrf.mxu0
        %v2752 = vadd.f32 %v2703, %v2751
        %2753 = vmatmul.bf16.gmra.mxu0 %v2496
        %v2754 = vpop.f32.mrf.mxu0
        %v2755 = vadd.f32 %v2706, %v2754
        %v2756 = vpop.f32.mrf.mxu0
        %v2757 = vadd.f32 %v2708, %v2756
        %2758 = vmatmul.bf16.gmra.mxu0 %v2498
        %v2759 = vpop.f32.mrf.mxu0
        %v2760 = vadd.f32 %v2711, %v2759
        %v2761 = vpop.f32.mrf.mxu0
        %v2762 = vadd.f32 %v2713, %v2761
        %2763 = vmatmul.bf16.gmra.mxu0 %v2500
        %v2764 = vpop.f32.mrf.mxu0
        %v2765 = vadd.f32 %v2716, %v2764
        %v2766 = vpop.f32.mrf.mxu0
        %v2767 = vadd.f32 %v2718, %v2766
        %2768 = vmatmul.bf16.gmra.mxu0 %v2502
        %v2769 = vpop.f32.mrf.mxu0
        %v2770 = vadd.f32 %v2721, %v2769
        %v2771 = vpop.f32.mrf.mxu0
        %v2772 = vadd.f32 %v2723, %v2771
        %2773 = vmatmul.bf16.gmra.mxu0 %v2504
        %v2774 = vpop.f32.mrf.mxu0
        %v2775 = vadd.f32 %v2726, %v2774
        %v2776 = vpop.f32.mrf.mxu0
        %v2777 = vadd.f32 %v2728, %v2776
        %2778 = vdwg.mxu0
        %2779 = vmatpush.bf16.msra.mxu0 %v2632
        %2780 = vmatpush.bf16.msra.mxu0 %v2630
        %2781 = vmatpush.bf16.msra.mxu0 %v2628
        %2782 = vmatpush.bf16.msra.mxu0 %v2626
        %2783 = vmatpush.bf16.msra.mxu0 %v2624
        %2784 = vmatpush.bf16.msra.mxu0 %v2622
        %2785 = vmatpush.bf16.msra.mxu0 %v2620
        %2786 = vmatpush.bf16.msra.mxu0 %v2618
        %2787 = vmatmul.bf16.gmra.mxu0 %v2489
        %v2788 = vpop.f32.mrf.mxu0
        %v2789 = vadd.f32 0.0, %v2788
        %v2790 = vpop.f32.mrf.mxu0
        %v2791 = vadd.f32 0.0, %v2790
        %2792 = vmatmul.bf16.gmra.mxu0 %v2491
        %v2793 = vpop.f32.mrf.mxu0
        %v2794 = vadd.f32 0.0, %v2793
        %v2795 = vpop.f32.mrf.mxu0
        %v2796 = vadd.f32 0.0, %v2795
        %2797 = vmatmul.bf16.gmra.mxu0 %v2493
        %v2798 = vpop.f32.mrf.mxu0
        %v2799 = vadd.f32 0.0, %v2798
        %v2800 = vpop.f32.mrf.mxu0
        %v2801 = vadd.f32 0.0, %v2800
        %2802 = vmatmul.bf16.gmra.mxu0 %v2495
        %v2803 = vpop.f32.mrf.mxu0
        %v2804 = vadd.f32 0.0, %v2803
        %v2805 = vpop.f32.mrf.mxu0
        %v2806 = vadd.f32 0.0, %v2805
        %2807 = vmatmul.bf16.gmra.mxu0 %v2497
        %v2808 = vpop.f32.mrf.mxu0
        %v2809 = vadd.f32 0.0, %v2808
        %v2810 = vpop.f32.mrf.mxu0
        %v2811 = vadd.f32 0.0, %v2810
        %2812 = vmatmul.bf16.gmra.mxu0 %v2499
        %v2813 = vpop.f32.mrf.mxu0
        %v2814 = vadd.f32 0.0, %v2813
        %v2815 = vpop.f32.mrf.mxu0
        %v2816 = vadd.f32 0.0, %v2815
        %2817 = vmatmul.bf16.gmra.mxu0 %v2501
        %v2818 = vpop.f32.mrf.mxu0
        %v2819 = vadd.f32 0.0, %v2818
        %v2820 = vpop.f32.mrf.mxu0
        %v2821 = vadd.f32 0.0, %v2820
        %2822 = vmatmul.bf16.gmra.mxu0 %v2503
        %v2823 = vpop.f32.mrf.mxu0
        %v2824 = vadd.f32 0.0, %v2823
        %v2825 = vpop.f32.mrf.mxu0
        %v2826 = vadd.f32 0.0, %v2825
        %2827 = vdwg.mxu0
        %2828 = vmatpush.bf16.msra.mxu0 %v2648
        %2829 = vmatpush.bf16.msra.mxu0 %v2646
        %2830 = vmatpush.bf16.msra.mxu0 %v2644
        %2831 = vmatpush.bf16.msra.mxu0 %v2642
        %2832 = vmatpush.bf16.msra.mxu0 %v2640
        %2833 = vmatpush.bf16.msra.mxu0 %v2638
        %2834 = vmatpush.bf16.msra.mxu0 %v2636
        %2835 = vmatpush.bf16.msra.mxu0 %v2634
        %2836 = vmatmul.bf16.gmra.mxu0 %v2490
        %v2837 = vpop.f32.mrf.mxu0
        %v2838 = vadd.f32 %v2789, %v2837
        %v2839 = vpop.f32.mrf.mxu0
        %v2840 = vadd.f32 %v2791, %v2839
        %2841 = vmatmul.bf16.gmra.mxu0 %v2492
        %v2842 = vpop.f32.mrf.mxu0
        %v2843 = vadd.f32 %v2794, %v2842
        %v2844 = vpop.f32.mrf.mxu0
        %v2845 = vadd.f32 %v2796, %v2844
        %2846 = vmatmul.bf16.gmra.mxu0 %v2494
        %v2847 = vpop.f32.mrf.mxu0
        %v2848 = vadd.f32 %v2799, %v2847
        %v2849 = vpop.f32.mrf.mxu0
        %v2850 = vadd.f32 %v2801, %v2849
        %2851 = vmatmul.bf16.gmra.mxu0 %v2496
        %v2852 = vpop.f32.mrf.mxu0
        %v2853 = vadd.f32 %v2804, %v2852
        %v2854 = vpop.f32.mrf.mxu0
        %v2855 = vadd.f32 %v2806, %v2854
        %2856 = vmatmul.bf16.gmra.mxu0 %v2498
        %v2857 = vpop.f32.mrf.mxu0
        %v2858 = vadd.f32 %v2809, %v2857
        %v2859 = vpop.f32.mrf.mxu0
        %v2860 = vadd.f32 %v2811, %v2859
        %2861 = vmatmul.bf16.gmra.mxu0 %v2500
        %v2862 = vpop.f32.mrf.mxu0
        %v2863 = vadd.f32 %v2814, %v2862
        %v2864 = vpop.f32.mrf.mxu0
        %v2865 = vadd.f32 %v2816, %v2864
        %2866 = vmatmul.bf16.gmra.mxu0 %v2502
        %v2867 = vpop.f32.mrf.mxu0
        %v2868 = vadd.f32 %v2819, %v2867
        %v2869 = vpop.f32.mrf.mxu0
        %v2870 = vadd.f32 %v2821, %v2869
        %2871 = vmatmul.bf16.gmra.mxu0 %v2504
        %v2872 = vpop.f32.mrf.mxu0
        %v2873 = vadd.f32 %v2824, %v2872
        %v2874 = vpop.f32.mrf.mxu0
        %v2875 = vadd.f32 %v2826, %v2874
        %2876 = vdwg.mxu0
        %v2877 = vpack.c.bf16 %v2838, %v2740
        %v2878 = vpack.c.bf16 %v2840, %v2742
        %v2879 = vpack.c.bf16 %v2843, %v2745
        %v2880 = vpack.c.bf16 %v2845, %v2747
        %v2881 = vpack.c.bf16 %v2848, %v2750
        %v2882 = vpack.c.bf16 %v2850, %v2752
        %v2883 = vpack.c.bf16 %v2853, %v2755
        %v2884 = vpack.c.bf16 %v2855, %v2757
        %v2885 = vpack.c.bf16 %v2858, %v2760
        %v2886 = vpack.c.bf16 %v2860, %v2762
        %v2887 = vpack.c.bf16 %v2863, %v2765
        %v2888 = vpack.c.bf16 %v2865, %v2767
        %v2889 = vpack.c.bf16 %v2868, %v2770
        %v2890 = vpack.c.bf16 %v2870, %v2772
        %v2891 = vpack.c.bf16 %v2873, %v2775
        %v2892 = vpack.c.bf16 %v2875, %v2777
        %v2893 = vld [vmem:[%s5] sm:$0x3]
        %v2895 = vperm.slane %v2893, 0
        %v2896 = vperm.slane %v2893, 1
        %v2899 = vpack.c.bf16 %v2896, %v2895
        %v2901 = vunpack.c.l.b16 %v2899
        %v2902 = vunpack.c.h.b16 %v2899
        %v2903 = vpack.c.b16 %v2901, %v2901
        %v2904 = vpack.c.b16 %v2902, %v2902
        %v2906 = vpack.i.b16 %v2903, %v2903
        %v2908 = vperm.slane %v2906, 0
        %v2910 = vpack.i.b16 %v2904, %v2904
        %v2912 = vperm.slane %v2910, 0
        %v2913 = vunpack.c.l.bf16 %v2877
        %v2914 = vunpack.c.h.bf16 %v2877
        %v2915 = vunpack.c.l.bf16 %v2878
        %v2916 = vunpack.c.h.bf16 %v2878
        %v2917 = vunpack.c.l.bf16 %v2879
        %v2918 = vunpack.c.h.bf16 %v2879
        %v2919 = vunpack.c.l.bf16 %v2880
        %v2920 = vunpack.c.h.bf16 %v2880
        %v2921 = vunpack.c.l.bf16 %v2881
        %v2922 = vunpack.c.h.bf16 %v2881
        %v2923 = vunpack.c.l.bf16 %v2882
        %v2924 = vunpack.c.h.bf16 %v2882
        %v2925 = vunpack.c.l.bf16 %v2883
        %v2926 = vunpack.c.h.bf16 %v2883
        %v2927 = vunpack.c.l.bf16 %v2884
        %v2928 = vunpack.c.h.bf16 %v2884
        %v2929 = vunpack.c.l.bf16 %v2885
        %v2930 = vunpack.c.h.bf16 %v2885
        %v2931 = vunpack.c.l.bf16 %v2886
        %v2932 = vunpack.c.h.bf16 %v2886
        %v2933 = vunpack.c.l.bf16 %v2887
        %v2934 = vunpack.c.h.bf16 %v2887
        %v2935 = vunpack.c.l.bf16 %v2888
        %v2936 = vunpack.c.h.bf16 %v2888
        %v2937 = vunpack.c.l.bf16 %v2889
        %v2938 = vunpack.c.h.bf16 %v2889
        %v2939 = vunpack.c.l.bf16 %v2890
        %v2940 = vunpack.c.h.bf16 %v2890
        %v2941 = vunpack.c.l.bf16 %v2891
        %v2942 = vunpack.c.h.bf16 %v2891
        %v2943 = vunpack.c.l.bf16 %v2892
        %v2944 = vunpack.c.h.bf16 %v2892
        %v2945 = vunpack.c.l.bf16 %v2908
        %v2946 = vunpack.c.l.bf16 %v2912
        %v2947 = vadd.f32 %v2913, %v2945
        %v2948 = vadd.f32 %v2914, %v2946
        %v2949 = vadd.f32 %v2915, %v2945
        %v2950 = vadd.f32 %v2916, %v2946
        %v2951 = vadd.f32 %v2917, %v2945
        %v2952 = vadd.f32 %v2918, %v2946
        %v2953 = vadd.f32 %v2919, %v2945
        %v2954 = vadd.f32 %v2920, %v2946
        %v2955 = vadd.f32 %v2921, %v2945
        %v2956 = vadd.f32 %v2922, %v2946
        %v2957 = vadd.f32 %v2923, %v2945
        %v2958 = vadd.f32 %v2924, %v2946
        %v2959 = vadd.f32 %v2925, %v2945
        %v2960 = vadd.f32 %v2926, %v2946
        %v2961 = vadd.f32 %v2927, %v2945
        %v2962 = vadd.f32 %v2928, %v2946
        %v2963 = vadd.f32 %v2929, %v2945
        %v2964 = vadd.f32 %v2930, %v2946
        %v2965 = vadd.f32 %v2931, %v2945
        %v2966 = vadd.f32 %v2932, %v2946
        %v2967 = vadd.f32 %v2933, %v2945
        %v2968 = vadd.f32 %v2934, %v2946
        %v2969 = vadd.f32 %v2935, %v2945
        %v2970 = vadd.f32 %v2936, %v2946
        %v2971 = vadd.f32 %v2937, %v2945
        %v2972 = vadd.f32 %v2938, %v2946
        %v2973 = vadd.f32 %v2939, %v2945
        %v2974 = vadd.f32 %v2940, %v2946
        %v2975 = vadd.f32 %v2941, %v2945
        %v2976 = vadd.f32 %v2942, %v2946
        %v2977 = vadd.f32 %v2943, %v2945
        %v2978 = vadd.f32 %v2944, %v2946
        %v2979 = vpack.c.bf16 %v2948, %v2947
        %v2980 = vpack.c.bf16 %v2950, %v2949
        %v2981 = vpack.c.bf16 %v2952, %v2951
        %v2982 = vpack.c.bf16 %v2954, %v2953
        %v2983 = vpack.c.bf16 %v2956, %v2955
        %v2984 = vpack.c.bf16 %v2958, %v2957
        %v2985 = vpack.c.bf16 %v2960, %v2959
        %v2986 = vpack.c.bf16 %v2962, %v2961
        %v2987 = vpack.c.bf16 %v2964, %v2963
        %v2988 = vpack.c.bf16 %v2966, %v2965
        %v2989 = vpack.c.bf16 %v2968, %v2967
        %v2990 = vpack.c.bf16 %v2970, %v2969
        %v2991 = vpack.c.bf16 %v2972, %v2971
        %v2992 = vpack.c.bf16 %v2974, %v2973
        %v2993 = vpack.c.bf16 %v2976, %v2975
        %v2994 = vpack.c.bf16 %v2978, %v2977
        %v2995 = vunpack.c.l.bf16 %v2979
        %v2996 = vunpack.c.h.bf16 %v2979
        %v2997 = vunpack.c.l.bf16 %v2980
        %v2998 = vunpack.c.h.bf16 %v2980
        %v2999 = vunpack.c.l.bf16 %v2981
        %v3000 = vunpack.c.h.bf16 %v2981
        %v3001 = vunpack.c.l.bf16 %v2982
        %v3002 = vunpack.c.h.bf16 %v2982
        %v3003 = vunpack.c.l.bf16 %v2983
        %v3004 = vunpack.c.h.bf16 %v2983
        %v3005 = vunpack.c.l.bf16 %v2984
        %v3006 = vunpack.c.h.bf16 %v2984
        %v3007 = vunpack.c.l.bf16 %v2985
        %v3008 = vunpack.c.h.bf16 %v2985
        %v3009 = vunpack.c.l.bf16 %v2986
        %v3010 = vunpack.c.h.bf16 %v2986
        %v3011 = vunpack.c.l.bf16 %v2987
        %v3012 = vunpack.c.h.bf16 %v2987
        %v3013 = vunpack.c.l.bf16 %v2988
        %v3014 = vunpack.c.h.bf16 %v2988
        %v3015 = vunpack.c.l.bf16 %v2989
        %v3016 = vunpack.c.h.bf16 %v2989
        %v3017 = vunpack.c.l.bf16 %v2990
        %v3018 = vunpack.c.h.bf16 %v2990
        %v3019 = vunpack.c.l.bf16 %v2991
        %v3020 = vunpack.c.h.bf16 %v2991
        %v3021 = vunpack.c.l.bf16 %v2992
        %v3022 = vunpack.c.h.bf16 %v2992
        %v3023 = vunpack.c.l.bf16 %v2993
        %v3024 = vunpack.c.h.bf16 %v2993
        %v3025 = vunpack.c.l.bf16 %v2994
        %v3026 = vunpack.c.h.bf16 %v2994
        %vm3027 = vcmp.ge.f32.partialorder %v2995, 0.0
        %vm3028 = vcmp.ge.f32.partialorder %v2996, 0.0
        %vm3029 = vcmp.ge.f32.partialorder %v2997, 0.0
        %vm3030 = vcmp.ge.f32.partialorder %v2998, 0.0
        %vm3031 = vcmp.ge.f32.partialorder %v2999, 0.0
        %vm3032 = vcmp.ge.f32.partialorder %v3000, 0.0
        %vm3033 = vcmp.ge.f32.partialorder %v3001, 0.0
        %vm3034 = vcmp.ge.f32.partialorder %v3002, 0.0
        %vm3035 = vcmp.ge.f32.partialorder %v3003, 0.0
        %vm3036 = vcmp.ge.f32.partialorder %v3004, 0.0
        %vm3037 = vcmp.ge.f32.partialorder %v3005, 0.0
        %vm3038 = vcmp.ge.f32.partialorder %v3006, 0.0
        %vm3039 = vcmp.ge.f32.partialorder %v3007, 0.0
        %vm3040 = vcmp.ge.f32.partialorder %v3008, 0.0
        %vm3041 = vcmp.ge.f32.partialorder %v3009, 0.0
        %vm3042 = vcmp.ge.f32.partialorder %v3010, 0.0
        %vm3043 = vcmp.ge.f32.partialorder %v3011, 0.0
        %vm3044 = vcmp.ge.f32.partialorder %v3012, 0.0
        %vm3045 = vcmp.ge.f32.partialorder %v3013, 0.0
        %vm3046 = vcmp.ge.f32.partialorder %v3014, 0.0
        %vm3047 = vcmp.ge.f32.partialorder %v3015, 0.0
        %vm3048 = vcmp.ge.f32.partialorder %v3016, 0.0
        %vm3049 = vcmp.ge.f32.partialorder %v3017, 0.0
        %vm3050 = vcmp.ge.f32.partialorder %v3018, 0.0
        %vm3051 = vcmp.ge.f32.partialorder %v3019, 0.0
        %vm3052 = vcmp.ge.f32.partialorder %v3020, 0.0
        %vm3053 = vcmp.ge.f32.partialorder %v3021, 0.0
        %vm3054 = vcmp.ge.f32.partialorder %v3022, 0.0
        %vm3055 = vcmp.ge.f32.partialorder %v3023, 0.0
        %vm3056 = vcmp.ge.f32.partialorder %v3024, 0.0
        %vm3057 = vcmp.ge.f32.partialorder %v3025, 0.0
        %vm3058 = vcmp.ge.f32.partialorder %v3026, 0.0
        %s3059 = sshll.u32 %s431, 16
        %s3060 = sor.u32 %s431, %s3059
        %v3061 = vstv %s3060
        %v3063 = vunpack.c.l.bf16 %v3061
        %v3064 = vmul.f32 %v3063, %v2995
        %v3065 = vmul.f32 %v3063, %v2996
        %v3066 = vmul.f32 %v3063, %v2997
        %v3067 = vmul.f32 %v3063, %v2998
        %v3068 = vmul.f32 %v3063, %v2999
        %v3069 = vmul.f32 %v3063, %v3000
        %v3070 = vmul.f32 %v3063, %v3001
        %v3071 = vmul.f32 %v3063, %v3002
        %v3072 = vmul.f32 %v3063, %v3003
        %v3073 = vmul.f32 %v3063, %v3004
        %v3074 = vmul.f32 %v3063, %v3005
        %v3075 = vmul.f32 %v3063, %v3006
        %v3076 = vmul.f32 %v3063, %v3007
        %v3077 = vmul.f32 %v3063, %v3008
        %v3078 = vmul.f32 %v3063, %v3009
        %v3079 = vmul.f32 %v3063, %v3010
        %v3080 = vmul.f32 %v3063, %v3011
        %v3081 = vmul.f32 %v3063, %v3012
        %v3082 = vmul.f32 %v3063, %v3013
        %v3083 = vmul.f32 %v3063, %v3014
        %v3084 = vmul.f32 %v3063, %v3015
        %v3085 = vmul.f32 %v3063, %v3016
        %v3086 = vmul.f32 %v3063, %v3017
        %v3087 = vmul.f32 %v3063, %v3018
        %v3088 = vmul.f32 %v3063, %v3019
        %v3089 = vmul.f32 %v3063, %v3020
        %v3090 = vmul.f32 %v3063, %v3021
        %v3091 = vmul.f32 %v3063, %v3022
        %v3092 = vmul.f32 %v3063, %v3023
        %v3093 = vmul.f32 %v3063, %v3024
        %v3094 = vmul.f32 %v3063, %v3025
        %v3095 = vmul.f32 %v3063, %v3026
        %v3096 = vpack.c.bf16 %v3065, %v3064
        %v3097 = vpack.c.bf16 %v3067, %v3066
        %v3098 = vpack.c.bf16 %v3069, %v3068
        %v3099 = vpack.c.bf16 %v3071, %v3070
        %v3100 = vpack.c.bf16 %v3073, %v3072
        %v3101 = vpack.c.bf16 %v3075, %v3074
        %v3102 = vpack.c.bf16 %v3077, %v3076
        %v3103 = vpack.c.bf16 %v3079, %v3078
        %v3104 = vpack.c.bf16 %v3081, %v3080
        %v3105 = vpack.c.bf16 %v3083, %v3082
        %v3106 = vpack.c.bf16 %v3085, %v3084
        %v3107 = vpack.c.bf16 %v3087, %v3086
        %v3108 = vpack.c.bf16 %v3089, %v3088
        %v3109 = vpack.c.bf16 %v3091, %v3090
        %v3110 = vpack.c.bf16 %v3093, %v3092
        %v3111 = vpack.c.bf16 %v3095, %v3094
        %vm3112 = vmpackc.low %vm3028, %vm3027
        %vm3113 = vmpackc.low %vm3030, %vm3029
        %vm3114 = vmpackc.low %vm3032, %vm3031
        %vm3115 = vmpackc.low %vm3034, %vm3033
        %vm3116 = vmpackc.low %vm3036, %vm3035
        %vm3117 = vmpackc.low %vm3038, %vm3037
        %vm3118 = vmpackc.low %vm3040, %vm3039
        %vm3119 = vmpackc.low %vm3042, %vm3041
        %vm3120 = vmpackc.low %vm3044, %vm3043
        %vm3121 = vmpackc.low %vm3046, %vm3045
        %vm3122 = vmpackc.low %vm3048, %vm3047
        %vm3123 = vmpackc.low %vm3050, %vm3049
        %vm3124 = vmpackc.low %vm3052, %vm3051
        %vm3125 = vmpackc.low %vm3054, %vm3053
        %vm3126 = vmpackc.low %vm3056, %vm3055
        %vm3127 = vmpackc.low %vm3058, %vm3057
        %v3128 = vsel %vm3112, %v2979, %v3096
        %v3129 = vsel %vm3113, %v2980, %v3097
        %v3130 = vsel %vm3114, %v2981, %v3098
        %v3131 = vsel %vm3115, %v2982, %v3099
        %v3132 = vsel %vm3116, %v2983, %v3100
        %v3133 = vsel %vm3117, %v2984, %v3101
        %v3134 = vsel %vm3118, %v2985, %v3102
        %v3135 = vsel %vm3119, %v2986, %v3103
        %v3136 = vsel %vm3120, %v2987, %v3104
        %v3137 = vsel %vm3121, %v2988, %v3105
        %v3138 = vsel %vm3122, %v2989, %v3106
        %v3139 = vsel %vm3123, %v2990, %v3107
        %v3140 = vsel %vm3124, %v2991, %v3108
        %v3141 = vsel %vm3125, %v2992, %v3109
        %v3142 = vsel %vm3126, %v2993, %v3110
        %v3143 = vsel %vm3127, %v2994, %v3111
        %v3144 = vld [vmem:[#allocation10] sm:$0xf]
        %v3145 = vld [vmem:[#allocation10 + $0x4] sm:$0xf]
        %v3146 = vld [vmem:[#allocation10 + $0x8] sm:$0xf]
        %v3147 = vld [vmem:[#allocation10 + $0xc] sm:$0xf]
        %v3148 = vld [vmem:[#allocation10 + $0x10] sm:$0xf]
        %v3149 = vld [vmem:[#allocation10 + $0x14] sm:$0xf]
        %v3150 = vld [vmem:[#allocation10 + $0x18] sm:$0xf]
        %v3151 = vld [vmem:[#allocation10 + $0x1c] sm:$0xf]
        %v3152 = vld [vmem:[#allocation10 + $0x20] sm:$0xf]
        %v3153 = vld [vmem:[#allocation10 + $0x24] sm:$0xf]
        %v3154 = vld [vmem:[#allocation10 + $0x28] sm:$0xf]
        %v3155 = vld [vmem:[#allocation10 + $0x2c] sm:$0xf]
        %v3156 = vld [vmem:[#allocation10 + $0x30] sm:$0xf]
        %v3157 = vld [vmem:[#allocation10 + $0x34] sm:$0xf]
        %v3158 = vld [vmem:[#allocation10 + $0x38] sm:$0xf]
        %v3159 = vld [vmem:[#allocation10 + $0x3c] sm:$0xf]
        %v3160 = vld [vmem:[#allocation10 + $0x40] sm:$0xf]
        %v3161 = vld [vmem:[#allocation10 + $0x44] sm:$0xf]
        %v3162 = vld [vmem:[#allocation10 + $0x48] sm:$0xf]
        %v3163 = vld [vmem:[#allocation10 + $0x4c] sm:$0xf]
        %v3164 = vld [vmem:[#allocation10 + $0x50] sm:$0xf]
        %v3165 = vld [vmem:[#allocation10 + $0x54] sm:$0xf]
        %v3166 = vld [vmem:[#allocation10 + $0x58] sm:$0xf]
        %v3167 = vld [vmem:[#allocation10 + $0x5c] sm:$0xf]
        %v3168 = vld [vmem:[#allocation10 + $0x60] sm:$0xf]
        %v3169 = vld [vmem:[#allocation10 + $0x64] sm:$0xf]
        %v3170 = vld [vmem:[#allocation10 + $0x68] sm:$0xf]
        %v3171 = vld [vmem:[#allocation10 + $0x6c] sm:$0xf]
        %v3172 = vld [vmem:[#allocation10 + $0x70] sm:$0xf]
        %v3173 = vld [vmem:[#allocation10 + $0x74] sm:$0xf]
        %v3174 = vld [vmem:[#allocation10 + $0x78] sm:$0xf]
        %v3175 = vld [vmem:[#allocation10 + $0x7c] sm:$0xf]
        %v3176 = vld [vmem:[%s7] sm:$0x1]
        %v3178 = vperm.slane %v3176, 0
        %v3196 = vunpack.c.l.b16 %v3128
        %v3197 = vunpack.c.h.b16 %v3128
        %v3198 = vunpack.c.l.b16 %v3129
        %v3199 = vunpack.c.h.b16 %v3129
        %v3200 = vunpack.c.l.b16 %v3130
        %v3201 = vunpack.c.h.b16 %v3130
        %v3202 = vunpack.c.l.b16 %v3131
        %v3203 = vunpack.c.h.b16 %v3131
        %v3204 = vunpack.c.l.b16 %v3132
        %v3205 = vunpack.c.h.b16 %v3132
        %v3206 = vunpack.c.l.b16 %v3133
        %v3207 = vunpack.c.h.b16 %v3133
        %v3208 = vunpack.c.l.b16 %v3134
        %v3209 = vunpack.c.h.b16 %v3134
        %v3210 = vunpack.c.l.b16 %v3135
        %v3211 = vunpack.c.h.b16 %v3135
        %v3212 = vunpack.c.l.b16 %v3136
        %v3213 = vunpack.c.h.b16 %v3136
        %v3214 = vunpack.c.l.b16 %v3137
        %v3215 = vunpack.c.h.b16 %v3137
        %v3216 = vunpack.c.l.b16 %v3138
        %v3217 = vunpack.c.h.b16 %v3138
        %v3218 = vunpack.c.l.b16 %v3139
        %v3219 = vunpack.c.h.b16 %v3139
        %v3220 = vunpack.c.l.b16 %v3140
        %v3221 = vunpack.c.h.b16 %v3140
        %v3222 = vunpack.c.l.b16 %v3141
        %v3223 = vunpack.c.h.b16 %v3141
        %v3224 = vunpack.c.l.b16 %v3142
        %v3225 = vunpack.c.h.b16 %v3142
        %v3226 = vunpack.c.l.b16 %v3143
        %v3227 = vunpack.c.h.b16 %v3143
        %v3228 = vpack.c.b16 %v3198, %v3196
        %v3229 = vpack.c.b16 %v3199, %v3197
        %v3230 = vpack.c.b16 %v3202, %v3200
        %v3231 = vpack.c.b16 %v3203, %v3201
        %v3232 = vpack.c.b16 %v3206, %v3204
        %v3233 = vpack.c.b16 %v3207, %v3205
        %v3234 = vpack.c.b16 %v3210, %v3208
        %v3235 = vpack.c.b16 %v3211, %v3209
        %v3236 = vpack.c.b16 %v3214, %v3212
        %v3237 = vpack.c.b16 %v3215, %v3213
        %v3238 = vpack.c.b16 %v3218, %v3216
        %v3239 = vpack.c.b16 %v3219, %v3217
        %v3240 = vpack.c.b16 %v3222, %v3220
        %v3241 = vpack.c.b16 %v3223, %v3221
        %v3242 = vpack.c.b16 %v3226, %v3224
        %v3243 = vpack.c.b16 %v3227, %v3225
        %v3292 = vunpack.c.l.b16 %v3144
        %v3293 = vunpack.c.l.b16 %v3145
        %v3294 = vunpack.c.l.b16 %v3146
        %v3295 = vunpack.c.l.b16 %v3147
        %v3296 = vunpack.c.l.b16 %v3148
        %v3297 = vunpack.c.l.b16 %v3149
        %v3298 = vunpack.c.l.b16 %v3150
        %v3299 = vunpack.c.l.b16 %v3151
        %v3300 = vunpack.c.l.b16 %v3152
        %v3301 = vunpack.c.l.b16 %v3153
        %v3302 = vunpack.c.l.b16 %v3154
        %v3303 = vunpack.c.l.b16 %v3155
        %v3304 = vunpack.c.l.b16 %v3156
        %v3305 = vunpack.c.l.b16 %v3157
        %v3306 = vunpack.c.l.b16 %v3158
        %v3307 = vunpack.c.l.b16 %v3159
        %v3308 = vunpack.c.l.b16 %v3160
        %v3309 = vunpack.c.l.b16 %v3161
        %v3310 = vunpack.c.l.b16 %v3162
        %v3311 = vunpack.c.l.b16 %v3163
        %v3312 = vunpack.c.l.b16 %v3164
        %v3313 = vunpack.c.l.b16 %v3165
        %v3314 = vunpack.c.l.b16 %v3166
        %v3315 = vunpack.c.l.b16 %v3167
        %v3316 = vunpack.c.l.b16 %v3168
        %v3317 = vunpack.c.l.b16 %v3169
        %v3318 = vunpack.c.l.b16 %v3170
        %v3319 = vunpack.c.l.b16 %v3171
        %v3320 = vunpack.c.l.b16 %v3172
        %v3321 = vunpack.c.l.b16 %v3173
        %v3322 = vunpack.c.l.b16 %v3174
        %v3323 = vunpack.c.l.b16 %v3175
        %v3324 = vpack.c.b16 %v3293, %v3292
        %v3325 = vpack.c.b16 %v3295, %v3294
        %v3326 = vpack.c.b16 %v3297, %v3296
        %v3327 = vpack.c.b16 %v3299, %v3298
        %v3328 = vpack.c.b16 %v3301, %v3300
        %v3329 = vpack.c.b16 %v3303, %v3302
        %v3330 = vpack.c.b16 %v3305, %v3304
        %v3331 = vpack.c.b16 %v3307, %v3306
        %v3332 = vpack.c.b16 %v3309, %v3308
        %v3333 = vpack.c.b16 %v3311, %v3310
        %v3334 = vpack.c.b16 %v3313, %v3312
        %v3335 = vpack.c.b16 %v3315, %v3314
        %v3336 = vpack.c.b16 %v3317, %v3316
        %v3337 = vpack.c.b16 %v3319, %v3318
        %v3338 = vpack.c.b16 %v3321, %v3320
        %v3339 = vpack.c.b16 %v3323, %v3322
        %3356 = vmatpush.bf16.msra.mxu0 %v3331
        %3357 = vmatpush.bf16.msra.mxu0 %v3330
        %3358 = vmatpush.bf16.msra.mxu0 %v3329
        %3359 = vmatpush.bf16.msra.mxu0 %v3328
        %3360 = vmatpush.bf16.msra.mxu0 %v3327
        %3361 = vmatpush.bf16.msra.mxu0 %v3326
        %3362 = vmatpush.bf16.msra.mxu0 %v3325
        %3363 = vmatpush.bf16.msra.mxu0 %v3324
        %3364 = vmatmul.bf16.gmra.mxu0 %v3228
        %v3365 = vpop.f32.mrf.mxu0
        %v3366 = vadd.f32 %v3178, %v3365
        %v3367 = vpop.f32.mrf.mxu0
        %v3368 = vadd.f32 %v3178, %v3367
        %3369 = vmatmul.bf16.gmra.mxu0 %v3230
        %v3370 = vpop.f32.mrf.mxu0
        %v3371 = vadd.f32 %v3178, %v3370
        %v3372 = vpop.f32.mrf.mxu0
        %v3373 = vadd.f32 %v3178, %v3372
        %3374 = vmatmul.bf16.gmra.mxu0 %v3232
        %v3375 = vpop.f32.mrf.mxu0
        %v3376 = vadd.f32 %v3178, %v3375
        %v3377 = vpop.f32.mrf.mxu0
        %v3378 = vadd.f32 %v3178, %v3377
        %3379 = vmatmul.bf16.gmra.mxu0 %v3234
        %v3380 = vpop.f32.mrf.mxu0
        %v3381 = vadd.f32 %v3178, %v3380
        %v3382 = vpop.f32.mrf.mxu0
        %v3383 = vadd.f32 %v3178, %v3382
        %3384 = vmatmul.bf16.gmra.mxu0 %v3236
        %v3385 = vpop.f32.mrf.mxu0
        %v3386 = vadd.f32 %v3178, %v3385
        %v3387 = vpop.f32.mrf.mxu0
        %v3388 = vadd.f32 %v3178, %v3387
        %3389 = vmatmul.bf16.gmra.mxu0 %v3238
        %v3390 = vpop.f32.mrf.mxu0
        %v3391 = vadd.f32 %v3178, %v3390
        %v3392 = vpop.f32.mrf.mxu0
        %v3393 = vadd.f32 %v3178, %v3392
        %3394 = vmatmul.bf16.gmra.mxu0 %v3240
        %v3395 = vpop.f32.mrf.mxu0
        %v3396 = vadd.f32 %v3178, %v3395
        %v3397 = vpop.f32.mrf.mxu0
        %v3398 = vadd.f32 %v3178, %v3397
        %3399 = vmatmul.bf16.gmra.mxu0 %v3242
        %v3400 = vpop.f32.mrf.mxu0
        %v3401 = vadd.f32 %v3178, %v3400
        %v3402 = vpop.f32.mrf.mxu0
        %v3403 = vadd.f32 %v3178, %v3402
        %3404 = vdwg.mxu0
        %3405 = vmatpush.bf16.msra.mxu0 %v3339
        %3406 = vmatpush.bf16.msra.mxu0 %v3338
        %3407 = vmatpush.bf16.msra.mxu0 %v3337
        %3408 = vmatpush.bf16.msra.mxu0 %v3336
        %3409 = vmatpush.bf16.msra.mxu0 %v3335
        %3410 = vmatpush.bf16.msra.mxu0 %v3334
        %3411 = vmatpush.bf16.msra.mxu0 %v3333
        %3412 = vmatpush.bf16.msra.mxu0 %v3332
        %3413 = vmatmul.bf16.gmra.mxu0 %v3229
        %v3414 = vpop.f32.mrf.mxu0
        %v3415 = vadd.f32 %v3366, %v3414
        %v3416 = vpop.f32.mrf.mxu0
        %v3417 = vadd.f32 %v3368, %v3416
        %3418 = vmatmul.bf16.gmra.mxu0 %v3231
        %v3419 = vpop.f32.mrf.mxu0
        %v3420 = vadd.f32 %v3371, %v3419
        %v3421 = vpop.f32.mrf.mxu0
        %v3422 = vadd.f32 %v3373, %v3421
        %3423 = vmatmul.bf16.gmra.mxu0 %v3233
        %v3424 = vpop.f32.mrf.mxu0
        %v3425 = vadd.f32 %v3376, %v3424
        %v3426 = vpop.f32.mrf.mxu0
        %v3427 = vadd.f32 %v3378, %v3426
        %3428 = vmatmul.bf16.gmra.mxu0 %v3235
        %v3429 = vpop.f32.mrf.mxu0
        %v3430 = vadd.f32 %v3381, %v3429
        %v3431 = vpop.f32.mrf.mxu0
        %v3432 = vadd.f32 %v3383, %v3431
        %3433 = vmatmul.bf16.gmra.mxu0 %v3237
        %v3434 = vpop.f32.mrf.mxu0
        %v3435 = vadd.f32 %v3386, %v3434
        %v3436 = vpop.f32.mrf.mxu0
        %v3437 = vadd.f32 %v3388, %v3436
        %3438 = vmatmul.bf16.gmra.mxu0 %v3239
        %v3439 = vpop.f32.mrf.mxu0
        %v3440 = vadd.f32 %v3391, %v3439
        %v3441 = vpop.f32.mrf.mxu0
        %v3442 = vadd.f32 %v3393, %v3441
        %3443 = vmatmul.bf16.gmra.mxu0 %v3241
        %v3444 = vpop.f32.mrf.mxu0
        %v3445 = vadd.f32 %v3396, %v3444
        %v3446 = vpop.f32.mrf.mxu0
        %v3447 = vadd.f32 %v3398, %v3446
        %3448 = vmatmul.bf16.gmra.mxu0 %v3243
        %v3449 = vpop.f32.mrf.mxu0
        %v3450 = vadd.f32 %v3401, %v3449
        %v3451 = vpop.f32.mrf.mxu0
        %v3452 = vadd.f32 %v3403, %v3451
        %3453 = vdwg.mxu0
        %3454 = vst [vmem:[%s398] sm:$0xff] %v3415
        %3455 = vst [vmem:[%s398 + $0x8] sm:$0xff] %v3417
        %3456 = vst [vmem:[%s398 + $0x10] sm:$0xff] %v3420
        %3457 = vst [vmem:[%s398 + $0x18] sm:$0xff] %v3422
        %3458 = vst [vmem:[%s398 + $0x20] sm:$0xff] %v3425
        %3459 = vst [vmem:[%s398 + $0x28] sm:$0xff] %v3427
        %3460 = vst [vmem:[%s398 + $0x30] sm:$0xff] %v3430
        %3461 = vst [vmem:[%s398 + $0x38] sm:$0xff] %v3432
        %3462 = vst [vmem:[%s398 + $0x40] sm:$0xff] %v3435
        %3463 = vst [vmem:[%s398 + $0x48] sm:$0xff] %v3437
        %3464 = vst [vmem:[%s398 + $0x50] sm:$0xff] %v3440
        %3465 = vst [vmem:[%s398 + $0x58] sm:$0xff] %v3442
        %3466 = vst [vmem:[%s398 + $0x60] sm:$0xff] %v3445
        %3467 = vst [vmem:[%s398 + $0x68] sm:$0xff] %v3447
        %3468 = vst [vmem:[%s398 + $0x70] sm:$0xff] %v3450
        %3469 = vst [vmem:[%s398 + $0x78] sm:$0xff] %v3452
        %s3470 = sand.u32 %s209, 1
        %s3471 = scalar_lea.sflag [#allocation4], %s3470
        %s3472 = sand.u32 %s209, 1
        %s3473 = smul.addr %s3472, 128
        %s3474 = scalar_lea.vmem [#allocation12], %s3473
        // Predicated region
        $region73: #{tpu_custom_call.1} parent=51 // pred_check
          %p3475 = pneg %p219
        $region74: #{tpu_custom_call.1} parent=51 // pred_check_branch
          %3477 = sbr.rel (%p3475) target = $region76
        $region75: #{tpu_custom_call.1} parent=51 // pred_region
          %s3478 = smul.u32 16, %s28
          %s3479 = ssub.s32 25, %s3478
          %p3480 = scmp.lt.s32.totalorder %s3479, 16
          %s3481 = scalar_select %p3480, %s3479, 16
          %s3482 = smul.u32 8, %s3481
          %s3483 = ssub.s32 128, %s3482
          %s3484 = sshll.u32 %s3483, 4
          %3485 = vsyncadd %s3471, %s3484
          %p3486 = scmp.ne.s32.totalorder 0, %s3482
          %s3487 = smul.addr %s3478, 8
          %s3488 = scalar_lea.hbm %s8, %s3487
          %s3489 = smul.u32 8, %s3481
          %s3490 = sshll.u32 %s3474, 4
          %s3491 = int_to_ptr.vmem [resolvable:$true] %s3490
          %s3492 = sshll.u32 %s3488, 4
          %s3493 = int_to_ptr.hbm [resolvable:$true] %s3492
          %s3494 = sshll.u32 %s3489, 4
          %3498 = dma.vmem_to_hbm [thread:$0]  (%p3486), %s3491, %s3494, %s3493, %s3471, 128, 128, 8
        $region76: #{tpu_custom_call.1} parent=51 // pred_fallthru
          _
      $region52: #{tpu_custom_call.1} parent=5 // pred_fallthru
        _
      %p3499 = scmp.le.s32.totalorder 2, %s23
      // Predicated region
      $region77: #{tpu_custom_call.1} parent=5 // pred_check
        %p3500 = pneg %p3499
      $region78: #{tpu_custom_call.1} parent=5 // pred_check_branch
        %3502 = sbr.rel (%p3500) target = $region80
      $region79: #{tpu_custom_call.1} parent=5 // pred_region
        %s3503 = ssub.s32 %s23, 2
        // Predicated region
        $region81: #{tpu_custom_call.1} parent=79 // pred_check
          %p3504 = pneg %p225
        $region82: #{tpu_custom_call.1} parent=79 // pred_check_branch
          %3506 = sbr.rel (%p3504) target = $region84
        $region83: #{tpu_custom_call.1} parent=79 // pred_region
          %s3507 = sand.u32 %s210, 1
          %s3508 = scalar_lea.sflag [#allocation4], %s3507
          %s3509 = sand.u32 %s210, 1
          %s3510 = smul.addr %s3509, 128
          %s3511 = scalar_lea.vmem [#allocation12], %s3510
          %3513 = dma.done %s3508, 2048
        $region84: #{tpu_custom_call.1} parent=79 // pred_fallthru
          _
      $region80: #{tpu_custom_call.1} parent=5 // pred_fallthru
        _
    $region6: #{tpu_custom_call.1} parent=1 // loop_footer
      %s27 = sadd.s32 1, %s23
    $region7: #{tpu_custom_call.1} parent=1 // loop_footer_branch
      %22 = sbr.rel target = $region3
    $region8: #{tpu_custom_call.1} parent=1 // loop_exit
      _
    %3514 = vsyncpa [#allocation3], 1
    %s3515 = scalar_lea.sflag [#allocation3], 1
    %3516 = vsyncpa %s3515, 1
    %3517 = vsyncpa [#allocation8], 1
    %3518 = vsyncpa [#allocation11], 1
    %3519 = vsyncpa [#allocation4], 1
    %s3520 = scalar_lea.sflag [#allocation4], 1
    %3521 = vsyncpa %s3520, 1
    %3522 = vsyncpa [#allocation5], 1
    %s3523 = scalar_lea.sflag [#allocation5], 1
    %3524 = vsyncpa %s3523, 1

</llo_original>
